<compile_context>
chip_gen: v6e
topology: v6e:2x2x1
jax: 0.10.0
libtpu: 0.0.40
codegen_flags: <defaults>
</compile_context>

<pallas_src>
import functools

import jax
import jax.numpy as jnp
from jax.experimental import pallas as pl
from jax.experimental.pallas import tpu as pltpu

BN_EPS = 1e-5


def _round_up(x, m):
    return ((x + m - 1) // m) * m


@functools.lru_cache(maxsize=1)
def _vmem_budget():
    """Generation-aware VMEM limit: ~3/4 of physical, capped at 100 MiB.

    v5e/v6e (128 MiB) -> 96 MiB; v7x (64 MiB) -> 48 MiB; fallback 48 MiB."""
    cap = None
    try:
        cap = getattr(pltpu.get_tpu_info(), "vmem_capacity_bytes", None)
    except Exception:
        cap = None
    if not cap:
        cap = 64 * 1024 * 1024
    return min(int(cap) * 3 // 4, 100 * 1024 * 1024)


def _pick_rows(Mp, Cp, n_arrays):
    """Largest row tile whose double-buffered working set fits the VMEM budget."""
    cap = max(8, _vmem_budget() // (2 * n_arrays * Cp * 4))
    if Mp <= cap:
        return Mp
    for t in (8192, 4096, 2048, 1024, 512, 256, 128, 64, 32, 16, 8):
        if t <= cap and Mp % t == 0:
            return t
    return 8  # Mp is always a multiple of 8 by construction


# ----------------------------------------------------------------------------
# Pallas kernels
# ----------------------------------------------------------------------------
def _matmul_stats_kernel(a_ref, b_ref, o_ref, stats_ref, acc_ref):
    """out[i,j] = sum_k A[i,k] @ B[k,j] (K innermost).  The last-K epilogue also
    writes per-channel [sum ; sum-of-squares] partials of the f32 accumulator so
    the following BatchNorm needs no extra streaming pass over the output."""
    k = pl.program_id(2)

    @pl.when(k == 0)
    def _():
        acc_ref[...] = jnp.zeros_like(acc_ref)

    acc_ref[...] += jnp.dot(a_ref[...], b_ref[...],
                            preferred_element_type=jnp.float32)

    @pl.when(k == pl.num_programs(2) - 1)
    def _():
        acc = acc_ref[...]
        o_ref[...] = acc.astype(o_ref.dtype)
        s = jnp.sum(acc, axis=0, keepdims=True)           # (1, tn)
        ss = jnp.sum(acc * acc, axis=0, keepdims=True)    # (1, tn)
        stats_ref[...] = jnp.concatenate([s, ss], axis=0)[None, :, :]


def _scale_shift_kernel(x_ref, scale_ref, shift_ref, o_ref, *, relu):
    """y = x*scale + shift (+ReLU); lane-dense channels, f32 math, cast on store."""
    y = x_ref[...].astype(jnp.float32) * scale_ref[...] + shift_ref[...]
    if relu:
        y = jnp.maximum(y, 0.0)
    o_ref[...] = y.astype(o_ref.dtype)


def _bn_residual_kernel(x_ref, sx_ref, bx_ref, r_ref, sr_ref, br_ref, o_ref):
    """Fused bn2 + (downsample-BN or identity) + residual add + ReLU."""
    y = (x_ref[...].astype(jnp.float32) * sx_ref[...] + bx_ref[...]
         + r_ref[...].astype(jnp.float32) * sr_ref[...] + br_ref[...])
    o_ref[...] = jnp.maximum(y, 0.0).astype(o_ref.dtype)


# ----------------------------------------------------------------------------
# Pallas-call wrappers
# ----------------------------------------------------------------------------
def conv_matmul(A, B, out_dtype=jnp.bfloat16):
    """A:(M,K) @ B:(K,N) on the MXU (bf16 operands, f32 accumulation).

    Returns (out, stats):
      out   : (Mp, Np) `out_dtype`; rows zero-padded to Mp, N lane-padded to Np.
      stats : (2, Np) f32 per-channel [sum, sum-of-squares] of the f32
              accumulator (padded rows / channels contribute exactly 0).
    """
    M, K = A.shape
    _, N = B.shape

    # K tiling: the im2col contractions here are small (9*C) -> run a single
    # full-width K step with ZERO K padding.  Large K falls back to aligned chunks.
    if K <= 2048:
        Kp, tk = K, K
    else:
        Kp = _round_up(K, 128)
        tk = 512 if Kp % 512 == 0 else (256 if Kp % 256 == 0 else 128)

    Np = _round_up(N, 128)                   # lane-dense output stores
    tn = 256 if Np % 256 == 0 else 128

    m8 = _round_up(max(M, 8), 8)
    if m8 <= 1024:
        tm = m8                              # single M block, no M padding
    else:
        budget = _vmem_budget()
        ob = 2 if out_dtype == jnp.bfloat16 else 4
        tm = 128
        for cand in (1024, 512, 256):
            est = (2 * cand * tk * 2 + 2 * tk * tn * 2
                   + 2 * cand * tn * ob + cand * tn * 4 + 4 * tn * 4)
            if est <= budget * 3 // 5:
                tm = cand
                break
    Mp = _round_up(M, tm)

    A = A.astype(jnp.bfloat16)
    B = B.astype(jnp.bfloat16)
    if (Mp, Kp) != (M, K):
        A = jnp.pad(A, ((0, Mp - M), (0, Kp - K)))
    if (Kp, Np) != (K, N):
        B = jnp.pad(B, ((0, Kp - K), (0, Np - N)))

    out, stats = pl.pallas_call(
        _matmul_stats_kernel,
        out_shape=(jax.ShapeDtypeStruct((Mp, Np), out_dtype),
                   jax.ShapeDtypeStruct((Mp // tm, 2, Np), jnp.float32)),
        grid_spec=pltpu.PrefetchScalarGridSpec(
            num_scalar_prefetch=0,
            grid=(Mp // tm, Np // tn, Kp // tk),
            in_specs=[
                pl.BlockSpec((tm, tk), lambda i, j, k: (i, k)),
                pl.BlockSpec((tk, tn), lambda i, j, k: (k, j)),
            ],
            out_specs=[
                pl.BlockSpec((tm, tn), lambda i, j, k: (i, j)),
                pl.BlockSpec((1, 2, tn), lambda i, j, k: (i, 0, j)),
            ],
            scratch_shapes=[pltpu.VMEM((tm, tn), jnp.float32)],
        ),
        compiler_params=pltpu.CompilerParams(
            dimension_semantics=("parallel", "parallel", "arbitrary"),
            vmem_limit_bytes=_vmem_budget(),
        ),
    )(A, B)
    # Tiny plain-JAX reduce of per-M-tile partials; keeps the M grid axis
    # "parallel" so both v7x TensorCores stay busy during the matmul.
    return out, jnp.sum(stats, axis=0)


def scale_shift_act(x2d, scale, shift, *, relu, out_dtype):
    """Gridded elementwise y = x*scale + shift (+ReLU) on a lane-padded (Mp,Cp) slab."""
    Mp, Cp = x2d.shape
    tr = _pick_rows(Mp, Cp, n_arrays=3)
    row = pl.BlockSpec((tr, Cp), lambda i: (i, 0))
    vec = pl.BlockSpec((1, Cp), lambda i: (0, 0))
    return pl.pallas_call(
        functools.partial(_scale_shift_kernel, relu=relu),
        out_shape=jax.ShapeDtypeStruct((Mp, Cp), out_dtype),
        grid_spec=pltpu.PrefetchScalarGridSpec(
            num_scalar_prefetch=0,
            grid=(Mp // tr,),
            in_specs=[row, vec, vec],
            out_specs=row,
        ),
        compiler_params=pltpu.CompilerParams(
            dimension_semantics=("parallel",),
            vmem_limit_bytes=_vmem_budget(),
        ),
    )(x2d, scale, shift)


def bn_residual_act(x2d, sx, bx, r2d, sr, br, out_dtype=jnp.float32):
    """Fused bn2 + downsample-BN (or identity) + residual + ReLU, one pass."""
    Mp, Cp = x2d.shape
    tr = _pick_rows(Mp, Cp, n_arrays=4)
    row = pl.BlockSpec((tr, Cp), lambda i: (i, 0))
    vec = pl.BlockSpec((1, Cp), lambda i: (0, 0))
    return pl.pallas_call(
        _bn_residual_kernel,
        out_shape=jax.ShapeDtypeStruct((Mp, Cp), out_dtype),
        grid_spec=pltpu.PrefetchScalarGridSpec(
            num_scalar_prefetch=0,
            grid=(Mp // tr,),
            in_specs=[row, vec, vec, row, vec, vec],
            out_specs=row,
        ),
        compiler_params=pltpu.CompilerParams(
            dimension_semantics=("parallel",),
            vmem_limit_bytes=_vmem_budget(),
        ),
    )(x2d, sx, bx, r2d, sr, br)


# ----------------------------------------------------------------------------
# Plain-JAX glue (im2col, weight reshape, BN scale/shift derivation)
# ----------------------------------------------------------------------------
def _im2col(x, KH, KW, stride, padding):
    """x: (N,H,W,Cin) bf16 -> (N*Ho*Wo, KH*KW*Cin) bf16 patch matrix."""
    Nb, H, W, Cin = x.shape
    Ho = (H + 2 * padding - KH) // stride + 1
    Wo = (W + 2 * padding - KW) // stride + 1
    xp = jnp.pad(x, ((0, 0), (padding, padding), (padding, padding), (0, 0))) \
        if padding else x
    if KH == 1 and KW == 1:
        A = xp[:, : (Ho - 1) * stride + 1: stride,
                  : (Wo - 1) * stride + 1: stride, :].reshape(Nb * Ho * Wo, Cin)
    else:
        # TODO(synk): implicit-GEMM fusion — feed per-tap shifted windows of the
        # padded NHWC input straight into the matmul grid (tap folded into the K
        # axis) so this KH*KW-expanded (now bf16) patch tensor never hits HBM.
        cols = [xp[:, kh: kh + (Ho - 1) * stride + 1: stride,
                      kw: kw + (Wo - 1) * stride + 1: stride, :]
                for kh in range(KH) for kw in range(KW)]
        A = jnp.concatenate(cols, axis=-1).reshape(Nb * Ho * Wo, KH * KW * Cin)
    return A, Ho, Wo


def _w_to_mat(w):
    """(Cout, Cin, KH, KW) OIHW -> (KH*KW*Cin, Cout) bf16, matching _im2col order."""
    Cout, Cin, KH, KW = w.shape
    return jnp.transpose(w, (2, 3, 1, 0)).reshape(KH * KW * Cin, Cout) \
              .astype(jnp.bfloat16)


def _bn_scale_shift(stats, count, gamma, beta, Cp):
    """Training-mode BN folded into y = x*scale + shift.

    gamma/beta are zero-padded to Cp so lane-padded channels get
    scale = shift = 0 and remain exactly zero through the elementwise passes."""
    mean = stats[0] / count
    var = jnp.maximum(stats[1] / count - mean * mean, 0.0)    # biased variance
    g = jnp.pad(gamma.astype(jnp.float32), (0, Cp - gamma.shape[0]))
    b = jnp.pad(beta.astype(jnp.float32), (0, Cp - beta.shape[0]))
    scale = g * jax.lax.rsqrt(var + BN_EPS)
    shift = b - mean * scale
    return scale.reshape(1, Cp), shift.reshape(1, Cp)


# ----------------------------------------------------------------------------
# BasicBlock forward (mirrors the PyTorch module; norm_layer = BatchNorm2d)
# ----------------------------------------------------------------------------
def basic_block_forward(params, x_nchw, *, stride, has_downsample):
    # NCHW -> NHWC, bf16 activations (documented deviation from the f32
    # PyTorch reference; accumulation and statistics are f32 inside kernels).
    x = jnp.transpose(x_nchw, (0, 2, 3, 1)).astype(jnp.bfloat16)
    Nb, H, W, Cin = x.shape
    Cout = params["conv1_w"].shape[0]
    Cp = _round_up(Cout, 128)

    # conv1 (3x3, stride) — matmul epilogue also yields bn1 batch statistics.
    A1, Ho, Wo = _im2col(x, 3, 3, stride, 1)
    y1, st1 = conv_matmul(A1, _w_to_mat(params["conv1_w"]))
    M = Nb * Ho * Wo
    s1, b1 = _bn_scale_shift(st1, M, *params["bn1"], Cp)

    # bn1 + ReLU (lane-dense, bf16 out -> feeds conv2's im2col directly).
    h1 = scale_shift_act(y1, s1, b1, relu=True, out_dtype=jnp.bfloat16)

    # conv2 (3x3, stride 1) + bn2 batch statistics.
    h1_4d = h1[:M, :Cout].reshape(Nb, Ho, Wo, Cout)
    A2, _, _ = _im2col(h1_4d, 3, 3, 1, 1)
    y2, st2 = conv_matmul(A2, _w_to_mat(params["conv2_w"]))
    s2, b2 = _bn_scale_shift(st2, M, *params["bn2"], Cp)
    Mp = y2.shape[0]

    # Identity branch: raw 1x1-conv output with its BN scale/shift applied
    # inside the fused residual kernel (no separate downsample-BN pass), or the
    # lane-padded input itself with scale=1, shift=0.
    if has_downsample:
        Ad, _, _ = _im2col(x, 1, 1, stride, 0)
        yd, st_d = conv_matmul(Ad, _w_to_mat(params["down_conv_w"]))
        sd, bd = _bn_scale_shift(st_d, M, *params["down_bn"], Cp)
        if yd.shape[0] < Mp:
            ident = jnp.pad(yd, ((0, Mp - yd.shape[0]), (0, 0)))
        else:
            ident = yd[:Mp]
    else:
        ident = jnp.pad(x.reshape(M, Cin), ((0, Mp - M), (0, Cp - Cin)))
        sd = jnp.ones((1, Cp), jnp.float32)
        bd = jnp.zeros((1, Cp), jnp.float32)

    # bn2 + downsample-BN + residual add + ReLU, fused in one pass (f32 out).
    out2d = bn_residual_act(y2, s2, b2, ident, sd, bd)
    out = out2d[:M, :Cout].reshape(Nb, Ho, Wo, Cout)   # slice before transpose
    return jnp.transpose(out, (0, 3, 1, 2))            # NHWC -> NCHW


# ----------------------------------------------------------------------------
# Parameter construction (deterministic, matches nn.Module shapes)
# ----------------------------------------------------------------------------
def kaiming_conv(key, cout, cin, kh, kw):
    fan_out = cout * kh * kw
    std = (2.0 / fan_out) ** 0.5
    return std * jax.random.normal(key, (cout, cin, kh, kw), jnp.float32)


def make_block_params(key, in_ch, out_ch, stride):
    k1, k2, k3 = jax.random.split(key, 3)
    params = {
        "conv1_w": kaiming_conv(k1, out_ch, in_ch, 3, 3),
        "bn1": (jnp.ones(out_ch, jnp.float32), jnp.zeros(out_ch, jnp.float32)),
        "conv2_w": kaiming_conv(k2, out_ch, out_ch, 3, 3),
        "bn2": (jnp.ones(out_ch, jnp.float32), jnp.zeros(out_ch, jnp.float32)),
    }
    has_down = (stride != 1) or (in_ch != out_ch)
    if has_down:   # conventional ResNet downsample: 1x1 conv (stride) + BN
        params["down_conv_w"] = kaiming_conv(k3, out_ch, in_ch, 1, 1)
        params["down_bn"] = (jnp.ones(out_ch, jnp.float32),
                             jnp.zeros(out_ch, jnp.float32))
    return params, has_down


if __name__ == "__main__":
    key = jax.random.PRNGKey(0)
    kx, ka, kb = jax.random.split(key, 3)

    x = jax.random.normal(kx, (2, 16, 16, 16), jnp.float32)   # NCHW like PyTorch

    # Block A: identity shortcut (stride=1, in==out, downsample=None).
    params_a, down_a = make_block_params(ka, 16, 16, stride=1)
    fwd_a = jax.jit(functools.partial(basic_block_forward,
                                      stride=1, has_downsample=down_a))
    out_a = fwd_a(params_a, x)

    # Block B: strided block with 1x1-conv + BN downsample (ResNet usage).
    params_b, down_b = make_block_params(kb, 16, 32, stride=2)
    fwd_b = jax.jit(functools.partial(basic_block_forward,
                                      stride=2, has_downsample=down_b))
    out_b = fwd_b(params_b, x)

    jax.block_until_ready((out_a, out_b))
    assert out_a.shape == (2, 16, 16, 16)
    assert out_b.shape == (2, 32, 8, 8)
    assert bool(jnp.all(jnp.isfinite(out_a))) and bool(jnp.all(jnp.isfinite(out_b)))
    assert bool(jnp.all(out_a >= 0)) and bool(jnp.all(out_b >= 0))  # final ReLU
    print("KERNEL_OK")
</pallas_src>

<mosaic_0001>
module attributes {stable_mosaic.version = 11 : i64} {
  func.func @_scale_shift_kernel(%arg0: i32, %arg1: memref<512x128xbf16, #tpu.memory_space<vmem>>, %arg2: memref<1x128xf32, #tpu.memory_space<vmem>>, %arg3: memref<1x128xf32, #tpu.memory_space<vmem>>, %arg4: memref<512x128xbf16, #tpu.memory_space<vmem>>) attributes {dimension_semantics = [#tpu.dimension_semantics<parallel>], iteration_bounds = array<i64: 1>, scalar_prefetch = 0 : i64, scratch_operands = 0 : i64, tpu.core_type = #tpu.core_type<tc>, window_params = [{transform_indices = @transform_0, window_bounds = array<i64: 512, 128>}, {pipeline_mode = #tpu.pipeline_mode<synchronous>, transform_indices = @transform_1, window_bounds = array<i64: 1, 128>}, {pipeline_mode = #tpu.pipeline_mode<synchronous>, transform_indices = @transform_2, window_bounds = array<i64: 1, 128>}, {transform_indices = @transform_3, window_bounds = array<i64: 512, 128>}]} {
    %c0 = arith.constant 0 : index
    %c0_0 = arith.constant 0 : index
    %0 = vector.load %arg1[%c0, %c0_0] : memref<512x128xbf16, #tpu.memory_space<vmem>>, vector<512x128xbf16>
    %1 = arith.extf %0 : vector<512x128xbf16> to vector<512x128xf32>
    %c0_1 = arith.constant 0 : index
    %c0_2 = arith.constant 0 : index
    %2 = vector.load %arg2[%c0_1, %c0_2] : memref<1x128xf32, #tpu.memory_space<vmem>>, vector<1x128xf32>
    %3 = vector.broadcast %2 : vector<1x128xf32> to vector<512x128xf32>
    %4 = arith.mulf %1, %3 : vector<512x128xf32>
    %c0_3 = arith.constant 0 : index
    %c0_4 = arith.constant 0 : index
    %5 = vector.load %arg3[%c0_3, %c0_4] : memref<1x128xf32, #tpu.memory_space<vmem>>, vector<1x128xf32>
    %6 = vector.broadcast %5 : vector<1x128xf32> to vector<512x128xf32>
    %7 = arith.addf %4, %6 : vector<512x128xf32>
    %cst = arith.constant 0.000000e+00 : f32
    %8 = vector.broadcast %cst : f32 to vector<512x128xf32>
    %9 = arith.maximumf %7, %8 : vector<512x128xf32>
    %10 = arith.truncf %9 : vector<512x128xf32> to vector<512x128xbf16>
    %c0_5 = arith.constant 0 : index
    %c0_6 = arith.constant 0 : index
    %11 = vector.load %arg4[%c0_5, %c0_6] : memref<512x128xbf16, #tpu.memory_space<vmem>>, vector<512x128xbf16>
    tpu.vector_store %arg4[%c0_5, %c0_6], %10 {strides = array<i32>} : memref<512x128xbf16, #tpu.memory_space<vmem>>, vector<512x128xbf16>,
    return
  }
  func.func @transform_0(%arg0: i32) -> (i32, i32) {
    %c0_i32 = arith.constant 0 : i32
    %c0_i32_0 = arith.constant 0 : i32
    return %arg0, %c0_i32 : i32, i32
  }
  func.func @transform_1(%arg0: i32) -> (i32, i32) {
    %c0_i32 = arith.constant 0 : i32
    %c0_i32_0 = arith.constant 0 : i32
    %c0_i32_1 = arith.constant 0 : i32
    return %c0_i32, %c0_i32_0 : i32, i32
  }
  func.func @transform_2(%arg0: i32) -> (i32, i32) {
    %c0_i32 = arith.constant 0 : i32
    %c0_i32_0 = arith.constant 0 : i32
    %c0_i32_1 = arith.constant 0 : i32
    return %c0_i32, %c0_i32_0 : i32, i32
  }
  func.func @transform_3(%arg0: i32) -> (i32, i32) {
    %c0_i32 = arith.constant 0 : i32
    %c0_i32_0 = arith.constant 0 : i32
    return %arg0, %c0_i32 : i32, i32
  }
}

module attributes {stable_mosaic.version = 11 : i64} {
  func.func @_matmul_stats_kernel(%arg0: i32, %arg1: i32, %arg2: i32, %arg3: memref<512x144xbf16, #tpu.memory_space<vmem>>, %arg4: memref<144x128xbf16, #tpu.memory_space<vmem>>, %arg5: memref<512x128xbf16, #tpu.memory_space<vmem>>, %arg6: memref<1x2x128xf32, #tpu.memory_space<vmem>>, %arg7: memref<512x128xf32, #tpu.memory_space<vmem>>) attributes {dimension_semantics = [#tpu.dimension_semantics<parallel>, #tpu.dimension_semantics<parallel>, #tpu.dimension_semantics<arbitrary>], iteration_bounds = array<i64: 1, 1, 1>, scalar_prefetch = 0 : i64, scratch_operands = 1 : i64, tpu.core_type = #tpu.core_type<tc>, window_params = [{transform_indices = @transform_0, window_bounds = array<i64: 512, 144>}, {transform_indices = @transform_1, window_bounds = array<i64: 144, 128>}, {transform_indices = @transform_2, window_bounds = array<i64: 512, 128>}, {transform_indices = @transform_3, window_bounds = array<i64: 1, 2, 128>}]} {
    %c0_i32 = arith.constant 0 : i32
    %0 = arith.cmpi eq, %arg2, %c0_i32 : i32
    %1 = arith.extui %0 : i1 to i32
    %c0_i32_0 = arith.constant 0 : i32
    %2 = arith.cmpi ne, %1, %c0_i32_0 : i32
    scf.if %2 {
      %cst_10 = arith.constant 0.000000e+00 : f32
      %12 = vector.broadcast %cst_10 : f32 to vector<512x128xf32>
      %c0_11 = arith.constant 0 : index
      %c0_12 = arith.constant 0 : index
      %13 = vector.load %arg7[%c0_11, %c0_12] : memref<512x128xf32, #tpu.memory_space<vmem>>, vector<512x128xf32>
      tpu.vector_store %arg7[%c0_11, %c0_12], %12 {strides = array<i32>} : memref<512x128xf32, #tpu.memory_space<vmem>>, vector<512x128xf32>,
    } else {
    }
    %c0 = arith.constant 0 : index
    %c0_1 = arith.constant 0 : index
    %3 = vector.load %arg7[%c0, %c0_1] : memref<512x128xf32, #tpu.memory_space<vmem>>, vector<512x128xf32>
    %c0_2 = arith.constant 0 : index
    %c0_3 = arith.constant 0 : index
    %4 = vector.load %arg3[%c0_2, %c0_3] : memref<512x144xbf16, #tpu.memory_space<vmem>>, vector<512x144xbf16>
    %c0_4 = arith.constant 0 : index
    %c0_5 = arith.constant 0 : index
    %5 = vector.load %arg4[%c0_4, %c0_5] : memref<144x128xbf16, #tpu.memory_space<vmem>>, vector<144x128xbf16>
    %cst = arith.constant dense<0.000000e+00> : vector<512x128xf32>
    %6 = tpu.matmul %4, %5, %cst {dimension_numbers = #tpu.dot_dimension_numbers<[1], [0], [0], [1], [0, 0, 1, 1], [], []>} : vector<512x144xbf16>, vector<144x128xbf16>, vector<512x128xf32> -> vector<512x128xf32>
    %7 = arith.addf %3, %6 : vector<512x128xf32>
    %c0_6 = arith.constant 0 : index
    %c0_7 = arith.constant 0 : index
    %8 = vector.load %arg7[%c0_6, %c0_7] : memref<512x128xf32, #tpu.memory_space<vmem>>, vector<512x128xf32>
    tpu.vector_store %arg7[%c0_6, %c0_7], %7 {strides = array<i32>} : memref<512x128xf32, #tpu.memory_space<vmem>>, vector<512x128xf32>,
    %c0_i32_8 = arith.constant 0 : i32
    %9 = arith.cmpi eq, %arg2, %c0_i32_8 : i32
    %10 = arith.extui %9 : i1 to i32
    %c0_i32_9 = arith.constant 0 : i32
    %11 = arith.cmpi ne, %10, %c0_i32_9 : i32
    scf.if %11 {
      %c0_10 = arith.constant 0 : index
      %c0_11 = arith.constant 0 : index
      %12 = vector.load %arg7[%c0_10, %c0_11] : memref<512x128xf32, #tpu.memory_space<vmem>>, vector<512x128xf32>
      %13 = arith.truncf %12 : vector<512x128xf32> to vector<512x128xbf16>
      %c0_12 = arith.constant 0 : index
      %c0_13 = arith.constant 0 : index
      %14 = vector.load %arg5[%c0_12, %c0_13] : memref<512x128xbf16, #tpu.memory_space<vmem>>, vector<512x128xbf16>
      tpu.vector_store %arg5[%c0_12, %c0_13], %13 {strides = array<i32>} : memref<512x128xbf16, #tpu.memory_space<vmem>>, vector<512x128xbf16>,
      %cst_14 = arith.constant dense<0.000000e+00> : vector<128xf32>
      %15 = vector.multi_reduction <add>, %12, %cst_14 [0] : vector<512x128xf32> to vector<128xf32>
      %16 = vector.shape_cast %15 : vector<128xf32> to vector<1x128xf32>
      %17 = arith.mulf %12, %12 : vector<512x128xf32>
      %cst_15 = arith.constant dense<0.000000e+00> : vector<128xf32>
      %18 = vector.multi_reduction <add>, %17, %cst_15 [0] : vector<512x128xf32> to vector<128xf32>
      %19 = vector.shape_cast %18 : vector<128xf32> to vector<1x128xf32>
      %20 = tpu.concatenate %16, %19 in 0 : vector<1x128xf32>, vector<1x128xf32> -> vector<2x128xf32>
      %21 = vector.shape_cast %20 : vector<2x128xf32> to vector<1x2x128xf32>
      %c0_16 = arith.constant 0 : index
      %c0_17 = arith.constant 0 : index
      %c0_18 = arith.constant 0 : index
      %22 = vector.load %arg6[%c0_16, %c0_17, %c0_18] : memref<1x2x128xf32, #tpu.memory_space<vmem>>, vector<1x2x128xf32>
      tpu.vector_store %arg6[%c0_16, %c0_17, %c0_18], %21 {strides = array<i32>} : memref<1x2x128xf32, #tpu.memory_space<vmem>>, vector<1x2x128xf32>,
    } else {
    }
    return
  }
  func.func @transform_0(%arg0: i32, %arg1: i32, %arg2: i32) -> (i32, i32) {
    %c0_i32 = arith.constant 0 : i32
    return %arg0, %arg2 : i32, i32
  }
  func.func @transform_1(%arg0: i32, %arg1: i32, %arg2: i32) -> (i32, i32) {
    %c0_i32 = arith.constant 0 : i32
    return %arg2, %arg1 : i32, i32
  }
  func.func @transform_2(%arg0: i32, %arg1: i32, %arg2: i32) -> (i32, i32) {
    %c0_i32 = arith.constant 0 : i32
    return %arg0, %arg1 : i32, i32
  }
  func.func @transform_3(%arg0: i32, %arg1: i32, %arg2: i32) -> (i32, i32, i32) {
    %c0_i32 = arith.constant 0 : i32
    %c0_i32_0 = arith.constant 0 : i32
    return %arg0, %c0_i32, %arg1 : i32, i32, i32
  }
}

module attributes {stable_mosaic.version = 11 : i64} {
  func.func @_bn_residual_kernel(%arg0: i32, %arg1: memref<512x128xbf16, #tpu.memory_space<vmem>>, %arg2: memref<1x128xf32, #tpu.memory_space<vmem>>, %arg3: memref<1x128xf32, #tpu.memory_space<vmem>>, %arg4: memref<512x128xbf16, #tpu.memory_space<vmem>>, %arg5: memref<1x128xf32, #tpu.memory_space<vmem>>, %arg6: memref<1x128xf32, #tpu.memory_space<vmem>>, %arg7: memref<512x128xf32, #tpu.memory_space<vmem>>) attributes {dimension_semantics = [#tpu.dimension_semantics<parallel>], iteration_bounds = array<i64: 1>, scalar_prefetch = 0 : i64, scratch_operands = 0 : i64, tpu.core_type = #tpu.core_type<tc>, window_params = [{transform_indices = @transform_0, window_bounds = array<i64: 512, 128>}, {pipeline_mode = #tpu.pipeline_mode<synchronous>, transform_indices = @transform_1, window_bounds = array<i64: 1, 128>}, {pipeline_mode = #tpu.pipeline_mode<synchronous>, transform_indices = @transform_2, window_bounds = array<i64: 1, 128>}, {transform_indices = @transform_3, window_bounds = array<i64: 512, 128>}, {pipeline_mode = #tpu.pipeline_mode<synchronous>, transform_indices = @transform_4, window_bounds = array<i64: 1, 128>}, {pipeline_mode = #tpu.pipeline_mode<synchronous>, transform_indices = @transform_5, window_bounds = array<i64: 1, 128>}, {transform_indices = @transform_6, window_bounds = array<i64: 512, 128>}]} {
    %c0 = arith.constant 0 : index
    %c0_0 = arith.constant 0 : index
    %0 = vector.load %arg1[%c0, %c0_0] : memref<512x128xbf16, #tpu.memory_space<vmem>>, vector<512x128xbf16>
    %1 = arith.extf %0 : vector<512x128xbf16> to vector<512x128xf32>
    %c0_1 = arith.constant 0 : index
    %c0_2 = arith.constant 0 : index
    %2 = vector.load %arg2[%c0_1, %c0_2] : memref<1x128xf32, #tpu.memory_space<vmem>>, vector<1x128xf32>
    %3 = vector.broadcast %2 : vector<1x128xf32> to vector<512x128xf32>
    %4 = arith.mulf %1, %3 : vector<512x128xf32>
    %c0_3 = arith.constant 0 : index
    %c0_4 = arith.constant 0 : index
    %5 = vector.load %arg3[%c0_3, %c0_4] : memref<1x128xf32, #tpu.memory_space<vmem>>, vector<1x128xf32>
    %6 = vector.broadcast %5 : vector<1x128xf32> to vector<512x128xf32>
    %7 = arith.addf %4, %6 : vector<512x128xf32>
    %c0_5 = arith.constant 0 : index
    %c0_6 = arith.constant 0 : index
    %8 = vector.load %arg4[%c0_5, %c0_6] : memref<512x128xbf16, #tpu.memory_space<vmem>>, vector<512x128xbf16>
    %9 = arith.extf %8 : vector<512x128xbf16> to vector<512x128xf32>
    %c0_7 = arith.constant 0 : index
    %c0_8 = arith.constant 0 : index
    %10 = vector.load %arg5[%c0_7, %c0_8] : memref<1x128xf32, #tpu.memory_space<vmem>>, vector<1x128xf32>
    %11 = vector.broadcast %10 : vector<1x128xf32> to vector<512x128xf32>
    %12 = arith.mulf %9, %11 : vector<512x128xf32>
    %13 = arith.addf %7, %12 : vector<512x128xf32>
    %c0_9 = arith.constant 0 : index
    %c0_10 = arith.constant 0 : index
    %14 = vector.load %arg6[%c0_9, %c0_10] : memref<1x128xf32, #tpu.memory_space<vmem>>, vector<1x128xf32>
    %15 = vector.broadcast %14 : vector<1x128xf32> to vector<512x128xf32>
    %16 = arith.addf %13, %15 : vector<512x128xf32>
    %cst = arith.constant 0.000000e+00 : f32
    %17 = vector.broadcast %cst : f32 to vector<512x128xf32>
    %18 = arith.maximumf %16, %17 : vector<512x128xf32>
    %c0_11 = arith.constant 0 : index
    %c0_12 = arith.constant 0 : index
    %19 = vector.load %arg7[%c0_11, %c0_12] : memref<512x128xf32, #tpu.memory_space<vmem>>, vector<512x128xf32>
    tpu.vector_store %arg7[%c0_11, %c0_12], %18 {strides = array<i32>} : memref<512x128xf32, #tpu.memory_space<vmem>>, vector<512x128xf32>,
    return
  }
  func.func @transform_0(%arg0: i32) -> (i32, i32) {
    %c0_i32 = arith.constant 0 : i32
    %c0_i32_0 = arith.constant 0 : i32
    return %arg0, %c0_i32 : i32, i32
  }
  func.func @transform_1(%arg0: i32) -> (i32, i32) {
    %c0_i32 = arith.constant 0 : i32
    %c0_i32_0 = arith.constant 0 : i32
    %c0_i32_1 = arith.constant 0 : i32
    return %c0_i32, %c0_i32_0 : i32, i32
  }
  func.func @transform_2(%arg0: i32) -> (i32, i32) {
    %c0_i32 = arith.constant 0 : i32
    %c0_i32_0 = arith.constant 0 : i32
    %c0_i32_1 = arith.constant 0 : i32
    return %c0_i32, %c0_i32_0 : i32, i32
  }
  func.func @transform_3(%arg0: i32) -> (i32, i32) {
    %c0_i32 = arith.constant 0 : i32
    %c0_i32_0 = arith.constant 0 : i32
    return %arg0, %c0_i32 : i32, i32
  }
  func.func @transform_4(%arg0: i32) -> (i32, i32) {
    %c0_i32 = arith.constant 0 : i32
    %c0_i32_0 = arith.constant 0 : i32
    %c0_i32_1 = arith.constant 0 : i32
    return %c0_i32, %c0_i32_0 : i32, i32
  }
  func.func @transform_5(%arg0: i32) -> (i32, i32) {
    %c0_i32 = arith.constant 0 : i32
    %c0_i32_0 = arith.constant 0 : i32
    %c0_i32_1 = arith.constant 0 : i32
    return %c0_i32, %c0_i32_0 : i32, i32
  }
  func.func @transform_6(%arg0: i32) -> (i32, i32) {
    %c0_i32 = arith.constant 0 : i32
    %c0_i32_0 = arith.constant 0 : i32
    return %arg0, %c0_i32 : i32, i32
  }
}

</mosaic_0001>

<llo_original>
// kernel: basic_block_forward.5
$region0: #{basic_block_forward.5}
  #allocation0 [shape = 'u32[]', space=smem, size = 0x4, offset = 0x4, fixed_abs, tag = 'smem constant byte address 0x4 - core index']
  #allocation1 [shape = 'u32[144,128]{1,0:T(1,128)}', space=vmem, size = 0x12000, scoped, tag = 'internal scratch']
  %s0 = inlined_call_operand.vmem [shape: bf16[512,128], index: 0, kind: input, shape index: {}]
  %s1 = inlined_call_operand.vmem [shape: f32[1,128], index: 1, kind: input, shape index: {}]
  %s2 = inlined_call_operand.vmem [shape: f32[1,128], index: 2, kind: input, shape index: {}]
  %s3 = inlined_call_operand.vmem [shape: bf16[512,128], index: 3, kind: output, shape index: {}]
  %s4 = sld [smem:[#allocation0]]
  $region22: #{basic_block_forward.5} parent=0
    _
  %s6 = ssub.s32 1, %s4
  %s7 = scalar_select 0, %s6, %s4
  // Predicated region
  $region2: #{basic_block_forward.5} parent=0 // pred_check
    _
  $region3: #{basic_block_forward.5} parent=0 // pred_check_branch
    %9 = sbr.rel (0) target = $region5
  $region4: #{basic_block_forward.5} parent=0 // pred_region
    _
  $region5: #{basic_block_forward.5} parent=0 // pred_fallthru
    _
  // Predicated region
  $region6: #{basic_block_forward.5} parent=0 // pred_check
    _
  $region7: #{basic_block_forward.5} parent=0 // pred_check_branch
    %11 = sbr.rel (0) target = $region9
  $region8: #{basic_block_forward.5} parent=0 // pred_region
    _
  $region9: #{basic_block_forward.5} parent=0 // pred_fallthru
    _
  // Predicated region
  $region10: #{basic_block_forward.5} parent=0 // pred_check
    _
  $region11: #{basic_block_forward.5} parent=0 // pred_check_branch
    %13 = sbr.rel (0) target = $region13
  $region12: #{basic_block_forward.5} parent=0 // pred_region
    _
  $region13: #{basic_block_forward.5} parent=0 // pred_fallthru
    _
  %v14 = vld [vmem:[%s0] sm:$0xf]
  %v15 = vld [vmem:[%s0 + $0x4] sm:$0xf]
  %v16 = vld [vmem:[%s0 + $0x8] sm:$0xf]
  %v17 = vld [vmem:[%s0 + $0xc] sm:$0xf]
  %v18 = vld [vmem:[%s0 + $0x10] sm:$0xf]
  %v19 = vld [vmem:[%s0 + $0x14] sm:$0xf]
  %v20 = vld [vmem:[%s0 + $0x18] sm:$0xf]
  %v21 = vld [vmem:[%s0 + $0x1c] sm:$0xf]
  %v22 = vld [vmem:[%s0 + $0x20] sm:$0xf]
  %v23 = vld [vmem:[%s0 + $0x24] sm:$0xf]
  %v24 = vld [vmem:[%s0 + $0x28] sm:$0xf]
  %v25 = vld [vmem:[%s0 + $0x2c] sm:$0xf]
  %v26 = vld [vmem:[%s0 + $0x30] sm:$0xf]
  %v27 = vld [vmem:[%s0 + $0x34] sm:$0xf]
  %v28 = vld [vmem:[%s0 + $0x38] sm:$0xf]
  %v29 = vld [vmem:[%s0 + $0x3c] sm:$0xf]
  %v30 = vld [vmem:[%s0 + $0x40] sm:$0xf]
  %v31 = vld [vmem:[%s0 + $0x44] sm:$0xf]
  %v32 = vld [vmem:[%s0 + $0x48] sm:$0xf]
  %v33 = vld [vmem:[%s0 + $0x4c] sm:$0xf]
  %v34 = vld [vmem:[%s0 + $0x50] sm:$0xf]
  %v35 = vld [vmem:[%s0 + $0x54] sm:$0xf]
  %v36 = vld [vmem:[%s0 + $0x58] sm:$0xf]
  %v37 = vld [vmem:[%s0 + $0x5c] sm:$0xf]
  %v38 = vld [vmem:[%s0 + $0x60] sm:$0xf]
  %v39 = vld [vmem:[%s0 + $0x64] sm:$0xf]
  %v40 = vld [vmem:[%s0 + $0x68] sm:$0xf]
  %v41 = vld [vmem:[%s0 + $0x6c] sm:$0xf]
  %v42 = vld [vmem:[%s0 + $0x70] sm:$0xf]
  %v43 = vld [vmem:[%s0 + $0x74] sm:$0xf]
  %v44 = vld [vmem:[%s0 + $0x78] sm:$0xf]
  %v45 = vld [vmem:[%s0 + $0x7c] sm:$0xf]
  %v46 = vld [vmem:[%s0 + $0x80] sm:$0xf]
  %v47 = vld [vmem:[%s0 + $0x84] sm:$0xf]
  %v48 = vld [vmem:[%s0 + $0x88] sm:$0xf]
  %v49 = vld [vmem:[%s0 + $0x8c] sm:$0xf]
  %v50 = vld [vmem:[%s0 + $0x90] sm:$0xf]
  %v51 = vld [vmem:[%s0 + $0x94] sm:$0xf]
  %v52 = vld [vmem:[%s0 + $0x98] sm:$0xf]
  %v53 = vld [vmem:[%s0 + $0x9c] sm:$0xf]
  %v54 = vld [vmem:[%s0 + $0xa0] sm:$0xf]
  %v55 = vld [vmem:[%s0 + $0xa4] sm:$0xf]
  %v56 = vld [vmem:[%s0 + $0xa8] sm:$0xf]
  %v57 = vld [vmem:[%s0 + $0xac] sm:$0xf]
  %v58 = vld [vmem:[%s0 + $0xb0] sm:$0xf]
  %v59 = vld [vmem:[%s0 + $0xb4] sm:$0xf]
  %v60 = vld [vmem:[%s0 + $0xb8] sm:$0xf]
  %v61 = vld [vmem:[%s0 + $0xbc] sm:$0xf]
  %v62 = vld [vmem:[%s0 + $0xc0] sm:$0xf]
  %v63 = vld [vmem:[%s0 + $0xc4] sm:$0xf]
  %v64 = vld [vmem:[%s0 + $0xc8] sm:$0xf]
  %v65 = vld [vmem:[%s0 + $0xcc] sm:$0xf]
  %v66 = vld [vmem:[%s0 + $0xd0] sm:$0xf]
  %v67 = vld [vmem:[%s0 + $0xd4] sm:$0xf]
  %v68 = vld [vmem:[%s0 + $0xd8] sm:$0xf]
  %v69 = vld [vmem:[%s0 + $0xdc] sm:$0xf]
  %v70 = vld [vmem:[%s0 + $0xe0] sm:$0xf]
  %v71 = vld [vmem:[%s0 + $0xe4] sm:$0xf]
  %v72 = vld [vmem:[%s0 + $0xe8] sm:$0xf]
  %v73 = vld [vmem:[%s0 + $0xec] sm:$0xf]
  %v74 = vld [vmem:[%s0 + $0xf0] sm:$0xf]
  %v75 = vld [vmem:[%s0 + $0xf4] sm:$0xf]
  %v76 = vld [vmem:[%s0 + $0xf8] sm:$0xf]
  %v77 = vld [vmem:[%s0 + $0xfc] sm:$0xf]
  %v78 = vunpack.c.l.bf16 %v14
  %v79 = vunpack.c.l.bf16 %v15
  %v80 = vunpack.c.l.bf16 %v16
  %v81 = vunpack.c.l.bf16 %v17
  %v82 = vunpack.c.l.bf16 %v18
  %v83 = vunpack.c.l.bf16 %v19
  %v84 = vunpack.c.l.bf16 %v20
  %v85 = vunpack.c.l.bf16 %v21
  %v86 = vunpack.c.l.bf16 %v22
  %v87 = vunpack.c.l.bf16 %v23
  %v88 = vunpack.c.l.bf16 %v24
  %v89 = vunpack.c.l.bf16 %v25
  %v90 = vunpack.c.l.bf16 %v26
  %v91 = vunpack.c.l.bf16 %v27
  %v92 = vunpack.c.l.bf16 %v28
  %v93 = vunpack.c.l.bf16 %v29
  %v94 = vunpack.c.l.bf16 %v30
  %v95 = vunpack.c.l.bf16 %v31
  %v96 = vunpack.c.l.bf16 %v32
  %v97 = vunpack.c.l.bf16 %v33
  %v98 = vunpack.c.l.bf16 %v34
  %v99 = vunpack.c.l.bf16 %v35
  %v100 = vunpack.c.l.bf16 %v36
  %v101 = vunpack.c.l.bf16 %v37
  %v102 = vunpack.c.l.bf16 %v38
  %v103 = vunpack.c.l.bf16 %v39
  %v104 = vunpack.c.l.bf16 %v40
  %v105 = vunpack.c.l.bf16 %v41
  %v106 = vunpack.c.l.bf16 %v42
  %v107 = vunpack.c.l.bf16 %v43
  %v108 = vunpack.c.l.bf16 %v44
  %v109 = vunpack.c.l.bf16 %v45
  %v110 = vunpack.c.l.bf16 %v46
  %v111 = vunpack.c.l.bf16 %v47
  %v112 = vunpack.c.l.bf16 %v48
  %v113 = vunpack.c.l.bf16 %v49
  %v114 = vunpack.c.l.bf16 %v50
  %v115 = vunpack.c.l.bf16 %v51
  %v116 = vunpack.c.l.bf16 %v52
  %v117 = vunpack.c.l.bf16 %v53
  %v118 = vunpack.c.l.bf16 %v54
  %v119 = vunpack.c.l.bf16 %v55
  %v120 = vunpack.c.l.bf16 %v56
  %v121 = vunpack.c.l.bf16 %v57
  %v122 = vunpack.c.l.bf16 %v58
  %v123 = vunpack.c.l.bf16 %v59
  %v124 = vunpack.c.l.bf16 %v60
  %v125 = vunpack.c.l.bf16 %v61
  %v126 = vunpack.c.l.bf16 %v62
  %v127 = vunpack.c.l.bf16 %v63
  %v128 = vunpack.c.l.bf16 %v64
  %v129 = vunpack.c.l.bf16 %v65
  %v130 = vunpack.c.l.bf16 %v66
  %v131 = vunpack.c.l.bf16 %v67
  %v132 = vunpack.c.l.bf16 %v68
  %v133 = vunpack.c.l.bf16 %v69
  %v134 = vunpack.c.l.bf16 %v70
  %v135 = vunpack.c.l.bf16 %v71
  %v136 = vunpack.c.l.bf16 %v72
  %v137 = vunpack.c.l.bf16 %v73
  %v138 = vunpack.c.l.bf16 %v74
  %v139 = vunpack.c.l.bf16 %v75
  %v140 = vunpack.c.l.bf16 %v76
  %v141 = vunpack.c.l.bf16 %v77
  %v142 = vld [vmem:[%s1] sm:$0x1]
  %v144 = vlaneseq
  %v145 = vshrl.u32 %v144, 7
  %v146 = vsub.s32 0, %v145
  %v147 = vrot.slane %v142, %v146
  %v149 = vmul.f32 %v78, %v147
  %v150 = vmul.f32 %v79, %v147
  %v151 = vmul.f32 %v80, %v147
  %v152 = vmul.f32 %v81, %v147
  %v153 = vmul.f32 %v82, %v147
  %v154 = vmul.f32 %v83, %v147
  %v155 = vmul.f32 %v84, %v147
  %v156 = vmul.f32 %v85, %v147
  %v157 = vmul.f32 %v86, %v147
  %v158 = vmul.f32 %v87, %v147
  %v159 = vmul.f32 %v88, %v147
  %v160 = vmul.f32 %v89, %v147
  %v161 = vmul.f32 %v90, %v147
  %v162 = vmul.f32 %v91, %v147
  %v163 = vmul.f32 %v92, %v147
  %v164 = vmul.f32 %v93, %v147
  %v165 = vmul.f32 %v94, %v147
  %v166 = vmul.f32 %v95, %v147
  %v167 = vmul.f32 %v96, %v147
  %v168 = vmul.f32 %v97, %v147
  %v169 = vmul.f32 %v98, %v147
  %v170 = vmul.f32 %v99, %v147
  %v171 = vmul.f32 %v100, %v147
  %v172 = vmul.f32 %v101, %v147
  %v173 = vmul.f32 %v102, %v147
  %v174 = vmul.f32 %v103, %v147
  %v175 = vmul.f32 %v104, %v147
  %v176 = vmul.f32 %v105, %v147
  %v177 = vmul.f32 %v106, %v147
  %v178 = vmul.f32 %v107, %v147
  %v179 = vmul.f32 %v108, %v147
  %v180 = vmul.f32 %v109, %v147
  %v181 = vmul.f32 %v110, %v147
  %v182 = vmul.f32 %v111, %v147
  %v183 = vmul.f32 %v112, %v147
  %v184 = vmul.f32 %v113, %v147
  %v185 = vmul.f32 %v114, %v147
  %v186 = vmul.f32 %v115, %v147
  %v187 = vmul.f32 %v116, %v147
  %v188 = vmul.f32 %v117, %v147
  %v189 = vmul.f32 %v118, %v147
  %v190 = vmul.f32 %v119, %v147
  %v191 = vmul.f32 %v120, %v147
  %v192 = vmul.f32 %v121, %v147
  %v193 = vmul.f32 %v122, %v147
  %v194 = vmul.f32 %v123, %v147
  %v195 = vmul.f32 %v124, %v147
  %v196 = vmul.f32 %v125, %v147
  %v197 = vmul.f32 %v126, %v147
  %v198 = vmul.f32 %v127, %v147
  %v199 = vmul.f32 %v128, %v147
  %v200 = vmul.f32 %v129, %v147
  %v201 = vmul.f32 %v130, %v147
  %v202 = vmul.f32 %v131, %v147
  %v203 = vmul.f32 %v132, %v147
  %v204 = vmul.f32 %v133, %v147
  %v205 = vmul.f32 %v134, %v147
  %v206 = vmul.f32 %v135, %v147
  %v207 = vmul.f32 %v136, %v147
  %v208 = vmul.f32 %v137, %v147
  %v209 = vmul.f32 %v138, %v147
  %v210 = vmul.f32 %v139, %v147
  %v211 = vmul.f32 %v140, %v147
  %v212 = vmul.f32 %v141, %v147
  %v213 = vld [vmem:[%s2] sm:$0x1]
  %v215 = vlaneseq
  %v216 = vshrl.u32 %v215, 7
  %v217 = vsub.s32 0, %v216
  %v218 = vrot.slane %v213, %v217
  %v220 = vadd.f32 %v149, %v218
  %v221 = vadd.f32 %v150, %v218
  %v222 = vadd.f32 %v151, %v218
  %v223 = vadd.f32 %v152, %v218
  %v224 = vadd.f32 %v153, %v218
  %v225 = vadd.f32 %v154, %v218
  %v226 = vadd.f32 %v155, %v218
  %v227 = vadd.f32 %v156, %v218
  %v228 = vadd.f32 %v157, %v218
  %v229 = vadd.f32 %v158, %v218
  %v230 = vadd.f32 %v159, %v218
  %v231 = vadd.f32 %v160, %v218
  %v232 = vadd.f32 %v161, %v218
  %v233 = vadd.f32 %v162, %v218
  %v234 = vadd.f32 %v163, %v218
  %v235 = vadd.f32 %v164, %v218
  %v236 = vadd.f32 %v165, %v218
  %v237 = vadd.f32 %v166, %v218
  %v238 = vadd.f32 %v167, %v218
  %v239 = vadd.f32 %v168, %v218
  %v240 = vadd.f32 %v169, %v218
  %v241 = vadd.f32 %v170, %v218
  %v242 = vadd.f32 %v171, %v218
  %v243 = vadd.f32 %v172, %v218
  %v244 = vadd.f32 %v173, %v218
  %v245 = vadd.f32 %v174, %v218
  %v246 = vadd.f32 %v175, %v218
  %v247 = vadd.f32 %v176, %v218
  %v248 = vadd.f32 %v177, %v218
  %v249 = vadd.f32 %v178, %v218
  %v250 = vadd.f32 %v179, %v218
  %v251 = vadd.f32 %v180, %v218
  %v252 = vadd.f32 %v181, %v218
  %v253 = vadd.f32 %v182, %v218
  %v254 = vadd.f32 %v183, %v218
  %v255 = vadd.f32 %v184, %v218
  %v256 = vadd.f32 %v185, %v218
  %v257 = vadd.f32 %v186, %v218
  %v258 = vadd.f32 %v187, %v218
  %v259 = vadd.f32 %v188, %v218
  %v260 = vadd.f32 %v189, %v218
  %v261 = vadd.f32 %v190, %v218
  %v262 = vadd.f32 %v191, %v218
  %v263 = vadd.f32 %v192, %v218
  %v264 = vadd.f32 %v193, %v218
  %v265 = vadd.f32 %v194, %v218
  %v266 = vadd.f32 %v195, %v218
  %v267 = vadd.f32 %v196, %v218
  %v268 = vadd.f32 %v197, %v218
  %v269 = vadd.f32 %v198, %v218
  %v270 = vadd.f32 %v199, %v218
  %v271 = vadd.f32 %v200, %v218
  %v272 = vadd.f32 %v201, %v218
  %v273 = vadd.f32 %v202, %v218
  %v274 = vadd.f32 %v203, %v218
  %v275 = vadd.f32 %v204, %v218
  %v276 = vadd.f32 %v205, %v218
  %v277 = vadd.f32 %v206, %v218
  %v278 = vadd.f32 %v207, %v218
  %v279 = vadd.f32 %v208, %v218
  %v280 = vadd.f32 %v209, %v218
  %v281 = vadd.f32 %v210, %v218
  %v282 = vadd.f32 %v211, %v218
  %v283 = vadd.f32 %v212, %v218
  %v284 = vmax.f32 %v220, 0.0
  %v285 = vmax.f32 %v221, 0.0
  %v286 = vmax.f32 %v222, 0.0
  %v287 = vmax.f32 %v223, 0.0
  %v288 = vmax.f32 %v224, 0.0
  %v289 = vmax.f32 %v225, 0.0
  %v290 = vmax.f32 %v226, 0.0
  %v291 = vmax.f32 %v227, 0.0
  %v292 = vmax.f32 %v228, 0.0
  %v293 = vmax.f32 %v229, 0.0
  %v294 = vmax.f32 %v230, 0.0
  %v295 = vmax.f32 %v231, 0.0
  %v296 = vmax.f32 %v232, 0.0
  %v297 = vmax.f32 %v233, 0.0
  %v298 = vmax.f32 %v234, 0.0
  %v299 = vmax.f32 %v235, 0.0
  %v300 = vmax.f32 %v236, 0.0
  %v301 = vmax.f32 %v237, 0.0
  %v302 = vmax.f32 %v238, 0.0
  %v303 = vmax.f32 %v239, 0.0
  %v304 = vmax.f32 %v240, 0.0
  %v305 = vmax.f32 %v241, 0.0
  %v306 = vmax.f32 %v242, 0.0
  %v307 = vmax.f32 %v243, 0.0
  %v308 = vmax.f32 %v244, 0.0
  %v309 = vmax.f32 %v245, 0.0
  %v310 = vmax.f32 %v246, 0.0
  %v311 = vmax.f32 %v247, 0.0
  %v312 = vmax.f32 %v248, 0.0
  %v313 = vmax.f32 %v249, 0.0
  %v314 = vmax.f32 %v250, 0.0
  %v315 = vmax.f32 %v251, 0.0
  %v316 = vmax.f32 %v252, 0.0
  %v317 = vmax.f32 %v253, 0.0
  %v318 = vmax.f32 %v254, 0.0
  %v319 = vmax.f32 %v255, 0.0
  %v320 = vmax.f32 %v256, 0.0
  %v321 = vmax.f32 %v257, 0.0
  %v322 = vmax.f32 %v258, 0.0
  %v323 = vmax.f32 %v259, 0.0
  %v324 = vmax.f32 %v260, 0.0
  %v325 = vmax.f32 %v261, 0.0
  %v326 = vmax.f32 %v262, 0.0
  %v327 = vmax.f32 %v263, 0.0
  %v328 = vmax.f32 %v264, 0.0
  %v329 = vmax.f32 %v265, 0.0
  %v330 = vmax.f32 %v266, 0.0
  %v331 = vmax.f32 %v267, 0.0
  %v332 = vmax.f32 %v268, 0.0
  %v333 = vmax.f32 %v269, 0.0
  %v334 = vmax.f32 %v270, 0.0
  %v335 = vmax.f32 %v271, 0.0
  %v336 = vmax.f32 %v272, 0.0
  %v337 = vmax.f32 %v273, 0.0
  %v338 = vmax.f32 %v274, 0.0
  %v339 = vmax.f32 %v275, 0.0
  %v340 = vmax.f32 %v276, 0.0
  %v341 = vmax.f32 %v277, 0.0
  %v342 = vmax.f32 %v278, 0.0
  %v343 = vmax.f32 %v279, 0.0
  %v344 = vmax.f32 %v280, 0.0
  %v345 = vmax.f32 %v281, 0.0
  %v346 = vmax.f32 %v282, 0.0
  %v347 = vmax.f32 %v283, 0.0
  %v348 = vpack.c.bf16 %v285, %v284
  %v349 = vpack.c.bf16 %v287, %v286
  %v350 = vpack.c.bf16 %v289, %v288
  %v351 = vpack.c.bf16 %v291, %v290
  %v352 = vpack.c.bf16 %v293, %v292
  %v353 = vpack.c.bf16 %v295, %v294
  %v354 = vpack.c.bf16 %v297, %v296
  %v355 = vpack.c.bf16 %v299, %v298
  %v356 = vpack.c.bf16 %v301, %v300
  %v357 = vpack.c.bf16 %v303, %v302
  %v358 = vpack.c.bf16 %v305, %v304
  %v359 = vpack.c.bf16 %v307, %v306
  %v360 = vpack.c.bf16 %v309, %v308
  %v361 = vpack.c.bf16 %v311, %v310
  %v362 = vpack.c.bf16 %v313, %v312
  %v363 = vpack.c.bf16 %v315, %v314
  %v364 = vpack.c.bf16 %v317, %v316
  %v365 = vpack.c.bf16 %v319, %v318
  %v366 = vpack.c.bf16 %v321, %v320
  %v367 = vpack.c.bf16 %v323, %v322
  %v368 = vpack.c.bf16 %v325, %v324
  %v369 = vpack.c.bf16 %v327, %v326
  %v370 = vpack.c.bf16 %v329, %v328
  %v371 = vpack.c.bf16 %v331, %v330
  %v372 = vpack.c.bf16 %v333, %v332
  %v373 = vpack.c.bf16 %v335, %v334
  %v374 = vpack.c.bf16 %v337, %v336
  %v375 = vpack.c.bf16 %v339, %v338
  %v376 = vpack.c.bf16 %v341, %v340
  %v377 = vpack.c.bf16 %v343, %v342
  %v378 = vpack.c.bf16 %v345, %v344
  %v379 = vpack.c.bf16 %v347, %v346
  %v412 = vunpack.c.l.b16 %v348
  %v413 = vunpack.c.h.b16 %v348
  %v414 = vunpack.c.l.b16 %v349
  %v415 = vunpack.c.h.b16 %v349
  %v416 = vunpack.c.l.b16 %v350
  %v417 = vunpack.c.h.b16 %v350
  %v418 = vunpack.c.l.b16 %v351
  %v419 = vunpack.c.h.b16 %v351
  %v420 = vunpack.c.l.b16 %v352
  %v421 = vunpack.c.h.b16 %v352
  %v422 = vunpack.c.l.b16 %v353
  %v423 = vunpack.c.h.b16 %v353
  %v424 = vunpack.c.l.b16 %v354
  %v425 = vunpack.c.h.b16 %v354
  %v426 = vunpack.c.l.b16 %v355
  %v427 = vunpack.c.h.b16 %v355
  %v428 = vunpack.c.l.b16 %v356
  %v429 = vunpack.c.h.b16 %v356
  %v430 = vunpack.c.l.b16 %v357
  %v431 = vunpack.c.h.b16 %v357
  %v432 = vunpack.c.l.b16 %v358
  %v433 = vunpack.c.h.b16 %v358
  %v434 = vunpack.c.l.b16 %v359
  %v435 = vunpack.c.h.b16 %v359
  %v436 = vunpack.c.l.b16 %v360
  %v437 = vunpack.c.h.b16 %v360
  %v438 = vunpack.c.l.b16 %v361
  %v439 = vunpack.c.h.b16 %v361
  %v440 = vunpack.c.l.b16 %v362
  %v441 = vunpack.c.h.b16 %v362
  %v442 = vunpack.c.l.b16 %v363
  %v443 = vunpack.c.h.b16 %v363
  %v444 = vunpack.c.l.b16 %v364
  %v445 = vunpack.c.h.b16 %v364
  %v446 = vunpack.c.l.b16 %v365
  %v447 = vunpack.c.h.b16 %v365
  %v448 = vunpack.c.l.b16 %v366
  %v449 = vunpack.c.h.b16 %v366
  %v450 = vunpack.c.l.b16 %v367
  %v451 = vunpack.c.h.b16 %v367
  %v452 = vunpack.c.l.b16 %v368
  %v453 = vunpack.c.h.b16 %v368
  %v454 = vunpack.c.l.b16 %v369
  %v455 = vunpack.c.h.b16 %v369
  %v456 = vunpack.c.l.b16 %v370
  %v457 = vunpack.c.h.b16 %v370
  %v458 = vunpack.c.l.b16 %v371
  %v459 = vunpack.c.h.b16 %v371
  %v460 = vunpack.c.l.b16 %v372
  %v461 = vunpack.c.h.b16 %v372
  %v462 = vunpack.c.l.b16 %v373
  %v463 = vunpack.c.h.b16 %v373
  %v464 = vunpack.c.l.b16 %v374
  %v465 = vunpack.c.h.b16 %v374
  %v466 = vunpack.c.l.b16 %v375
  %v467 = vunpack.c.h.b16 %v375
  %v468 = vunpack.c.l.b16 %v376
  %v469 = vunpack.c.h.b16 %v376
  %v470 = vunpack.c.l.b16 %v377
  %v471 = vunpack.c.h.b16 %v377
  %v472 = vunpack.c.l.b16 %v378
  %v473 = vunpack.c.h.b16 %v378
  %v474 = vunpack.c.l.b16 %v379
  %v475 = vunpack.c.h.b16 %v379
  %v476 = vpack.c.b16 %v412, %v412
  %v477 = vpack.c.b16 %v413, %v413
  %v478 = vpack.c.b16 %v414, %v414
  %v479 = vpack.c.b16 %v415, %v415
  %v480 = vpack.c.b16 %v416, %v416
  %v481 = vpack.c.b16 %v417, %v417
  %v482 = vpack.c.b16 %v418, %v418
  %v483 = vpack.c.b16 %v419, %v419
  %v484 = vpack.c.b16 %v420, %v420
  %v485 = vpack.c.b16 %v421, %v421
  %v486 = vpack.c.b16 %v422, %v422
  %v487 = vpack.c.b16 %v423, %v423
  %v488 = vpack.c.b16 %v424, %v424
  %v489 = vpack.c.b16 %v425, %v425
  %v490 = vpack.c.b16 %v426, %v426
  %v491 = vpack.c.b16 %v427, %v427
  %v492 = vpack.c.b16 %v428, %v428
  %v493 = vpack.c.b16 %v429, %v429
  %v494 = vpack.c.b16 %v430, %v430
  %v495 = vpack.c.b16 %v431, %v431
  %v496 = vpack.c.b16 %v432, %v432
  %v497 = vpack.c.b16 %v433, %v433
  %v498 = vpack.c.b16 %v434, %v434
  %v499 = vpack.c.b16 %v435, %v435
  %v500 = vpack.c.b16 %v436, %v436
  %v501 = vpack.c.b16 %v437, %v437
  %v502 = vpack.c.b16 %v438, %v438
  %v503 = vpack.c.b16 %v439, %v439
  %v504 = vpack.c.b16 %v440, %v440
  %v505 = vpack.c.b16 %v441, %v441
  %v506 = vpack.c.b16 %v442, %v442
  %v507 = vpack.c.b16 %v443, %v443
  %v508 = vpack.c.b16 %v444, %v444
  %v509 = vpack.c.b16 %v445, %v445
  %v510 = vpack.c.b16 %v446, %v446
  %v511 = vpack.c.b16 %v447, %v447
  %v512 = vpack.c.b16 %v448, %v448
  %v513 = vpack.c.b16 %v449, %v449
  %v514 = vpack.c.b16 %v450, %v450
  %v515 = vpack.c.b16 %v451, %v451
  %v516 = vpack.c.b16 %v452, %v452
  %v517 = vpack.c.b16 %v453, %v453
  %v518 = vpack.c.b16 %v454, %v454
  %v519 = vpack.c.b16 %v455, %v455
  %v520 = vpack.c.b16 %v456, %v456
  %v521 = vpack.c.b16 %v457, %v457
  %v522 = vpack.c.b16 %v458, %v458
  %v523 = vpack.c.b16 %v459, %v459
  %v524 = vpack.c.b16 %v460, %v460
  %v525 = vpack.c.b16 %v461, %v461
  %v526 = vpack.c.b16 %v462, %v462
  %v527 = vpack.c.b16 %v463, %v463
  %v528 = vpack.c.b16 %v464, %v464
  %v529 = vpack.c.b16 %v465, %v465
  %v530 = vpack.c.b16 %v466, %v466
  %v531 = vpack.c.b16 %v467, %v467
  %v532 = vpack.c.b16 %v468, %v468
  %v533 = vpack.c.b16 %v469, %v469
  %v534 = vpack.c.b16 %v470, %v470
  %v535 = vpack.c.b16 %v471, %v471
  %v536 = vpack.c.b16 %v472, %v472
  %v537 = vpack.c.b16 %v473, %v473
  %v538 = vpack.c.b16 %v474, %v474
  %v539 = vpack.c.b16 %v475, %v475
  %604 = vst [vmem:[%s3] sm:$0xf] %v476
  %605 = vst [vmem:[%s3 + $0x4] sm:$0xf] %v477
  %606 = vst [vmem:[%s3 + $0x8] sm:$0xf] %v478
  %607 = vst [vmem:[%s3 + $0xc] sm:$0xf] %v479
  %608 = vst [vmem:[%s3 + $0x10] sm:$0xf] %v480
  %609 = vst [vmem:[%s3 + $0x14] sm:$0xf] %v481
  %610 = vst [vmem:[%s3 + $0x18] sm:$0xf] %v482
  %611 = vst [vmem:[%s3 + $0x1c] sm:$0xf] %v483
  %612 = vst [vmem:[%s3 + $0x20] sm:$0xf] %v484
  %613 = vst [vmem:[%s3 + $0x24] sm:$0xf] %v485
  %614 = vst [vmem:[%s3 + $0x28] sm:$0xf] %v486
  %615 = vst [vmem:[%s3 + $0x2c] sm:$0xf] %v487
  %616 = vst [vmem:[%s3 + $0x30] sm:$0xf] %v488
  %617 = vst [vmem:[%s3 + $0x34] sm:$0xf] %v489
  %618 = vst [vmem:[%s3 + $0x38] sm:$0xf] %v490
  %619 = vst [vmem:[%s3 + $0x3c] sm:$0xf] %v491
  %620 = vst [vmem:[%s3 + $0x40] sm:$0xf] %v492
  %621 = vst [vmem:[%s3 + $0x44] sm:$0xf] %v493
  %622 = vst [vmem:[%s3 + $0x48] sm:$0xf] %v494
  %623 = vst [vmem:[%s3 + $0x4c] sm:$0xf] %v495
  %624 = vst [vmem:[%s3 + $0x50] sm:$0xf] %v496
  %625 = vst [vmem:[%s3 + $0x54] sm:$0xf] %v497
  %626 = vst [vmem:[%s3 + $0x58] sm:$0xf] %v498
  %627 = vst [vmem:[%s3 + $0x5c] sm:$0xf] %v499
  %628 = vst [vmem:[%s3 + $0x60] sm:$0xf] %v500
  %629 = vst [vmem:[%s3 + $0x64] sm:$0xf] %v501
  %630 = vst [vmem:[%s3 + $0x68] sm:$0xf] %v502
  %631 = vst [vmem:[%s3 + $0x6c] sm:$0xf] %v503
  %632 = vst [vmem:[%s3 + $0x70] sm:$0xf] %v504
  %633 = vst [vmem:[%s3 + $0x74] sm:$0xf] %v505
  %634 = vst [vmem:[%s3 + $0x78] sm:$0xf] %v506
  %635 = vst [vmem:[%s3 + $0x7c] sm:$0xf] %v507
  %636 = vst [vmem:[%s3 + $0x80] sm:$0xf] %v508
  %637 = vst [vmem:[%s3 + $0x84] sm:$0xf] %v509
  %638 = vst [vmem:[%s3 + $0x88] sm:$0xf] %v510
  %639 = vst [vmem:[%s3 + $0x8c] sm:$0xf] %v511
  %640 = vst [vmem:[%s3 + $0x90] sm:$0xf] %v512
  %641 = vst [vmem:[%s3 + $0x94] sm:$0xf] %v513
  %642 = vst [vmem:[%s3 + $0x98] sm:$0xf] %v514
  %643 = vst [vmem:[%s3 + $0x9c] sm:$0xf] %v515
  %644 = vst [vmem:[%s3 + $0xa0] sm:$0xf] %v516
  %645 = vst [vmem:[%s3 + $0xa4] sm:$0xf] %v517
  %646 = vst [vmem:[%s3 + $0xa8] sm:$0xf] %v518
  %647 = vst [vmem:[%s3 + $0xac] sm:$0xf] %v519
  %648 = vst [vmem:[%s3 + $0xb0] sm:$0xf] %v520
  %649 = vst [vmem:[%s3 + $0xb4] sm:$0xf] %v521
  %650 = vst [vmem:[%s3 + $0xb8] sm:$0xf] %v522
  %651 = vst [vmem:[%s3 + $0xbc] sm:$0xf] %v523
  %652 = vst [vmem:[%s3 + $0xc0] sm:$0xf] %v524
  %653 = vst [vmem:[%s3 + $0xc4] sm:$0xf] %v525
  %654 = vst [vmem:[%s3 + $0xc8] sm:$0xf] %v526
  %655 = vst [vmem:[%s3 + $0xcc] sm:$0xf] %v527
  %656 = vst [vmem:[%s3 + $0xd0] sm:$0xf] %v528
  %657 = vst [vmem:[%s3 + $0xd4] sm:$0xf] %v529
  %658 = vst [vmem:[%s3 + $0xd8] sm:$0xf] %v530
  %659 = vst [vmem:[%s3 + $0xdc] sm:$0xf] %v531
  %660 = vst [vmem:[%s3 + $0xe0] sm:$0xf] %v532
  %661 = vst [vmem:[%s3 + $0xe4] sm:$0xf] %v533
  %662 = vst [vmem:[%s3 + $0xe8] sm:$0xf] %v534
  %663 = vst [vmem:[%s3 + $0xec] sm:$0xf] %v535
  %664 = vst [vmem:[%s3 + $0xf0] sm:$0xf] %v536
  %665 = vst [vmem:[%s3 + $0xf4] sm:$0xf] %v537
  %666 = vst [vmem:[%s3 + $0xf8] sm:$0xf] %v538
  %667 = vst [vmem:[%s3 + $0xfc] sm:$0xf] %v539
  // Predicated region
  $region14: #{basic_block_forward.5} parent=0 // pred_check
    _
  $region15: #{basic_block_forward.5} parent=0 // pred_check_branch
    %669 = sbr.rel (0) target = $region17
  $region16: #{basic_block_forward.5} parent=0 // pred_region
    _
  $region17: #{basic_block_forward.5} parent=0 // pred_fallthru
    _
  // Predicated region
  $region18: #{basic_block_forward.5} parent=0 // pred_check
    _
  $region19: #{basic_block_forward.5} parent=0 // pred_check_branch
    %671 = sbr.rel (0) target = $region21
  $region20: #{basic_block_forward.5} parent=0 // pred_region
    _
  $region21: #{basic_block_forward.5} parent=0 // pred_fallthru
    _

// kernel: basic_block_forward.4
$region0: #{basic_block_forward.4}
  #allocation0 [shape = 'u32[]', space=smem, size = 0x4, offset = 0x4, fixed_abs, tag = 'smem constant byte address 0x4 - core index']
  #allocation1 [shape = 'u32[144,128]{1,0:T(1,128)}', space=vmem, size = 0x12000, scoped, tag = 'internal scratch']
  #allocation2 [shape = 'f32[512,128]{1,0:T(8,128)}', space=vmem, size = 0x40000, scoped, tag = 'scratch operand']
  %s0 = inlined_call_operand.vmem [shape: bf16[512,144], index: 0, kind: input, shape index: {}]
  %s1 = inlined_call_operand.vmem [shape: bf16[144,128], index: 1, kind: input, shape index: {}]
  %s2 = inlined_call_operand.vmem [shape: bf16[512,128], index: 2, kind: output, shape index: {0}]
  %s3 = inlined_call_operand.vmem [shape: f32[1,2,128], index: 3, kind: output, shape index: {1}]
  %4 = xla_tuple %s2, %s3
  %s5 = sld [smem:[#allocation0]]
  $region34: #{basic_block_forward.4} parent=0
    _
  %s7 = ssub.s32 1, %s5
  %s8 = scalar_select 0, %s7, %s5
  // Predicated region
  $region2: #{basic_block_forward.4} parent=0 // pred_check
    _
  $region3: #{basic_block_forward.4} parent=0 // pred_check_branch
    %10 = sbr.rel (0) target = $region5
  $region4: #{basic_block_forward.4} parent=0 // pred_region
    _
  $region5: #{basic_block_forward.4} parent=0 // pred_fallthru
    _
  // Predicated region
  $region6: #{basic_block_forward.4} parent=0 // pred_check
    _
  $region7: #{basic_block_forward.4} parent=0 // pred_check_branch
    %12 = sbr.rel (0) target = $region9
  $region8: #{basic_block_forward.4} parent=0 // pred_region
    _
  $region9: #{basic_block_forward.4} parent=0 // pred_fallthru
    _
  %p14 = scmp.eq.s32.totalorder 0, 0
  // Predicated region
  $region10: #{basic_block_forward.4} parent=0 // pred_check
    %p15 = pneg %p14
  $region11: #{basic_block_forward.4} parent=0 // pred_check_branch
    %17 = sbr.rel (%p15) target = $region13
  $region12: #{basic_block_forward.4} parent=0 // pred_region
    %18 = vst [vmem:[#allocation2] sm:$0xff] 0.0
    %19 = vst [vmem:[#allocation2 + $0x8] sm:$0xff] 0.0
    %20 = vst [vmem:[#allocation2 + $0x10] sm:$0xff] 0.0
    %21 = vst [vmem:[#allocation2 + $0x18] sm:$0xff] 0.0
    %22 = vst [vmem:[#allocation2 + $0x20] sm:$0xff] 0.0
    %23 = vst [vmem:[#allocation2 + $0x28] sm:$0xff] 0.0
    %24 = vst [vmem:[#allocation2 + $0x30] sm:$0xff] 0.0
    %25 = vst [vmem:[#allocation2 + $0x38] sm:$0xff] 0.0
    %26 = vst [vmem:[#allocation2 + $0x40] sm:$0xff] 0.0
    %27 = vst [vmem:[#allocation2 + $0x48] sm:$0xff] 0.0
    %28 = vst [vmem:[#allocation2 + $0x50] sm:$0xff] 0.0
    %29 = vst [vmem:[#allocation2 + $0x58] sm:$0xff] 0.0
    %30 = vst [vmem:[#allocation2 + $0x60] sm:$0xff] 0.0
    %31 = vst [vmem:[#allocation2 + $0x68] sm:$0xff] 0.0
    %32 = vst [vmem:[#allocation2 + $0x70] sm:$0xff] 0.0
    %33 = vst [vmem:[#allocation2 + $0x78] sm:$0xff] 0.0
    %34 = vst [vmem:[#allocation2 + $0x80] sm:$0xff] 0.0
    %35 = vst [vmem:[#allocation2 + $0x88] sm:$0xff] 0.0
    %36 = vst [vmem:[#allocation2 + $0x90] sm:$0xff] 0.0
    %37 = vst [vmem:[#allocation2 + $0x98] sm:$0xff] 0.0
    %38 = vst [vmem:[#allocation2 + $0xa0] sm:$0xff] 0.0
    %39 = vst [vmem:[#allocation2 + $0xa8] sm:$0xff] 0.0
    %40 = vst [vmem:[#allocation2 + $0xb0] sm:$0xff] 0.0
    %41 = vst [vmem:[#allocation2 + $0xb8] sm:$0xff] 0.0
    %42 = vst [vmem:[#allocation2 + $0xc0] sm:$0xff] 0.0
    %43 = vst [vmem:[#allocation2 + $0xc8] sm:$0xff] 0.0
    %44 = vst [vmem:[#allocation2 + $0xd0] sm:$0xff] 0.0
    %45 = vst [vmem:[#allocation2 + $0xd8] sm:$0xff] 0.0
    %46 = vst [vmem:[#allocation2 + $0xe0] sm:$0xff] 0.0
    %47 = vst [vmem:[#allocation2 + $0xe8] sm:$0xff] 0.0
    %48 = vst [vmem:[#allocation2 + $0xf0] sm:$0xff] 0.0
    %49 = vst [vmem:[#allocation2 + $0xf8] sm:$0xff] 0.0
    %50 = vst [vmem:[#allocation2 + $0x100] sm:$0xff] 0.0
    %51 = vst [vmem:[#allocation2 + $0x108] sm:$0xff] 0.0
    %52 = vst [vmem:[#allocation2 + $0x110] sm:$0xff] 0.0
    %53 = vst [vmem:[#allocation2 + $0x118] sm:$0xff] 0.0
    %54 = vst [vmem:[#allocation2 + $0x120] sm:$0xff] 0.0
    %55 = vst [vmem:[#allocation2 + $0x128] sm:$0xff] 0.0
    %56 = vst [vmem:[#allocation2 + $0x130] sm:$0xff] 0.0
    %57 = vst [vmem:[#allocation2 + $0x138] sm:$0xff] 0.0
    %58 = vst [vmem:[#allocation2 + $0x140] sm:$0xff] 0.0
    %59 = vst [vmem:[#allocation2 + $0x148] sm:$0xff] 0.0
    %60 = vst [vmem:[#allocation2 + $0x150] sm:$0xff] 0.0
    %61 = vst [vmem:[#allocation2 + $0x158] sm:$0xff] 0.0
    %62 = vst [vmem:[#allocation2 + $0x160] sm:$0xff] 0.0
    %63 = vst [vmem:[#allocation2 + $0x168] sm:$0xff] 0.0
    %64 = vst [vmem:[#allocation2 + $0x170] sm:$0xff] 0.0
    %65 = vst [vmem:[#allocation2 + $0x178] sm:$0xff] 0.0
    %66 = vst [vmem:[#allocation2 + $0x180] sm:$0xff] 0.0
    %67 = vst [vmem:[#allocation2 + $0x188] sm:$0xff] 0.0
    %68 = vst [vmem:[#allocation2 + $0x190] sm:$0xff] 0.0
    %69 = vst [vmem:[#allocation2 + $0x198] sm:$0xff] 0.0
    %70 = vst [vmem:[#allocation2 + $0x1a0] sm:$0xff] 0.0
    %71 = vst [vmem:[#allocation2 + $0x1a8] sm:$0xff] 0.0
    %72 = vst [vmem:[#allocation2 + $0x1b0] sm:$0xff] 0.0
    %73 = vst [vmem:[#allocation2 + $0x1b8] sm:$0xff] 0.0
    %74 = vst [vmem:[#allocation2 + $0x1c0] sm:$0xff] 0.0
    %75 = vst [vmem:[#allocation2 + $0x1c8] sm:$0xff] 0.0
    %76 = vst [vmem:[#allocation2 + $0x1d0] sm:$0xff] 0.0
    %77 = vst [vmem:[#allocation2 + $0x1d8] sm:$0xff] 0.0
    %78 = vst [vmem:[#allocation2 + $0x1e0] sm:$0xff] 0.0
    %79 = vst [vmem:[#allocation2 + $0x1e8] sm:$0xff] 0.0
    %80 = vst [vmem:[#allocation2 + $0x1f0] sm:$0xff] 0.0
    %81 = vst [vmem:[#allocation2 + $0x1f8] sm:$0xff] 0.0
  $region13: #{basic_block_forward.4} parent=0 // pred_fallthru
    _
  %v82 = vld [vmem:[#allocation2] sm:$0xff]
  %v83 = vld [vmem:[#allocation2 + $0x8] sm:$0xff]
  %v84 = vld [vmem:[#allocation2 + $0x10] sm:$0xff]
  %v85 = vld [vmem:[#allocation2 + $0x18] sm:$0xff]
  %v86 = vld [vmem:[#allocation2 + $0x20] sm:$0xff]
  %v87 = vld [vmem:[#allocation2 + $0x28] sm:$0xff]
  %v88 = vld [vmem:[#allocation2 + $0x30] sm:$0xff]
  %v89 = vld [vmem:[#allocation2 + $0x38] sm:$0xff]
  %v90 = vld [vmem:[#allocation2 + $0x40] sm:$0xff]
  %v91 = vld [vmem:[#allocation2 + $0x48] sm:$0xff]
  %v92 = vld [vmem:[#allocation2 + $0x50] sm:$0xff]
  %v93 = vld [vmem:[#allocation2 + $0x58] sm:$0xff]
  %v94 = vld [vmem:[#allocation2 + $0x60] sm:$0xff]
  %v95 = vld [vmem:[#allocation2 + $0x68] sm:$0xff]
  %v96 = vld [vmem:[#allocation2 + $0x70] sm:$0xff]
  %v97 = vld [vmem:[#allocation2 + $0x78] sm:$0xff]
  %v98 = vld [vmem:[#allocation2 + $0x80] sm:$0xff]
  %v99 = vld [vmem:[#allocation2 + $0x88] sm:$0xff]
  %v100 = vld [vmem:[#allocation2 + $0x90] sm:$0xff]
  %v101 = vld [vmem:[#allocation2 + $0x98] sm:$0xff]
  %v102 = vld [vmem:[#allocation2 + $0xa0] sm:$0xff]
  %v103 = vld [vmem:[#allocation2 + $0xa8] sm:$0xff]
  %v104 = vld [vmem:[#allocation2 + $0xb0] sm:$0xff]
  %v105 = vld [vmem:[#allocation2 + $0xb8] sm:$0xff]
  %v106 = vld [vmem:[#allocation2 + $0xc0] sm:$0xff]
  %v107 = vld [vmem:[#allocation2 + $0xc8] sm:$0xff]
  %v108 = vld [vmem:[#allocation2 + $0xd0] sm:$0xff]
  %v109 = vld [vmem:[#allocation2 + $0xd8] sm:$0xff]
  %v110 = vld [vmem:[#allocation2 + $0xe0] sm:$0xff]
  %v111 = vld [vmem:[#allocation2 + $0xe8] sm:$0xff]
  %v112 = vld [vmem:[#allocation2 + $0xf0] sm:$0xff]
  %v113 = vld [vmem:[#allocation2 + $0xf8] sm:$0xff]
  %v114 = vld [vmem:[#allocation2 + $0x100] sm:$0xff]
  %v115 = vld [vmem:[#allocation2 + $0x108] sm:$0xff]
  %v116 = vld [vmem:[#allocation2 + $0x110] sm:$0xff]
  %v117 = vld [vmem:[#allocation2 + $0x118] sm:$0xff]
  %v118 = vld [vmem:[#allocation2 + $0x120] sm:$0xff]
  %v119 = vld [vmem:[#allocation2 + $0x128] sm:$0xff]
  %v120 = vld [vmem:[#allocation2 + $0x130] sm:$0xff]
  %v121 = vld [vmem:[#allocation2 + $0x138] sm:$0xff]
  %v122 = vld [vmem:[#allocation2 + $0x140] sm:$0xff]
  %v123 = vld [vmem:[#allocation2 + $0x148] sm:$0xff]
  %v124 = vld [vmem:[#allocation2 + $0x150] sm:$0xff]
  %v125 = vld [vmem:[#allocation2 + $0x158] sm:$0xff]
  %v126 = vld [vmem:[#allocation2 + $0x160] sm:$0xff]
  %v127 = vld [vmem:[#allocation2 + $0x168] sm:$0xff]
  %v128 = vld [vmem:[#allocation2 + $0x170] sm:$0xff]
  %v129 = vld [vmem:[#allocation2 + $0x178] sm:$0xff]
  %v130 = vld [vmem:[#allocation2 + $0x180] sm:$0xff]
  %v131 = vld [vmem:[#allocation2 + $0x188] sm:$0xff]
  %v132 = vld [vmem:[#allocation2 + $0x190] sm:$0xff]
  %v133 = vld [vmem:[#allocation2 + $0x198] sm:$0xff]
  %v134 = vld [vmem:[#allocation2 + $0x1a0] sm:$0xff]
  %v135 = vld [vmem:[#allocation2 + $0x1a8] sm:$0xff]
  %v136 = vld [vmem:[#allocation2 + $0x1b0] sm:$0xff]
  %v137 = vld [vmem:[#allocation2 + $0x1b8] sm:$0xff]
  %v138 = vld [vmem:[#allocation2 + $0x1c0] sm:$0xff]
  %v139 = vld [vmem:[#allocation2 + $0x1c8] sm:$0xff]
  %v140 = vld [vmem:[#allocation2 + $0x1d0] sm:$0xff]
  %v141 = vld [vmem:[#allocation2 + $0x1d8] sm:$0xff]
  %v142 = vld [vmem:[#allocation2 + $0x1e0] sm:$0xff]
  %v143 = vld [vmem:[#allocation2 + $0x1e8] sm:$0xff]
  %v144 = vld [vmem:[#allocation2 + $0x1f0] sm:$0xff]
  %v145 = vld [vmem:[#allocation2 + $0x1f8] sm:$0xff]
  %v146 = vld [vmem:[%s0] sm:$0xff]
  %v147 = vld [vmem:[%s0 + $0x8] sm:$0xff]
  %v148 = vld [vmem:[%s0 + $0x10] sm:$0xff]
  %v149 = vld [vmem:[%s0 + $0x18] sm:$0xff]
  %v150 = vld [vmem:[%s0 + $0x20] sm:$0xff]
  %v151 = vld [vmem:[%s0 + $0x28] sm:$0xff]
  %v152 = vld [vmem:[%s0 + $0x30] sm:$0xff]
  %v153 = vld [vmem:[%s0 + $0x38] sm:$0xff]
  %v154 = vld [vmem:[%s0 + $0x40] sm:$0xff]
  %v155 = vld [vmem:[%s0 + $0x48] sm:$0xff]
  %v156 = vld [vmem:[%s0 + $0x50] sm:$0xff]
  %v157 = vld [vmem:[%s0 + $0x58] sm:$0xff]
  %v158 = vld [vmem:[%s0 + $0x60] sm:$0xff]
  %v159 = vld [vmem:[%s0 + $0x68] sm:$0xff]
  %v160 = vld [vmem:[%s0 + $0x70] sm:$0xff]
  %v161 = vld [vmem:[%s0 + $0x78] sm:$0xff]
  %v162 = vld [vmem:[%s0 + $0x80] sm:$0xff]
  %v163 = vld [vmem:[%s0 + $0x88] sm:$0xff]
  %v164 = vld [vmem:[%s0 + $0x90] sm:$0xff]
  %v165 = vld [vmem:[%s0 + $0x98] sm:$0xff]
  %v166 = vld [vmem:[%s0 + $0xa0] sm:$0xff]
  %v167 = vld [vmem:[%s0 + $0xa8] sm:$0xff]
  %v168 = vld [vmem:[%s0 + $0xb0] sm:$0xff]
  %v169 = vld [vmem:[%s0 + $0xb8] sm:$0xff]
  %v170 = vld [vmem:[%s0 + $0xc0] sm:$0xff]
  %v171 = vld [vmem:[%s0 + $0xc8] sm:$0xff]
  %v172 = vld [vmem:[%s0 + $0xd0] sm:$0xff]
  %v173 = vld [vmem:[%s0 + $0xd8] sm:$0xff]
  %v174 = vld [vmem:[%s0 + $0xe0] sm:$0xff]
  %v175 = vld [vmem:[%s0 + $0xe8] sm:$0xff]
  %v176 = vld [vmem:[%s0 + $0xf0] sm:$0xff]
  %v177 = vld [vmem:[%s0 + $0xf8] sm:$0xff]
  %v178 = vld [vmem:[%s0 + $0x100] sm:$0xff]
  %v179 = vld [vmem:[%s0 + $0x108] sm:$0xff]
  %v180 = vld [vmem:[%s0 + $0x110] sm:$0xff]
  %v181 = vld [vmem:[%s0 + $0x118] sm:$0xff]
  %v182 = vld [vmem:[%s0 + $0x120] sm:$0xff]
  %v183 = vld [vmem:[%s0 + $0x128] sm:$0xff]
  %v184 = vld [vmem:[%s0 + $0x130] sm:$0xff]
  %v185 = vld [vmem:[%s0 + $0x138] sm:$0xff]
  %v186 = vld [vmem:[%s0 + $0x140] sm:$0xff]
  %v187 = vld [vmem:[%s0 + $0x148] sm:$0xff]
  %v188 = vld [vmem:[%s0 + $0x150] sm:$0xff]
  %v189 = vld [vmem:[%s0 + $0x158] sm:$0xff]
  %v190 = vld [vmem:[%s0 + $0x160] sm:$0xff]
  %v191 = vld [vmem:[%s0 + $0x168] sm:$0xff]
  %v192 = vld [vmem:[%s0 + $0x170] sm:$0xff]
  %v193 = vld [vmem:[%s0 + $0x178] sm:$0xff]
  %v194 = vld [vmem:[%s0 + $0x180] sm:$0xff]
  %v195 = vld [vmem:[%s0 + $0x188] sm:$0xff]
  %v196 = vld [vmem:[%s0 + $0x190] sm:$0xff]
  %v197 = vld [vmem:[%s0 + $0x198] sm:$0xff]
  %v198 = vld [vmem:[%s0 + $0x1a0] sm:$0xff]
  %v199 = vld [vmem:[%s0 + $0x1a8] sm:$0xff]
  %v200 = vld [vmem:[%s0 + $0x1b0] sm:$0xff]
  %v201 = vld [vmem:[%s0 + $0x1b8] sm:$0xff]
  %v202 = vld [vmem:[%s0 + $0x1c0] sm:$0xff]
  %v203 = vld [vmem:[%s0 + $0x1c8] sm:$0xff]
  %v204 = vld [vmem:[%s0 + $0x1d0] sm:$0xff]
  %v205 = vld [vmem:[%s0 + $0x1d8] sm:$0xff]
  %v206 = vld [vmem:[%s0 + $0x1e0] sm:$0xff]
  %v207 = vld [vmem:[%s0 + $0x1e8] sm:$0xff]
  %v208 = vld [vmem:[%s0 + $0x1f0] sm:$0xff]
  %v209 = vld [vmem:[%s0 + $0x1f8] sm:$0xff]
  %v210 = vld [vmem:[%s1] sm:$0xf]
  %v211 = vld [vmem:[%s1 + $0x4] sm:$0xf]
  %v212 = vld [vmem:[%s1 + $0x8] sm:$0xf]
  %v213 = vld [vmem:[%s1 + $0xc] sm:$0xf]
  %v214 = vld [vmem:[%s1 + $0x10] sm:$0xf]
  %v215 = vld [vmem:[%s1 + $0x14] sm:$0xf]
  %v216 = vld [vmem:[%s1 + $0x18] sm:$0xf]
  %v217 = vld [vmem:[%s1 + $0x1c] sm:$0xf]
  %v218 = vld [vmem:[%s1 + $0x20] sm:$0xf]
  %v219 = vld [vmem:[%s1 + $0x24] sm:$0xf]
  %v220 = vld [vmem:[%s1 + $0x28] sm:$0xf]
  %v221 = vld [vmem:[%s1 + $0x2c] sm:$0xf]
  %v222 = vld [vmem:[%s1 + $0x30] sm:$0xf]
  %v223 = vld [vmem:[%s1 + $0x34] sm:$0xf]
  %v224 = vld [vmem:[%s1 + $0x38] sm:$0xf]
  %v225 = vld [vmem:[%s1 + $0x3c] sm:$0xf]
  %v226 = vld [vmem:[%s1 + $0x40] sm:$0xf]
  %v227 = vld [vmem:[%s1 + $0x44] sm:$0xf]
  %v292 = vunpack.c.l.b16 %v146
  %v293 = vunpack.c.h.b16 %v146
  %v294 = vunpack.c.l.b16 %v147
  %v295 = vunpack.c.h.b16 %v147
  %v296 = vunpack.c.l.b16 %v148
  %v297 = vunpack.c.h.b16 %v148
  %v298 = vunpack.c.l.b16 %v149
  %v299 = vunpack.c.h.b16 %v149
  %v300 = vunpack.c.l.b16 %v150
  %v301 = vunpack.c.h.b16 %v150
  %v302 = vunpack.c.l.b16 %v151
  %v303 = vunpack.c.h.b16 %v151
  %v304 = vunpack.c.l.b16 %v152
  %v305 = vunpack.c.h.b16 %v152
  %v306 = vunpack.c.l.b16 %v153
  %v307 = vunpack.c.h.b16 %v153
  %v308 = vunpack.c.l.b16 %v154
  %v309 = vunpack.c.h.b16 %v154
  %v310 = vunpack.c.l.b16 %v155
  %v311 = vunpack.c.h.b16 %v155
  %v312 = vunpack.c.l.b16 %v156
  %v313 = vunpack.c.h.b16 %v156
  %v314 = vunpack.c.l.b16 %v157
  %v315 = vunpack.c.h.b16 %v157
  %v316 = vunpack.c.l.b16 %v158
  %v317 = vunpack.c.h.b16 %v158
  %v318 = vunpack.c.l.b16 %v159
  %v319 = vunpack.c.h.b16 %v159
  %v320 = vunpack.c.l.b16 %v160
  %v321 = vunpack.c.h.b16 %v160
  %v322 = vunpack.c.l.b16 %v161
  %v323 = vunpack.c.h.b16 %v161
  %v324 = vunpack.c.l.b16 %v162
  %v325 = vunpack.c.h.b16 %v162
  %v326 = vunpack.c.l.b16 %v163
  %v327 = vunpack.c.h.b16 %v163
  %v328 = vunpack.c.l.b16 %v164
  %v329 = vunpack.c.h.b16 %v164
  %v330 = vunpack.c.l.b16 %v165
  %v331 = vunpack.c.h.b16 %v165
  %v332 = vunpack.c.l.b16 %v166
  %v333 = vunpack.c.h.b16 %v166
  %v334 = vunpack.c.l.b16 %v167
  %v335 = vunpack.c.h.b16 %v167
  %v336 = vunpack.c.l.b16 %v168
  %v337 = vunpack.c.h.b16 %v168
  %v338 = vunpack.c.l.b16 %v169
  %v339 = vunpack.c.h.b16 %v169
  %v340 = vunpack.c.l.b16 %v170
  %v341 = vunpack.c.h.b16 %v170
  %v342 = vunpack.c.l.b16 %v171
  %v343 = vunpack.c.h.b16 %v171
  %v344 = vunpack.c.l.b16 %v172
  %v345 = vunpack.c.h.b16 %v172
  %v346 = vunpack.c.l.b16 %v173
  %v347 = vunpack.c.h.b16 %v173
  %v348 = vunpack.c.l.b16 %v174
  %v349 = vunpack.c.h.b16 %v174
  %v350 = vunpack.c.l.b16 %v175
  %v351 = vunpack.c.h.b16 %v175
  %v352 = vunpack.c.l.b16 %v176
  %v353 = vunpack.c.h.b16 %v176
  %v354 = vunpack.c.l.b16 %v177
  %v355 = vunpack.c.h.b16 %v177
  %v356 = vunpack.c.l.b16 %v178
  %v357 = vunpack.c.h.b16 %v178
  %v358 = vunpack.c.l.b16 %v179
  %v359 = vunpack.c.h.b16 %v179
  %v360 = vunpack.c.l.b16 %v180
  %v361 = vunpack.c.h.b16 %v180
  %v362 = vunpack.c.l.b16 %v181
  %v363 = vunpack.c.h.b16 %v181
  %v364 = vunpack.c.l.b16 %v182
  %v365 = vunpack.c.h.b16 %v182
  %v366 = vunpack.c.l.b16 %v183
  %v367 = vunpack.c.h.b16 %v183
  %v368 = vunpack.c.l.b16 %v184
  %v369 = vunpack.c.h.b16 %v184
  %v370 = vunpack.c.l.b16 %v185
  %v371 = vunpack.c.h.b16 %v185
  %v372 = vunpack.c.l.b16 %v186
  %v373 = vunpack.c.h.b16 %v186
  %v374 = vunpack.c.l.b16 %v187
  %v375 = vunpack.c.h.b16 %v187
  %v376 = vunpack.c.l.b16 %v188
  %v377 = vunpack.c.h.b16 %v188
  %v378 = vunpack.c.l.b16 %v189
  %v379 = vunpack.c.h.b16 %v189
  %v380 = vunpack.c.l.b16 %v190
  %v381 = vunpack.c.h.b16 %v190
  %v382 = vunpack.c.l.b16 %v191
  %v383 = vunpack.c.h.b16 %v191
  %v384 = vunpack.c.l.b16 %v192
  %v385 = vunpack.c.h.b16 %v192
  %v386 = vunpack.c.l.b16 %v193
  %v387 = vunpack.c.h.b16 %v193
  %v388 = vunpack.c.l.b16 %v194
  %v389 = vunpack.c.h.b16 %v194
  %v390 = vunpack.c.l.b16 %v195
  %v391 = vunpack.c.h.b16 %v195
  %v392 = vunpack.c.l.b16 %v196
  %v393 = vunpack.c.h.b16 %v196
  %v394 = vunpack.c.l.b16 %v197
  %v395 = vunpack.c.h.b16 %v197
  %v396 = vunpack.c.l.b16 %v198
  %v397 = vunpack.c.h.b16 %v198
  %v398 = vunpack.c.l.b16 %v199
  %v399 = vunpack.c.h.b16 %v199
  %v400 = vunpack.c.l.b16 %v200
  %v401 = vunpack.c.h.b16 %v200
  %v402 = vunpack.c.l.b16 %v201
  %v403 = vunpack.c.h.b16 %v201
  %v404 = vunpack.c.l.b16 %v202
  %v405 = vunpack.c.h.b16 %v202
  %v406 = vunpack.c.l.b16 %v203
  %v407 = vunpack.c.h.b16 %v203
  %v408 = vunpack.c.l.b16 %v204
  %v409 = vunpack.c.h.b16 %v204
  %v410 = vunpack.c.l.b16 %v205
  %v411 = vunpack.c.h.b16 %v205
  %v412 = vunpack.c.l.b16 %v206
  %v413 = vunpack.c.h.b16 %v206
  %v414 = vunpack.c.l.b16 %v207
  %v415 = vunpack.c.h.b16 %v207
  %v416 = vunpack.c.l.b16 %v208
  %v417 = vunpack.c.h.b16 %v208
  %v418 = vunpack.c.l.b16 %v209
  %v419 = vunpack.c.h.b16 %v209
  %v420 = vpack.c.b16 %v294, %v292
  %v421 = vpack.c.b16 %v295, %v293
  %v422 = vpack.c.b16 %v298, %v296
  %v423 = vpack.c.b16 %v299, %v297
  %v424 = vpack.c.b16 %v302, %v300
  %v425 = vpack.c.b16 %v303, %v301
  %v426 = vpack.c.b16 %v306, %v304
  %v427 = vpack.c.b16 %v307, %v305
  %v428 = vpack.c.b16 %v310, %v308
  %v429 = vpack.c.b16 %v311, %v309
  %v430 = vpack.c.b16 %v314, %v312
  %v431 = vpack.c.b16 %v315, %v313
  %v432 = vpack.c.b16 %v318, %v316
  %v433 = vpack.c.b16 %v319, %v317
  %v434 = vpack.c.b16 %v322, %v320
  %v435 = vpack.c.b16 %v323, %v321
  %v436 = vpack.c.b16 %v326, %v324
  %v437 = vpack.c.b16 %v327, %v325
  %v438 = vpack.c.b16 %v330, %v328
  %v439 = vpack.c.b16 %v331, %v329
  %v440 = vpack.c.b16 %v334, %v332
  %v441 = vpack.c.b16 %v335, %v333
  %v442 = vpack.c.b16 %v338, %v336
  %v443 = vpack.c.b16 %v339, %v337
  %v444 = vpack.c.b16 %v342, %v340
  %v445 = vpack.c.b16 %v343, %v341
  %v446 = vpack.c.b16 %v346, %v344
  %v447 = vpack.c.b16 %v347, %v345
  %v448 = vpack.c.b16 %v350, %v348
  %v449 = vpack.c.b16 %v351, %v349
  %v450 = vpack.c.b16 %v354, %v352
  %v451 = vpack.c.b16 %v355, %v353
  %v452 = vpack.c.b16 %v358, %v356
  %v453 = vpack.c.b16 %v359, %v357
  %v454 = vpack.c.b16 %v362, %v360
  %v455 = vpack.c.b16 %v363, %v361
  %v456 = vpack.c.b16 %v366, %v364
  %v457 = vpack.c.b16 %v367, %v365
  %v458 = vpack.c.b16 %v370, %v368
  %v459 = vpack.c.b16 %v371, %v369
  %v460 = vpack.c.b16 %v374, %v372
  %v461 = vpack.c.b16 %v375, %v373
  %v462 = vpack.c.b16 %v378, %v376
  %v463 = vpack.c.b16 %v379, %v377
  %v464 = vpack.c.b16 %v382, %v380
  %v465 = vpack.c.b16 %v383, %v381
  %v466 = vpack.c.b16 %v386, %v384
  %v467 = vpack.c.b16 %v387, %v385
  %v468 = vpack.c.b16 %v390, %v388
  %v469 = vpack.c.b16 %v391, %v389
  %v470 = vpack.c.b16 %v394, %v392
  %v471 = vpack.c.b16 %v395, %v393
  %v472 = vpack.c.b16 %v398, %v396
  %v473 = vpack.c.b16 %v399, %v397
  %v474 = vpack.c.b16 %v402, %v400
  %v475 = vpack.c.b16 %v403, %v401
  %v476 = vpack.c.b16 %v406, %v404
  %v477 = vpack.c.b16 %v407, %v405
  %v478 = vpack.c.b16 %v410, %v408
  %v479 = vpack.c.b16 %v411, %v409
  %v480 = vpack.c.b16 %v414, %v412
  %v481 = vpack.c.b16 %v415, %v413
  %v482 = vpack.c.b16 %v418, %v416
  %v483 = vpack.c.b16 %v419, %v417
  %v534 = vunpack.c.l.b16 %v210
  %v535 = vunpack.c.l.b16 %v211
  %v536 = vunpack.c.l.b16 %v212
  %v537 = vunpack.c.l.b16 %v213
  %v538 = vunpack.c.l.b16 %v214
  %v539 = vunpack.c.l.b16 %v215
  %v540 = vunpack.c.l.b16 %v216
  %v541 = vunpack.c.l.b16 %v217
  %v542 = vunpack.c.l.b16 %v218
  %v543 = vunpack.c.l.b16 %v219
  %v544 = vunpack.c.l.b16 %v220
  %v545 = vunpack.c.l.b16 %v221
  %v546 = vunpack.c.l.b16 %v222
  %v547 = vunpack.c.l.b16 %v223
  %v548 = vunpack.c.l.b16 %v224
  %v549 = vunpack.c.l.b16 %v225
  %v550 = vunpack.c.l.b16 %v226
  %v551 = vunpack.c.l.b16 %v227
  %v552 = vpack.c.b16 %v535, %v534
  %v553 = vpack.c.b16 %v537, %v536
  %v554 = vpack.c.b16 %v539, %v538
  %v555 = vpack.c.b16 %v541, %v540
  %v556 = vpack.c.b16 %v543, %v542
  %v557 = vpack.c.b16 %v545, %v544
  %v558 = vpack.c.b16 %v547, %v546
  %v559 = vpack.c.b16 %v549, %v548
  %v560 = vpack.c.b16 %v551, %v550
  %vm570 = vcmask 130048
  %v572 = vsel %vm570, %v421, 0
  %v575 = vsel %vm570, %v423, 0
  %v578 = vsel %vm570, %v425, 0
  %v581 = vsel %vm570, %v427, 0
  %v584 = vsel %vm570, %v429, 0
  %v587 = vsel %vm570, %v431, 0
  %v590 = vsel %vm570, %v433, 0
  %v593 = vsel %vm570, %v435, 0
  %v596 = vsel %vm570, %v437, 0
  %v599 = vsel %vm570, %v439, 0
  %v602 = vsel %vm570, %v441, 0
  %v605 = vsel %vm570, %v443, 0
  %v608 = vsel %vm570, %v445, 0
  %v611 = vsel %vm570, %v447, 0
  %v614 = vsel %vm570, %v449, 0
  %v617 = vsel %vm570, %v451, 0
  %v620 = vsel %vm570, %v453, 0
  %v623 = vsel %vm570, %v455, 0
  %v626 = vsel %vm570, %v457, 0
  %v629 = vsel %vm570, %v459, 0
  %v632 = vsel %vm570, %v461, 0
  %v635 = vsel %vm570, %v463, 0
  %v638 = vsel %vm570, %v465, 0
  %v641 = vsel %vm570, %v467, 0
  %v644 = vsel %vm570, %v469, 0
  %v647 = vsel %vm570, %v471, 0
  %v650 = vsel %vm570, %v473, 0
  %v653 = vsel %vm570, %v475, 0
  %v656 = vsel %vm570, %v477, 0
  %v659 = vsel %vm570, %v479, 0
  %v662 = vsel %vm570, %v481, 0
  %v665 = vsel %vm570, %v483, 0
  %667 = vmatprep.subr.bf16.mxu0 0
  %668 = vmatpush1.bf16.msra.mxu0 %v559
  %669 = vmatprep.subr.bf16.mxu0 0
  %670 = vmatpush1.bf16.msra.mxu0 %v558
  %671 = vmatprep.subr.bf16.mxu0 0
  %672 = vmatpush1.bf16.msra.mxu0 %v557
  %673 = vmatprep.subr.bf16.mxu0 0
  %674 = vmatpush1.bf16.msra.mxu0 %v556
  %675 = vmatprep.subr.bf16.mxu0 0
  %676 = vmatpush1.bf16.msra.mxu0 %v555
  %677 = vmatprep.subr.bf16.mxu0 0
  %678 = vmatpush1.bf16.msra.mxu0 %v554
  %679 = vmatprep.subr.bf16.mxu0 0
  %680 = vmatpush1.bf16.msra.mxu0 %v553
  %681 = vmatprep.subr.bf16.mxu0 0
  %682 = vmatpush1.bf16.msra.mxu0 %v552
  %683 = vmatprep.subr.bf16.mxu0 0
  %684 = vmatpush2.bf16.msra.mxu0 0
  %685 = vmatprep.subr.bf16.mxu0 0
  %686 = vmatpush2.bf16.msra.mxu0 0
  %687 = vmatprep.subr.bf16.mxu0 0
  %688 = vmatpush2.bf16.msra.mxu0 0
  %689 = vmatprep.subr.bf16.mxu0 0
  %690 = vmatpush2.bf16.msra.mxu0 0
  %691 = vmatprep.subr.bf16.mxu0 0
  %692 = vmatpush2.bf16.msra.mxu0 0
  %693 = vmatprep.subr.bf16.mxu0 0
  %694 = vmatpush2.bf16.msra.mxu0 0
  %695 = vmatprep.subr.bf16.mxu0 0
  %696 = vmatpush2.bf16.msra.mxu0 0
  %697 = vmatprep.subr.bf16.mxu0 0
  %698 = vmatpush2.bf16.msra.mxu0 %v560
  %699 = vmatprep.mubr.bf16.mxu0 %v572
  %700 = vmatmul.mubr.bf16.gmra.mxu0 %v420
  %v701 = vpop.f32.mrf.mxu0
  %v702 = vadd.f32 0.0, %v701
  %v703 = vpop.f32.mrf.mxu0
  %v704 = vpop.f32.mrf.mxu0
  %v705 = vadd.f32 0.0, %v704
  %v706 = vpop.f32.mrf.mxu0
  %707 = vmatprep.mubr.bf16.mxu0 %v575
  %708 = vmatmul.mubr.bf16.gmra.mxu0 %v422
  %v709 = vpop.f32.mrf.mxu0
  %v710 = vadd.f32 0.0, %v709
  %v711 = vpop.f32.mrf.mxu0
  %v712 = vpop.f32.mrf.mxu0
  %v713 = vadd.f32 0.0, %v712
  %v714 = vpop.f32.mrf.mxu0
  %715 = vmatprep.mubr.bf16.mxu0 %v578
  %716 = vmatmul.mubr.bf16.gmra.mxu0 %v424
  %v717 = vpop.f32.mrf.mxu0
  %v718 = vadd.f32 0.0, %v717
  %v719 = vpop.f32.mrf.mxu0
  %v720 = vpop.f32.mrf.mxu0
  %v721 = vadd.f32 0.0, %v720
  %v722 = vpop.f32.mrf.mxu0
  %723 = vmatprep.mubr.bf16.mxu0 %v581
  %724 = vmatmul.mubr.bf16.gmra.mxu0 %v426
  %v725 = vpop.f32.mrf.mxu0
  %v726 = vadd.f32 0.0, %v725
  %v727 = vpop.f32.mrf.mxu0
  %v728 = vpop.f32.mrf.mxu0
  %v729 = vadd.f32 0.0, %v728
  %v730 = vpop.f32.mrf.mxu0
  %731 = vmatprep.mubr.bf16.mxu0 %v584
  %732 = vmatmul.mubr.bf16.gmra.mxu0 %v428
  %v733 = vpop.f32.mrf.mxu0
  %v734 = vadd.f32 0.0, %v733
  %v735 = vpop.f32.mrf.mxu0
  %v736 = vpop.f32.mrf.mxu0
  %v737 = vadd.f32 0.0, %v736
  %v738 = vpop.f32.mrf.mxu0
  %739 = vmatprep.mubr.bf16.mxu0 %v587
  %740 = vmatmul.mubr.bf16.gmra.mxu0 %v430
  %v741 = vpop.f32.mrf.mxu0
  %v742 = vadd.f32 0.0, %v741
  %v743 = vpop.f32.mrf.mxu0
  %v744 = vpop.f32.mrf.mxu0
  %v745 = vadd.f32 0.0, %v744
  %v746 = vpop.f32.mrf.mxu0
  %747 = vmatprep.mubr.bf16.mxu0 %v590
  %748 = vmatmul.mubr.bf16.gmra.mxu0 %v432
  %v749 = vpop.f32.mrf.mxu0
  %v750 = vadd.f32 0.0, %v749
  %v751 = vpop.f32.mrf.mxu0
  %v752 = vpop.f32.mrf.mxu0
  %v753 = vadd.f32 0.0, %v752
  %v754 = vpop.f32.mrf.mxu0
  %755 = vmatprep.mubr.bf16.mxu0 %v593
  %756 = vmatmul.mubr.bf16.gmra.mxu0 %v434
  %v757 = vpop.f32.mrf.mxu0
  %v758 = vadd.f32 0.0, %v757
  %v759 = vpop.f32.mrf.mxu0
  %v760 = vpop.f32.mrf.mxu0
  %v761 = vadd.f32 0.0, %v760
  %v762 = vpop.f32.mrf.mxu0
  %763 = vmatprep.mubr.bf16.mxu0 %v596
  %764 = vmatmul.mubr.bf16.gmra.mxu0 %v436
  %v765 = vpop.f32.mrf.mxu0
  %v766 = vadd.f32 0.0, %v765
  %v767 = vpop.f32.mrf.mxu0
  %v768 = vpop.f32.mrf.mxu0
  %v769 = vadd.f32 0.0, %v768
  %v770 = vpop.f32.mrf.mxu0
  %771 = vmatprep.mubr.bf16.mxu0 %v599
  %772 = vmatmul.mubr.bf16.gmra.mxu0 %v438
  %v773 = vpop.f32.mrf.mxu0
  %v774 = vadd.f32 0.0, %v773
  %v775 = vpop.f32.mrf.mxu0
  %v776 = vpop.f32.mrf.mxu0
  %v777 = vadd.f32 0.0, %v776
  %v778 = vpop.f32.mrf.mxu0
  %779 = vmatprep.mubr.bf16.mxu0 %v602
  %780 = vmatmul.mubr.bf16.gmra.mxu0 %v440
  %v781 = vpop.f32.mrf.mxu0
  %v782 = vadd.f32 0.0, %v781
  %v783 = vpop.f32.mrf.mxu0
  %v784 = vpop.f32.mrf.mxu0
  %v785 = vadd.f32 0.0, %v784
  %v786 = vpop.f32.mrf.mxu0
  %787 = vmatprep.mubr.bf16.mxu0 %v605
  %788 = vmatmul.mubr.bf16.gmra.mxu0 %v442
  %v789 = vpop.f32.mrf.mxu0
  %v790 = vadd.f32 0.0, %v789
  %v791 = vpop.f32.mrf.mxu0
  %v792 = vpop.f32.mrf.mxu0
  %v793 = vadd.f32 0.0, %v792
  %v794 = vpop.f32.mrf.mxu0
  %795 = vmatprep.mubr.bf16.mxu0 %v608
  %796 = vmatmul.mubr.bf16.gmra.mxu0 %v444
  %v797 = vpop.f32.mrf.mxu0
  %v798 = vadd.f32 0.0, %v797
  %v799 = vpop.f32.mrf.mxu0
  %v800 = vpop.f32.mrf.mxu0
  %v801 = vadd.f32 0.0, %v800
  %v802 = vpop.f32.mrf.mxu0
  %803 = vmatprep.mubr.bf16.mxu0 %v611
  %804 = vmatmul.mubr.bf16.gmra.mxu0 %v446
  %v805 = vpop.f32.mrf.mxu0
  %v806 = vadd.f32 0.0, %v805
  %v807 = vpop.f32.mrf.mxu0
  %v808 = vpop.f32.mrf.mxu0
  %v809 = vadd.f32 0.0, %v808
  %v810 = vpop.f32.mrf.mxu0
  %811 = vmatprep.mubr.bf16.mxu0 %v614
  %812 = vmatmul.mubr.bf16.gmra.mxu0 %v448
  %v813 = vpop.f32.mrf.mxu0
  %v814 = vadd.f32 0.0, %v813
  %v815 = vpop.f32.mrf.mxu0
  %v816 = vpop.f32.mrf.mxu0
  %v817 = vadd.f32 0.0, %v816
  %v818 = vpop.f32.mrf.mxu0
  %819 = vmatprep.mubr.bf16.mxu0 %v617
  %820 = vmatmul.mubr.bf16.gmra.mxu0 %v450
  %v821 = vpop.f32.mrf.mxu0
  %v822 = vadd.f32 0.0, %v821
  %v823 = vpop.f32.mrf.mxu0
  %v824 = vpop.f32.mrf.mxu0
  %v825 = vadd.f32 0.0, %v824
  %v826 = vpop.f32.mrf.mxu0
  %827 = vmatprep.mubr.bf16.mxu0 %v620
  %828 = vmatmul.mubr.bf16.gmra.mxu0 %v452
  %v829 = vpop.f32.mrf.mxu0
  %v830 = vadd.f32 0.0, %v829
  %v831 = vpop.f32.mrf.mxu0
  %v832 = vpop.f32.mrf.mxu0
  %v833 = vadd.f32 0.0, %v832
  %v834 = vpop.f32.mrf.mxu0
  %835 = vmatprep.mubr.bf16.mxu0 %v623
  %836 = vmatmul.mubr.bf16.gmra.mxu0 %v454
  %v837 = vpop.f32.mrf.mxu0
  %v838 = vadd.f32 0.0, %v837
  %v839 = vpop.f32.mrf.mxu0
  %v840 = vpop.f32.mrf.mxu0
  %v841 = vadd.f32 0.0, %v840
  %v842 = vpop.f32.mrf.mxu0
  %843 = vmatprep.mubr.bf16.mxu0 %v626
  %844 = vmatmul.mubr.bf16.gmra.mxu0 %v456
  %v845 = vpop.f32.mrf.mxu0
  %v846 = vadd.f32 0.0, %v845
  %v847 = vpop.f32.mrf.mxu0
  %v848 = vpop.f32.mrf.mxu0
  %v849 = vadd.f32 0.0, %v848
  %v850 = vpop.f32.mrf.mxu0
  %851 = vmatprep.mubr.bf16.mxu0 %v629
  %852 = vmatmul.mubr.bf16.gmra.mxu0 %v458
  %v853 = vpop.f32.mrf.mxu0
  %v854 = vadd.f32 0.0, %v853
  %v855 = vpop.f32.mrf.mxu0
  %v856 = vpop.f32.mrf.mxu0
  %v857 = vadd.f32 0.0, %v856
  %v858 = vpop.f32.mrf.mxu0
  %859 = vmatprep.mubr.bf16.mxu0 %v632
  %860 = vmatmul.mubr.bf16.gmra.mxu0 %v460
  %v861 = vpop.f32.mrf.mxu0
  %v862 = vadd.f32 0.0, %v861
  %v863 = vpop.f32.mrf.mxu0
  %v864 = vpop.f32.mrf.mxu0
  %v865 = vadd.f32 0.0, %v864
  %v866 = vpop.f32.mrf.mxu0
  %867 = vmatprep.mubr.bf16.mxu0 %v635
  %868 = vmatmul.mubr.bf16.gmra.mxu0 %v462
  %v869 = vpop.f32.mrf.mxu0
  %v870 = vadd.f32 0.0, %v869
  %v871 = vpop.f32.mrf.mxu0
  %v872 = vpop.f32.mrf.mxu0
  %v873 = vadd.f32 0.0, %v872
  %v874 = vpop.f32.mrf.mxu0
  %875 = vmatprep.mubr.bf16.mxu0 %v638
  %876 = vmatmul.mubr.bf16.gmra.mxu0 %v464
  %v877 = vpop.f32.mrf.mxu0
  %v878 = vadd.f32 0.0, %v877
  %v879 = vpop.f32.mrf.mxu0
  %v880 = vpop.f32.mrf.mxu0
  %v881 = vadd.f32 0.0, %v880
  %v882 = vpop.f32.mrf.mxu0
  %883 = vmatprep.mubr.bf16.mxu0 %v641
  %884 = vmatmul.mubr.bf16.gmra.mxu0 %v466
  %v885 = vpop.f32.mrf.mxu0
  %v886 = vadd.f32 0.0, %v885
  %v887 = vpop.f32.mrf.mxu0
  %v888 = vpop.f32.mrf.mxu0
  %v889 = vadd.f32 0.0, %v888
  %v890 = vpop.f32.mrf.mxu0
  %891 = vmatprep.mubr.bf16.mxu0 %v644
  %892 = vmatmul.mubr.bf16.gmra.mxu0 %v468
  %v893 = vpop.f32.mrf.mxu0
  %v894 = vadd.f32 0.0, %v893
  %v895 = vpop.f32.mrf.mxu0
  %v896 = vpop.f32.mrf.mxu0
  %v897 = vadd.f32 0.0, %v896
  %v898 = vpop.f32.mrf.mxu0
  %899 = vmatprep.mubr.bf16.mxu0 %v647
  %900 = vmatmul.mubr.bf16.gmra.mxu0 %v470
  %v901 = vpop.f32.mrf.mxu0
  %v902 = vadd.f32 0.0, %v901
  %v903 = vpop.f32.mrf.mxu0
  %v904 = vpop.f32.mrf.mxu0
  %v905 = vadd.f32 0.0, %v904
  %v906 = vpop.f32.mrf.mxu0
  %907 = vmatprep.mubr.bf16.mxu0 %v650
  %908 = vmatmul.mubr.bf16.gmra.mxu0 %v472
  %v909 = vpop.f32.mrf.mxu0
  %v910 = vadd.f32 0.0, %v909
  %v911 = vpop.f32.mrf.mxu0
  %v912 = vpop.f32.mrf.mxu0
  %v913 = vadd.f32 0.0, %v912
  %v914 = vpop.f32.mrf.mxu0
  %915 = vmatprep.mubr.bf16.mxu0 %v653
  %916 = vmatmul.mubr.bf16.gmra.mxu0 %v474
  %v917 = vpop.f32.mrf.mxu0
  %v918 = vadd.f32 0.0, %v917
  %v919 = vpop.f32.mrf.mxu0
  %v920 = vpop.f32.mrf.mxu0
  %v921 = vadd.f32 0.0, %v920
  %v922 = vpop.f32.mrf.mxu0
  %923 = vmatprep.mubr.bf16.mxu0 %v656
  %924 = vmatmul.mubr.bf16.gmra.mxu0 %v476
  %v925 = vpop.f32.mrf.mxu0
  %v926 = vadd.f32 0.0, %v925
  %v927 = vpop.f32.mrf.mxu0
  %v928 = vpop.f32.mrf.mxu0
  %v929 = vadd.f32 0.0, %v928
  %v930 = vpop.f32.mrf.mxu0
  %931 = vmatprep.mubr.bf16.mxu0 %v659
  %932 = vmatmul.mubr.bf16.gmra.mxu0 %v478
  %v933 = vpop.f32.mrf.mxu0
  %v934 = vadd.f32 0.0, %v933
  %v935 = vpop.f32.mrf.mxu0
  %v936 = vpop.f32.mrf.mxu0
  %v937 = vadd.f32 0.0, %v936
  %v938 = vpop.f32.mrf.mxu0
  %939 = vmatprep.mubr.bf16.mxu0 %v662
  %940 = vmatmul.mubr.bf16.gmra.mxu0 %v480
  %v941 = vpop.f32.mrf.mxu0
  %v942 = vadd.f32 0.0, %v941
  %v943 = vpop.f32.mrf.mxu0
  %v944 = vpop.f32.mrf.mxu0
  %v945 = vadd.f32 0.0, %v944
  %v946 = vpop.f32.mrf.mxu0
  %947 = vmatprep.mubr.bf16.mxu0 %v665
  %948 = vmatmul.mubr.bf16.gmra.mxu0 %v482
  %v949 = vpop.f32.mrf.mxu0
  %v950 = vadd.f32 0.0, %v949
  %v951 = vpop.f32.mrf.mxu0
  %v952 = vpop.f32.mrf.mxu0
  %v953 = vadd.f32 0.0, %v952
  %v954 = vpop.f32.mrf.mxu0
  %955 = vdwg.mxu0
  %v956 = vadd.f32 %v82, %v702
  %v957 = vadd.f32 %v83, %v705
  %v958 = vadd.f32 %v84, %v710
  %v959 = vadd.f32 %v85, %v713
  %v960 = vadd.f32 %v86, %v718
  %v961 = vadd.f32 %v87, %v721
  %v962 = vadd.f32 %v88, %v726
  %v963 = vadd.f32 %v89, %v729
  %v964 = vadd.f32 %v90, %v734
  %v965 = vadd.f32 %v91, %v737
  %v966 = vadd.f32 %v92, %v742
  %v967 = vadd.f32 %v93, %v745
  %v968 = vadd.f32 %v94, %v750
  %v969 = vadd.f32 %v95, %v753
  %v970 = vadd.f32 %v96, %v758
  %v971 = vadd.f32 %v97, %v761
  %v972 = vadd.f32 %v98, %v766
  %v973 = vadd.f32 %v99, %v769
  %v974 = vadd.f32 %v100, %v774
  %v975 = vadd.f32 %v101, %v777
  %v976 = vadd.f32 %v102, %v782
  %v977 = vadd.f32 %v103, %v785
  %v978 = vadd.f32 %v104, %v790
  %v979 = vadd.f32 %v105, %v793
  %v980 = vadd.f32 %v106, %v798
  %v981 = vadd.f32 %v107, %v801
  %v982 = vadd.f32 %v108, %v806
  %v983 = vadd.f32 %v109, %v809
  %v984 = vadd.f32 %v110, %v814
  %v985 = vadd.f32 %v111, %v817
  %v986 = vadd.f32 %v112, %v822
  %v987 = vadd.f32 %v113, %v825
  %v988 = vadd.f32 %v114, %v830
  %v989 = vadd.f32 %v115, %v833
  %v990 = vadd.f32 %v116, %v838
  %v991 = vadd.f32 %v117, %v841
  %v992 = vadd.f32 %v118, %v846
  %v993 = vadd.f32 %v119, %v849
  %v994 = vadd.f32 %v120, %v854
  %v995 = vadd.f32 %v121, %v857
  %v996 = vadd.f32 %v122, %v862
  %v997 = vadd.f32 %v123, %v865
  %v998 = vadd.f32 %v124, %v870
  %v999 = vadd.f32 %v125, %v873
  %v1000 = vadd.f32 %v126, %v878
  %v1001 = vadd.f32 %v127, %v881
  %v1002 = vadd.f32 %v128, %v886
  %v1003 = vadd.f32 %v129, %v889
  %v1004 = vadd.f32 %v130, %v894
  %v1005 = vadd.f32 %v131, %v897
  %v1006 = vadd.f32 %v132, %v902
  %v1007 = vadd.f32 %v133, %v905
  %v1008 = vadd.f32 %v134, %v910
  %v1009 = vadd.f32 %v135, %v913
  %v1010 = vadd.f32 %v136, %v918
  %v1011 = vadd.f32 %v137, %v921
  %v1012 = vadd.f32 %v138, %v926
  %v1013 = vadd.f32 %v139, %v929
  %v1014 = vadd.f32 %v140, %v934
  %v1015 = vadd.f32 %v141, %v937
  %v1016 = vadd.f32 %v142, %v942
  %v1017 = vadd.f32 %v143, %v945
  %v1018 = vadd.f32 %v144, %v950
  %v1019 = vadd.f32 %v145, %v953
  %1020 = vst [vmem:[#allocation2] sm:$0xff] %v956
  %1021 = vst [vmem:[#allocation2 + $0x8] sm:$0xff] %v957
  %1022 = vst [vmem:[#allocation2 + $0x10] sm:$0xff] %v958
  %1023 = vst [vmem:[#allocation2 + $0x18] sm:$0xff] %v959
  %1024 = vst [vmem:[#allocation2 + $0x20] sm:$0xff] %v960
  %1025 = vst [vmem:[#allocation2 + $0x28] sm:$0xff] %v961
  %1026 = vst [vmem:[#allocation2 + $0x30] sm:$0xff] %v962
  %1027 = vst [vmem:[#allocation2 + $0x38] sm:$0xff] %v963
  %1028 = vst [vmem:[#allocation2 + $0x40] sm:$0xff] %v964
  %1029 = vst [vmem:[#allocation2 + $0x48] sm:$0xff] %v965
  %1030 = vst [vmem:[#allocation2 + $0x50] sm:$0xff] %v966
  %1031 = vst [vmem:[#allocation2 + $0x58] sm:$0xff] %v967
  %1032 = vst [vmem:[#allocation2 + $0x60] sm:$0xff] %v968
  %1033 = vst [vmem:[#allocation2 + $0x68] sm:$0xff] %v969
  %1034 = vst [vmem:[#allocation2 + $0x70] sm:$0xff] %v970
  %1035 = vst [vmem:[#allocation2 + $0x78] sm:$0xff] %v971
  %1036 = vst [vmem:[#allocation2 + $0x80] sm:$0xff] %v972
  %1037 = vst [vmem:[#allocation2 + $0x88] sm:$0xff] %v973
  %1038 = vst [vmem:[#allocation2 + $0x90] sm:$0xff] %v974
  %1039 = vst [vmem:[#allocation2 + $0x98] sm:$0xff] %v975
  %1040 = vst [vmem:[#allocation2 + $0xa0] sm:$0xff] %v976
  %1041 = vst [vmem:[#allocation2 + $0xa8] sm:$0xff] %v977
  %1042 = vst [vmem:[#allocation2 + $0xb0] sm:$0xff] %v978
  %1043 = vst [vmem:[#allocation2 + $0xb8] sm:$0xff] %v979
  %1044 = vst [vmem:[#allocation2 + $0xc0] sm:$0xff] %v980
  %1045 = vst [vmem:[#allocation2 + $0xc8] sm:$0xff] %v981
  %1046 = vst [vmem:[#allocation2 + $0xd0] sm:$0xff] %v982
  %1047 = vst [vmem:[#allocation2 + $0xd8] sm:$0xff] %v983
  %1048 = vst [vmem:[#allocation2 + $0xe0] sm:$0xff] %v984
  %1049 = vst [vmem:[#allocation2 + $0xe8] sm:$0xff] %v985
  %1050 = vst [vmem:[#allocation2 + $0xf0] sm:$0xff] %v986
  %1051 = vst [vmem:[#allocation2 + $0xf8] sm:$0xff] %v987
  %1052 = vst [vmem:[#allocation2 + $0x100] sm:$0xff] %v988
  %1053 = vst [vmem:[#allocation2 + $0x108] sm:$0xff] %v989
  %1054 = vst [vmem:[#allocation2 + $0x110] sm:$0xff] %v990
  %1055 = vst [vmem:[#allocation2 + $0x118] sm:$0xff] %v991
  %1056 = vst [vmem:[#allocation2 + $0x120] sm:$0xff] %v992
  %1057 = vst [vmem:[#allocation2 + $0x128] sm:$0xff] %v993
  %1058 = vst [vmem:[#allocation2 + $0x130] sm:$0xff] %v994
  %1059 = vst [vmem:[#allocation2 + $0x138] sm:$0xff] %v995
  %1060 = vst [vmem:[#allocation2 + $0x140] sm:$0xff] %v996
  %1061 = vst [vmem:[#allocation2 + $0x148] sm:$0xff] %v997
  %1062 = vst [vmem:[#allocation2 + $0x150] sm:$0xff] %v998
  %1063 = vst [vmem:[#allocation2 + $0x158] sm:$0xff] %v999
  %1064 = vst [vmem:[#allocation2 + $0x160] sm:$0xff] %v1000
  %1065 = vst [vmem:[#allocation2 + $0x168] sm:$0xff] %v1001
  %1066 = vst [vmem:[#allocation2 + $0x170] sm:$0xff] %v1002
  %1067 = vst [vmem:[#allocation2 + $0x178] sm:$0xff] %v1003
  %1068 = vst [vmem:[#allocation2 + $0x180] sm:$0xff] %v1004
  %1069 = vst [vmem:[#allocation2 + $0x188] sm:$0xff] %v1005
  %1070 = vst [vmem:[#allocation2 + $0x190] sm:$0xff] %v1006
  %1071 = vst [vmem:[#allocation2 + $0x198] sm:$0xff] %v1007
  %1072 = vst [vmem:[#allocation2 + $0x1a0] sm:$0xff] %v1008
  %1073 = vst [vmem:[#allocation2 + $0x1a8] sm:$0xff] %v1009
  %1074 = vst [vmem:[#allocation2 + $0x1b0] sm:$0xff] %v1010
  %1075 = vst [vmem:[#allocation2 + $0x1b8] sm:$0xff] %v1011
  %1076 = vst [vmem:[#allocation2 + $0x1c0] sm:$0xff] %v1012
  %1077 = vst [vmem:[#allocation2 + $0x1c8] sm:$0xff] %v1013
  %1078 = vst [vmem:[#allocation2 + $0x1d0] sm:$0xff] %v1014
  %1079 = vst [vmem:[#allocation2 + $0x1d8] sm:$0xff] %v1015
  %1080 = vst [vmem:[#allocation2 + $0x1e0] sm:$0xff] %v1016
  %1081 = vst [vmem:[#allocation2 + $0x1e8] sm:$0xff] %v1017
  %1082 = vst [vmem:[#allocation2 + $0x1f0] sm:$0xff] %v1018
  %1083 = vst [vmem:[#allocation2 + $0x1f8] sm:$0xff] %v1019
  // Predicated region
  $region14: #{basic_block_forward.4} parent=0 // pred_check
    %p1084 = pneg %p14
  $region15: #{basic_block_forward.4} parent=0 // pred_check_branch
    %1086 = sbr.rel (%p1084) target = $region17
  $region16: #{basic_block_forward.4} parent=0 // pred_region
    %v1087 = vld [vmem:[#allocation2] sm:$0xff]
    %v1088 = vld [vmem:[#allocation2 + $0x8] sm:$0xff]
    %v1089 = vld [vmem:[#allocation2 + $0x10] sm:$0xff]
    %v1090 = vld [vmem:[#allocation2 + $0x18] sm:$0xff]
    %v1091 = vld [vmem:[#allocation2 + $0x20] sm:$0xff]
    %v1092 = vld [vmem:[#allocation2 + $0x28] sm:$0xff]
    %v1093 = vld [vmem:[#allocation2 + $0x30] sm:$0xff]
    %v1094 = vld [vmem:[#allocation2 + $0x38] sm:$0xff]
    %v1095 = vld [vmem:[#allocation2 + $0x40] sm:$0xff]
    %v1096 = vld [vmem:[#allocation2 + $0x48] sm:$0xff]
    %v1097 = vld [vmem:[#allocation2 + $0x50] sm:$0xff]
    %v1098 = vld [vmem:[#allocation2 + $0x58] sm:$0xff]
    %v1099 = vld [vmem:[#allocation2 + $0x60] sm:$0xff]
    %v1100 = vld [vmem:[#allocation2 + $0x68] sm:$0xff]
    %v1101 = vld [vmem:[#allocation2 + $0x70] sm:$0xff]
    %v1102 = vld [vmem:[#allocation2 + $0x78] sm:$0xff]
    %v1103 = vld [vmem:[#allocation2 + $0x80] sm:$0xff]
    %v1104 = vld [vmem:[#allocation2 + $0x88] sm:$0xff]
    %v1105 = vld [vmem:[#allocation2 + $0x90] sm:$0xff]
    %v1106 = vld [vmem:[#allocation2 + $0x98] sm:$0xff]
    %v1107 = vld [vmem:[#allocation2 + $0xa0] sm:$0xff]
    %v1108 = vld [vmem:[#allocation2 + $0xa8] sm:$0xff]
    %v1109 = vld [vmem:[#allocation2 + $0xb0] sm:$0xff]
    %v1110 = vld [vmem:[#allocation2 + $0xb8] sm:$0xff]
    %v1111 = vld [vmem:[#allocation2 + $0xc0] sm:$0xff]
    %v1112 = vld [vmem:[#allocation2 + $0xc8] sm:$0xff]
    %v1113 = vld [vmem:[#allocation2 + $0xd0] sm:$0xff]
    %v1114 = vld [vmem:[#allocation2 + $0xd8] sm:$0xff]
    %v1115 = vld [vmem:[#allocation2 + $0xe0] sm:$0xff]
    %v1116 = vld [vmem:[#allocation2 + $0xe8] sm:$0xff]
    %v1117 = vld [vmem:[#allocation2 + $0xf0] sm:$0xff]
    %v1118 = vld [vmem:[#allocation2 + $0xf8] sm:$0xff]
    %v1119 = vld [vmem:[#allocation2 + $0x100] sm:$0xff]
    %v1120 = vld [vmem:[#allocation2 + $0x108] sm:$0xff]
    %v1121 = vld [vmem:[#allocation2 + $0x110] sm:$0xff]
    %v1122 = vld [vmem:[#allocation2 + $0x118] sm:$0xff]
    %v1123 = vld [vmem:[#allocation2 + $0x120] sm:$0xff]
    %v1124 = vld [vmem:[#allocation2 + $0x128] sm:$0xff]
    %v1125 = vld [vmem:[#allocation2 + $0x130] sm:$0xff]
    %v1126 = vld [vmem:[#allocation2 + $0x138] sm:$0xff]
    %v1127 = vld [vmem:[#allocation2 + $0x140] sm:$0xff]
    %v1128 = vld [vmem:[#allocation2 + $0x148] sm:$0xff]
    %v1129 = vld [vmem:[#allocation2 + $0x150] sm:$0xff]
    %v1130 = vld [vmem:[#allocation2 + $0x158] sm:$0xff]
    %v1131 = vld [vmem:[#allocation2 + $0x160] sm:$0xff]
    %v1132 = vld [vmem:[#allocation2 + $0x168] sm:$0xff]
    %v1133 = vld [vmem:[#allocation2 + $0x170] sm:$0xff]
    %v1134 = vld [vmem:[#allocation2 + $0x178] sm:$0xff]
    %v1135 = vld [vmem:[#allocation2 + $0x180] sm:$0xff]
    %v1136 = vld [vmem:[#allocation2 + $0x188] sm:$0xff]
    %v1137 = vld [vmem:[#allocation2 + $0x190] sm:$0xff]
    %v1138 = vld [vmem:[#allocation2 + $0x198] sm:$0xff]
    %v1139 = vld [vmem:[#allocation2 + $0x1a0] sm:$0xff]
    %v1140 = vld [vmem:[#allocation2 + $0x1a8] sm:$0xff]
    %v1141 = vld [vmem:[#allocation2 + $0x1b0] sm:$0xff]
    %v1142 = vld [vmem:[#allocation2 + $0x1b8] sm:$0xff]
    %v1143 = vld [vmem:[#allocation2 + $0x1c0] sm:$0xff]
    %v1144 = vld [vmem:[#allocation2 + $0x1c8] sm:$0xff]
    %v1145 = vld [vmem:[#allocation2 + $0x1d0] sm:$0xff]
    %v1146 = vld [vmem:[#allocation2 + $0x1d8] sm:$0xff]
    %v1147 = vld [vmem:[#allocation2 + $0x1e0] sm:$0xff]
    %v1148 = vld [vmem:[#allocation2 + $0x1e8] sm:$0xff]
    %v1149 = vld [vmem:[#allocation2 + $0x1f0] sm:$0xff]
    %v1150 = vld [vmem:[#allocation2 + $0x1f8] sm:$0xff]
    %v1151 = vpack.c.bf16 %v1088, %v1087
    %v1152 = vpack.c.bf16 %v1090, %v1089
    %v1153 = vpack.c.bf16 %v1092, %v1091
    %v1154 = vpack.c.bf16 %v1094, %v1093
    %v1155 = vpack.c.bf16 %v1096, %v1095
    %v1156 = vpack.c.bf16 %v1098, %v1097
    %v1157 = vpack.c.bf16 %v1100, %v1099
    %v1158 = vpack.c.bf16 %v1102, %v1101
    %v1159 = vpack.c.bf16 %v1104, %v1103
    %v1160 = vpack.c.bf16 %v1106, %v1105
    %v1161 = vpack.c.bf16 %v1108, %v1107
    %v1162 = vpack.c.bf16 %v1110, %v1109
    %v1163 = vpack.c.bf16 %v1112, %v1111
    %v1164 = vpack.c.bf16 %v1114, %v1113
    %v1165 = vpack.c.bf16 %v1116, %v1115
    %v1166 = vpack.c.bf16 %v1118, %v1117
    %v1167 = vpack.c.bf16 %v1120, %v1119
    %v1168 = vpack.c.bf16 %v1122, %v1121
    %v1169 = vpack.c.bf16 %v1124, %v1123
    %v1170 = vpack.c.bf16 %v1126, %v1125
    %v1171 = vpack.c.bf16 %v1128, %v1127
    %v1172 = vpack.c.bf16 %v1130, %v1129
    %v1173 = vpack.c.bf16 %v1132, %v1131
    %v1174 = vpack.c.bf16 %v1134, %v1133
    %v1175 = vpack.c.bf16 %v1136, %v1135
    %v1176 = vpack.c.bf16 %v1138, %v1137
    %v1177 = vpack.c.bf16 %v1140, %v1139
    %v1178 = vpack.c.bf16 %v1142, %v1141
    %v1179 = vpack.c.bf16 %v1144, %v1143
    %v1180 = vpack.c.bf16 %v1146, %v1145
    %v1181 = vpack.c.bf16 %v1148, %v1147
    %v1182 = vpack.c.bf16 %v1150, %v1149
    %v1215 = vunpack.c.l.b16 %v1151
    %v1216 = vunpack.c.h.b16 %v1151
    %v1217 = vunpack.c.l.b16 %v1152
    %v1218 = vunpack.c.h.b16 %v1152
    %v1219 = vunpack.c.l.b16 %v1153
    %v1220 = vunpack.c.h.b16 %v1153
    %v1221 = vunpack.c.l.b16 %v1154
    %v1222 = vunpack.c.h.b16 %v1154
    %v1223 = vunpack.c.l.b16 %v1155
    %v1224 = vunpack.c.h.b16 %v1155
    %v1225 = vunpack.c.l.b16 %v1156
    %v1226 = vunpack.c.h.b16 %v1156
    %v1227 = vunpack.c.l.b16 %v1157
    %v1228 = vunpack.c.h.b16 %v1157
    %v1229 = vunpack.c.l.b16 %v1158
    %v1230 = vunpack.c.h.b16 %v1158
    %v1231 = vunpack.c.l.b16 %v1159
    %v1232 = vunpack.c.h.b16 %v1159
    %v1233 = vunpack.c.l.b16 %v1160
    %v1234 = vunpack.c.h.b16 %v1160
    %v1235 = vunpack.c.l.b16 %v1161
    %v1236 = vunpack.c.h.b16 %v1161
    %v1237 = vunpack.c.l.b16 %v1162
    %v1238 = vunpack.c.h.b16 %v1162
    %v1239 = vunpack.c.l.b16 %v1163
    %v1240 = vunpack.c.h.b16 %v1163
    %v1241 = vunpack.c.l.b16 %v1164
    %v1242 = vunpack.c.h.b16 %v1164
    %v1243 = vunpack.c.l.b16 %v1165
    %v1244 = vunpack.c.h.b16 %v1165
    %v1245 = vunpack.c.l.b16 %v1166
    %v1246 = vunpack.c.h.b16 %v1166
    %v1247 = vunpack.c.l.b16 %v1167
    %v1248 = vunpack.c.h.b16 %v1167
    %v1249 = vunpack.c.l.b16 %v1168
    %v1250 = vunpack.c.h.b16 %v1168
    %v1251 = vunpack.c.l.b16 %v1169
    %v1252 = vunpack.c.h.b16 %v1169
    %v1253 = vunpack.c.l.b16 %v1170
    %v1254 = vunpack.c.h.b16 %v1170
    %v1255 = vunpack.c.l.b16 %v1171
    %v1256 = vunpack.c.h.b16 %v1171
    %v1257 = vunpack.c.l.b16 %v1172
    %v1258 = vunpack.c.h.b16 %v1172
    %v1259 = vunpack.c.l.b16 %v1173
    %v1260 = vunpack.c.h.b16 %v1173
    %v1261 = vunpack.c.l.b16 %v1174
    %v1262 = vunpack.c.h.b16 %v1174
    %v1263 = vunpack.c.l.b16 %v1175
    %v1264 = vunpack.c.h.b16 %v1175
    %v1265 = vunpack.c.l.b16 %v1176
    %v1266 = vunpack.c.h.b16 %v1176
    %v1267 = vunpack.c.l.b16 %v1177
    %v1268 = vunpack.c.h.b16 %v1177
    %v1269 = vunpack.c.l.b16 %v1178
    %v1270 = vunpack.c.h.b16 %v1178
    %v1271 = vunpack.c.l.b16 %v1179
    %v1272 = vunpack.c.h.b16 %v1179
    %v1273 = vunpack.c.l.b16 %v1180
    %v1274 = vunpack.c.h.b16 %v1180
    %v1275 = vunpack.c.l.b16 %v1181
    %v1276 = vunpack.c.h.b16 %v1181
    %v1277 = vunpack.c.l.b16 %v1182
    %v1278 = vunpack.c.h.b16 %v1182
    %v1279 = vpack.c.b16 %v1215, %v1215
    %v1280 = vpack.c.b16 %v1216, %v1216
    %v1281 = vpack.c.b16 %v1217, %v1217
    %v1282 = vpack.c.b16 %v1218, %v1218
    %v1283 = vpack.c.b16 %v1219, %v1219
    %v1284 = vpack.c.b16 %v1220, %v1220
    %v1285 = vpack.c.b16 %v1221, %v1221
    %v1286 = vpack.c.b16 %v1222, %v1222
    %v1287 = vpack.c.b16 %v1223, %v1223
    %v1288 = vpack.c.b16 %v1224, %v1224
    %v1289 = vpack.c.b16 %v1225, %v1225
    %v1290 = vpack.c.b16 %v1226, %v1226
    %v1291 = vpack.c.b16 %v1227, %v1227
    %v1292 = vpack.c.b16 %v1228, %v1228
    %v1293 = vpack.c.b16 %v1229, %v1229
    %v1294 = vpack.c.b16 %v1230, %v1230
    %v1295 = vpack.c.b16 %v1231, %v1231
    %v1296 = vpack.c.b16 %v1232, %v1232
    %v1297 = vpack.c.b16 %v1233, %v1233
    %v1298 = vpack.c.b16 %v1234, %v1234
    %v1299 = vpack.c.b16 %v1235, %v1235
    %v1300 = vpack.c.b16 %v1236, %v1236
    %v1301 = vpack.c.b16 %v1237, %v1237
    %v1302 = vpack.c.b16 %v1238, %v1238
    %v1303 = vpack.c.b16 %v1239, %v1239
    %v1304 = vpack.c.b16 %v1240, %v1240
    %v1305 = vpack.c.b16 %v1241, %v1241
    %v1306 = vpack.c.b16 %v1242, %v1242
    %v1307 = vpack.c.b16 %v1243, %v1243
    %v1308 = vpack.c.b16 %v1244, %v1244
    %v1309 = vpack.c.b16 %v1245, %v1245
    %v1310 = vpack.c.b16 %v1246, %v1246
    %v1311 = vpack.c.b16 %v1247, %v1247
    %v1312 = vpack.c.b16 %v1248, %v1248
    %v1313 = vpack.c.b16 %v1249, %v1249
    %v1314 = vpack.c.b16 %v1250, %v1250
    %v1315 = vpack.c.b16 %v1251, %v1251
    %v1316 = vpack.c.b16 %v1252, %v1252
    %v1317 = vpack.c.b16 %v1253, %v1253
    %v1318 = vpack.c.b16 %v1254, %v1254
    %v1319 = vpack.c.b16 %v1255, %v1255
    %v1320 = vpack.c.b16 %v1256, %v1256
    %v1321 = vpack.c.b16 %v1257, %v1257
    %v1322 = vpack.c.b16 %v1258, %v1258
    %v1323 = vpack.c.b16 %v1259, %v1259
    %v1324 = vpack.c.b16 %v1260, %v1260
    %v1325 = vpack.c.b16 %v1261, %v1261
    %v1326 = vpack.c.b16 %v1262, %v1262
    %v1327 = vpack.c.b16 %v1263, %v1263
    %v1328 = vpack.c.b16 %v1264, %v1264
    %v1329 = vpack.c.b16 %v1265, %v1265
    %v1330 = vpack.c.b16 %v1266, %v1266
    %v1331 = vpack.c.b16 %v1267, %v1267
    %v1332 = vpack.c.b16 %v1268, %v1268
    %v1333 = vpack.c.b16 %v1269, %v1269
    %v1334 = vpack.c.b16 %v1270, %v1270
    %v1335 = vpack.c.b16 %v1271, %v1271
    %v1336 = vpack.c.b16 %v1272, %v1272
    %v1337 = vpack.c.b16 %v1273, %v1273
    %v1338 = vpack.c.b16 %v1274, %v1274
    %v1339 = vpack.c.b16 %v1275, %v1275
    %v1340 = vpack.c.b16 %v1276, %v1276
    %v1341 = vpack.c.b16 %v1277, %v1277
    %v1342 = vpack.c.b16 %v1278, %v1278
    %1407 = vst [vmem:[%s2] sm:$0xf] %v1279
    %1408 = vst [vmem:[%s2 + $0x4] sm:$0xf] %v1280
    %1409 = vst [vmem:[%s2 + $0x8] sm:$0xf] %v1281
    %1410 = vst [vmem:[%s2 + $0xc] sm:$0xf] %v1282
    %1411 = vst [vmem:[%s2 + $0x10] sm:$0xf] %v1283
    %1412 = vst [vmem:[%s2 + $0x14] sm:$0xf] %v1284
    %1413 = vst [vmem:[%s2 + $0x18] sm:$0xf] %v1285
    %1414 = vst [vmem:[%s2 + $0x1c] sm:$0xf] %v1286
    %1415 = vst [vmem:[%s2 + $0x20] sm:$0xf] %v1287
    %1416 = vst [vmem:[%s2 + $0x24] sm:$0xf] %v1288
    %1417 = vst [vmem:[%s2 + $0x28] sm:$0xf] %v1289
    %1418 = vst [vmem:[%s2 + $0x2c] sm:$0xf] %v1290
    %1419 = vst [vmem:[%s2 + $0x30] sm:$0xf] %v1291
    %1420 = vst [vmem:[%s2 + $0x34] sm:$0xf] %v1292
    %1421 = vst [vmem:[%s2 + $0x38] sm:$0xf] %v1293
    %1422 = vst [vmem:[%s2 + $0x3c] sm:$0xf] %v1294
    %1423 = vst [vmem:[%s2 + $0x40] sm:$0xf] %v1295
    %1424 = vst [vmem:[%s2 + $0x44] sm:$0xf] %v1296
    %1425 = vst [vmem:[%s2 + $0x48] sm:$0xf] %v1297
    %1426 = vst [vmem:[%s2 + $0x4c] sm:$0xf] %v1298
    %1427 = vst [vmem:[%s2 + $0x50] sm:$0xf] %v1299
    %1428 = vst [vmem:[%s2 + $0x54] sm:$0xf] %v1300
    %1429 = vst [vmem:[%s2 + $0x58] sm:$0xf] %v1301
    %1430 = vst [vmem:[%s2 + $0x5c] sm:$0xf] %v1302
    %1431 = vst [vmem:[%s2 + $0x60] sm:$0xf] %v1303
    %1432 = vst [vmem:[%s2 + $0x64] sm:$0xf] %v1304
    %1433 = vst [vmem:[%s2 + $0x68] sm:$0xf] %v1305
    %1434 = vst [vmem:[%s2 + $0x6c] sm:$0xf] %v1306
    %1435 = vst [vmem:[%s2 + $0x70] sm:$0xf] %v1307
    %1436 = vst [vmem:[%s2 + $0x74] sm:$0xf] %v1308
    %1437 = vst [vmem:[%s2 + $0x78] sm:$0xf] %v1309
    %1438 = vst [vmem:[%s2 + $0x7c] sm:$0xf] %v1310
    %1439 = vst [vmem:[%s2 + $0x80] sm:$0xf] %v1311
    %1440 = vst [vmem:[%s2 + $0x84] sm:$0xf] %v1312
    %1441 = vst [vmem:[%s2 + $0x88] sm:$0xf] %v1313
    %1442 = vst [vmem:[%s2 + $0x8c] sm:$0xf] %v1314
    %1443 = vst [vmem:[%s2 + $0x90] sm:$0xf] %v1315
    %1444 = vst [vmem:[%s2 + $0x94] sm:$0xf] %v1316
    %1445 = vst [vmem:[%s2 + $0x98] sm:$0xf] %v1317
    %1446 = vst [vmem:[%s2 + $0x9c] sm:$0xf] %v1318
    %1447 = vst [vmem:[%s2 + $0xa0] sm:$0xf] %v1319
    %1448 = vst [vmem:[%s2 + $0xa4] sm:$0xf] %v1320
    %1449 = vst [vmem:[%s2 + $0xa8] sm:$0xf] %v1321
    %1450 = vst [vmem:[%s2 + $0xac] sm:$0xf] %v1322
    %1451 = vst [vmem:[%s2 + $0xb0] sm:$0xf] %v1323
    %1452 = vst [vmem:[%s2 + $0xb4] sm:$0xf] %v1324
    %1453 = vst [vmem:[%s2 + $0xb8] sm:$0xf] %v1325
    %1454 = vst [vmem:[%s2 + $0xbc] sm:$0xf] %v1326
    %1455 = vst [vmem:[%s2 + $0xc0] sm:$0xf] %v1327
    %1456 = vst [vmem:[%s2 + $0xc4] sm:$0xf] %v1328
    %1457 = vst [vmem:[%s2 + $0xc8] sm:$0xf] %v1329
    %1458 = vst [vmem:[%s2 + $0xcc] sm:$0xf] %v1330
    %1459 = vst [vmem:[%s2 + $0xd0] sm:$0xf] %v1331
    %1460 = vst [vmem:[%s2 + $0xd4] sm:$0xf] %v1332
    %1461 = vst [vmem:[%s2 + $0xd8] sm:$0xf] %v1333
    %1462 = vst [vmem:[%s2 + $0xdc] sm:$0xf] %v1334
    %1463 = vst [vmem:[%s2 + $0xe0] sm:$0xf] %v1335
    %1464 = vst [vmem:[%s2 + $0xe4] sm:$0xf] %v1336
    %1465 = vst [vmem:[%s2 + $0xe8] sm:$0xf] %v1337
    %1466 = vst [vmem:[%s2 + $0xec] sm:$0xf] %v1338
    %1467 = vst [vmem:[%s2 + $0xf0] sm:$0xf] %v1339
    %1468 = vst [vmem:[%s2 + $0xf4] sm:$0xf] %v1340
    %1469 = vst [vmem:[%s2 + $0xf8] sm:$0xf] %v1341
    %1470 = vst [vmem:[%s2 + $0xfc] sm:$0xf] %v1342
    %v1471 = vadd.f32 %v1087, %v1088
    %v1472 = vadd.f32 %v1471, %v1089
    %v1473 = vadd.f32 %v1472, %v1090
    %v1474 = vadd.f32 %v1473, %v1091
    %v1475 = vadd.f32 %v1474, %v1092
    %v1476 = vadd.f32 %v1475, %v1093
    %v1477 = vadd.f32 %v1476, %v1094
    %v1478 = vadd.f32 %v1477, %v1095
    %v1479 = vadd.f32 %v1478, %v1096
    %v1480 = vadd.f32 %v1479, %v1097
    %v1481 = vadd.f32 %v1480, %v1098
    %v1482 = vadd.f32 %v1481, %v1099
    %v1483 = vadd.f32 %v1482, %v1100
    %v1484 = vadd.f32 %v1483, %v1101
    %v1485 = vadd.f32 %v1484, %v1102
    %v1486 = vadd.f32 %v1485, %v1103
    %v1487 = vadd.f32 %v1486, %v1104
    %v1488 = vadd.f32 %v1487, %v1105
    %v1489 = vadd.f32 %v1488, %v1106
    %v1490 = vadd.f32 %v1489, %v1107
    %v1491 = vadd.f32 %v1490, %v1108
    %v1492 = vadd.f32 %v1491, %v1109
    %v1493 = vadd.f32 %v1492, %v1110
    %v1494 = vadd.f32 %v1493, %v1111
    %v1495 = vadd.f32 %v1494, %v1112
    %v1496 = vadd.f32 %v1495, %v1113
    %v1497 = vadd.f32 %v1496, %v1114
    %v1498 = vadd.f32 %v1497, %v1115
    %v1499 = vadd.f32 %v1498, %v1116
    %v1500 = vadd.f32 %v1499, %v1117
    %v1501 = vadd.f32 %v1500, %v1118
    %v1502 = vadd.f32 %v1501, %v1119
    %v1503 = vadd.f32 %v1502, %v1120
    %v1504 = vadd.f32 %v1503, %v1121
    %v1505 = vadd.f32 %v1504, %v1122
    %v1506 = vadd.f32 %v1505, %v1123
    %v1507 = vadd.f32 %v1506, %v1124
    %v1508 = vadd.f32 %v1507, %v1125
    %v1509 = vadd.f32 %v1508, %v1126
    %v1510 = vadd.f32 %v1509, %v1127
    %v1511 = vadd.f32 %v1510, %v1128
    %v1512 = vadd.f32 %v1511, %v1129
    %v1513 = vadd.f32 %v1512, %v1130
    %v1514 = vadd.f32 %v1513, %v1131
    %v1515 = vadd.f32 %v1514, %v1132
    %v1516 = vadd.f32 %v1515, %v1133
    %v1517 = vadd.f32 %v1516, %v1134
    %v1518 = vadd.f32 %v1517, %v1135
    %v1519 = vadd.f32 %v1518, %v1136
    %v1520 = vadd.f32 %v1519, %v1137
    %v1521 = vadd.f32 %v1520, %v1138
    %v1522 = vadd.f32 %v1521, %v1139
    %v1523 = vadd.f32 %v1522, %v1140
    %v1524 = vadd.f32 %v1523, %v1141
    %v1525 = vadd.f32 %v1524, %v1142
    %v1526 = vadd.f32 %v1525, %v1143
    %v1527 = vadd.f32 %v1526, %v1144
    %v1528 = vadd.f32 %v1527, %v1145
    %v1529 = vadd.f32 %v1528, %v1146
    %v1530 = vadd.f32 %v1529, %v1147
    %v1531 = vadd.f32 %v1530, %v1148
    %v1532 = vadd.f32 %v1531, %v1149
    %v1533 = vadd.f32 %v1532, %v1150
    %v1534 = vrot.slane %v1533, 4
    %v1535 = vadd.f32 %v1533, %v1534
    %v1536 = vrot.slane %v1535, 2
    %v1537 = vadd.f32 %v1535, %v1536
    %v1538 = vrot.slane %v1537, 1
    %v1539 = vadd.f32 %v1537, %v1538
    %v1540 = vmul.f32 %v1087, %v1087
    %v1541 = vmul.f32 %v1088, %v1088
    %v1542 = vmul.f32 %v1089, %v1089
    %v1543 = vmul.f32 %v1090, %v1090
    %v1544 = vmul.f32 %v1091, %v1091
    %v1545 = vmul.f32 %v1092, %v1092
    %v1546 = vmul.f32 %v1093, %v1093
    %v1547 = vmul.f32 %v1094, %v1094
    %v1548 = vmul.f32 %v1095, %v1095
    %v1549 = vmul.f32 %v1096, %v1096
    %v1550 = vmul.f32 %v1097, %v1097
    %v1551 = vmul.f32 %v1098, %v1098
    %v1552 = vmul.f32 %v1099, %v1099
    %v1553 = vmul.f32 %v1100, %v1100
    %v1554 = vmul.f32 %v1101, %v1101
    %v1555 = vmul.f32 %v1102, %v1102
    %v1556 = vmul.f32 %v1103, %v1103
    %v1557 = vmul.f32 %v1104, %v1104
    %v1558 = vmul.f32 %v1105, %v1105
    %v1559 = vmul.f32 %v1106, %v1106
    %v1560 = vmul.f32 %v1107, %v1107
    %v1561 = vmul.f32 %v1108, %v1108
    %v1562 = vmul.f32 %v1109, %v1109
    %v1563 = vmul.f32 %v1110, %v1110
    %v1564 = vmul.f32 %v1111, %v1111
    %v1565 = vmul.f32 %v1112, %v1112
    %v1566 = vmul.f32 %v1113, %v1113
    %v1567 = vmul.f32 %v1114, %v1114
    %v1568 = vmul.f32 %v1115, %v1115
    %v1569 = vmul.f32 %v1116, %v1116
    %v1570 = vmul.f32 %v1117, %v1117
    %v1571 = vmul.f32 %v1118, %v1118
    %v1572 = vmul.f32 %v1119, %v1119
    %v1573 = vmul.f32 %v1120, %v1120
    %v1574 = vmul.f32 %v1121, %v1121
    %v1575 = vmul.f32 %v1122, %v1122
    %v1576 = vmul.f32 %v1123, %v1123
    %v1577 = vmul.f32 %v1124, %v1124
    %v1578 = vmul.f32 %v1125, %v1125
    %v1579 = vmul.f32 %v1126, %v1126
    %v1580 = vmul.f32 %v1127, %v1127
    %v1581 = vmul.f32 %v1128, %v1128
    %v1582 = vmul.f32 %v1129, %v1129
    %v1583 = vmul.f32 %v1130, %v1130
    %v1584 = vmul.f32 %v1131, %v1131
    %v1585 = vmul.f32 %v1132, %v1132
    %v1586 = vmul.f32 %v1133, %v1133
    %v1587 = vmul.f32 %v1134, %v1134
    %v1588 = vmul.f32 %v1135, %v1135
    %v1589 = vmul.f32 %v1136, %v1136
    %v1590 = vmul.f32 %v1137, %v1137
    %v1591 = vmul.f32 %v1138, %v1138
    %v1592 = vmul.f32 %v1139, %v1139
    %v1593 = vmul.f32 %v1140, %v1140
    %v1594 = vmul.f32 %v1141, %v1141
    %v1595 = vmul.f32 %v1142, %v1142
    %v1596 = vmul.f32 %v1143, %v1143
    %v1597 = vmul.f32 %v1144, %v1144
    %v1598 = vmul.f32 %v1145, %v1145
    %v1599 = vmul.f32 %v1146, %v1146
    %v1600 = vmul.f32 %v1147, %v1147
    %v1601 = vmul.f32 %v1148, %v1148
    %v1602 = vmul.f32 %v1149, %v1149
    %v1603 = vmul.f32 %v1150, %v1150
    %v1604 = vadd.f32 %v1540, %v1541
    %v1605 = vadd.f32 %v1604, %v1542
    %v1606 = vadd.f32 %v1605, %v1543
    %v1607 = vadd.f32 %v1606, %v1544
    %v1608 = vadd.f32 %v1607, %v1545
    %v1609 = vadd.f32 %v1608, %v1546
    %v1610 = vadd.f32 %v1609, %v1547
    %v1611 = vadd.f32 %v1610, %v1548
    %v1612 = vadd.f32 %v1611, %v1549
    %v1613 = vadd.f32 %v1612, %v1550
    %v1614 = vadd.f32 %v1613, %v1551
    %v1615 = vadd.f32 %v1614, %v1552
    %v1616 = vadd.f32 %v1615, %v1553
    %v1617 = vadd.f32 %v1616, %v1554
    %v1618 = vadd.f32 %v1617, %v1555
    %v1619 = vadd.f32 %v1618, %v1556
    %v1620 = vadd.f32 %v1619, %v1557
    %v1621 = vadd.f32 %v1620, %v1558
    %v1622 = vadd.f32 %v1621, %v1559
    %v1623 = vadd.f32 %v1622, %v1560
    %v1624 = vadd.f32 %v1623, %v1561
    %v1625 = vadd.f32 %v1624, %v1562
    %v1626 = vadd.f32 %v1625, %v1563
    %v1627 = vadd.f32 %v1626, %v1564
    %v1628 = vadd.f32 %v1627, %v1565
    %v1629 = vadd.f32 %v1628, %v1566
    %v1630 = vadd.f32 %v1629, %v1567
    %v1631 = vadd.f32 %v1630, %v1568
    %v1632 = vadd.f32 %v1631, %v1569
    %v1633 = vadd.f32 %v1632, %v1570
    %v1634 = vadd.f32 %v1633, %v1571
    %v1635 = vadd.f32 %v1634, %v1572
    %v1636 = vadd.f32 %v1635, %v1573
    %v1637 = vadd.f32 %v1636, %v1574
    %v1638 = vadd.f32 %v1637, %v1575
    %v1639 = vadd.f32 %v1638, %v1576
    %v1640 = vadd.f32 %v1639, %v1577
    %v1641 = vadd.f32 %v1640, %v1578
    %v1642 = vadd.f32 %v1641, %v1579
    %v1643 = vadd.f32 %v1642, %v1580
    %v1644 = vadd.f32 %v1643, %v1581
    %v1645 = vadd.f32 %v1644, %v1582
    %v1646 = vadd.f32 %v1645, %v1583
    %v1647 = vadd.f32 %v1646, %v1584
    %v1648 = vadd.f32 %v1647, %v1585
    %v1649 = vadd.f32 %v1648, %v1586
    %v1650 = vadd.f32 %v1649, %v1587
    %v1651 = vadd.f32 %v1650, %v1588
    %v1652 = vadd.f32 %v1651, %v1589
    %v1653 = vadd.f32 %v1652, %v1590
    %v1654 = vadd.f32 %v1653, %v1591
    %v1655 = vadd.f32 %v1654, %v1592
    %v1656 = vadd.f32 %v1655, %v1593
    %v1657 = vadd.f32 %v1656, %v1594
    %v1658 = vadd.f32 %v1657, %v1595
    %v1659 = vadd.f32 %v1658, %v1596
    %v1660 = vadd.f32 %v1659, %v1597
    %v1661 = vadd.f32 %v1660, %v1598
    %v1662 = vadd.f32 %v1661, %v1599
    %v1663 = vadd.f32 %v1662, %v1600
    %v1664 = vadd.f32 %v1663, %v1601
    %v1665 = vadd.f32 %v1664, %v1602
    %v1666 = vadd.f32 %v1665, %v1603
    %v1667 = vrot.slane %v1666, 4
    %v1668 = vadd.f32 %v1666, %v1667
    %v1669 = vrot.slane %v1668, 2
    %v1670 = vadd.f32 %v1668, %v1669
    %v1671 = vrot.slane %v1670, 1
    %v1672 = vadd.f32 %v1670, %v1671
    %vm1673 = vcmask 1040384
    %v1674 = vsel %vm1673, %v1539, %v1672
    %1675 = vst [vmem:[%s3] sm:$0x3] %v1674
  $region17: #{basic_block_forward.4} parent=0 // pred_fallthru
    _
  // Predicated region
  $region18: #{basic_block_forward.4} parent=0 // pred_check
    _
  $region19: #{basic_block_forward.4} parent=0 // pred_check_branch
    %1677 = sbr.rel (0) target = $region21
  $region20: #{basic_block_forward.4} parent=0 // pred_region
    _
  $region21: #{basic_block_forward.4} parent=0 // pred_fallthru
    _
  // Predicated region
  $region22: #{basic_block_forward.4} parent=0 // pred_check
    _
  $region23: #{basic_block_forward.4} parent=0 // pred_check_branch
    %1679 = sbr.rel (0) target = $region25
  $region24: #{basic_block_forward.4} parent=0 // pred_region
    _
  $region25: #{basic_block_forward.4} parent=0 // pred_fallthru
    _
  // Predicated region
  $region26: #{basic_block_forward.4} parent=0 // pred_check
    _
  $region27: #{basic_block_forward.4} parent=0 // pred_check_branch
    %1681 = sbr.rel (0) target = $region29
  $region28: #{basic_block_forward.4} parent=0 // pred_region
    _
  $region29: #{basic_block_forward.4} parent=0 // pred_fallthru
    _
  // Predicated region
  $region30: #{basic_block_forward.4} parent=0 // pred_check
    _
  $region31: #{basic_block_forward.4} parent=0 // pred_check_branch
    %1683 = sbr.rel (0) target = $region33
  $region32: #{basic_block_forward.4} parent=0 // pred_region
    _
  $region33: #{basic_block_forward.4} parent=0 // pred_fallthru
    _

// kernel: basic_block_forward.7
$region0: #{basic_block_forward.7}
  #allocation0 [shape = 'u32[]', space=smem, size = 0x4, offset = 0x4, fixed_abs, tag = 'smem constant byte address 0x4 - core index']
  #allocation1 [shape = 'u32[144,128]{1,0:T(1,128)}', space=vmem, size = 0x12000, scoped, tag = 'internal scratch']
  %s0 = inlined_call_operand.vmem [shape: bf16[512,128], index: 0, kind: input, shape index: {}]
  %s1 = inlined_call_operand.vmem [shape: f32[1,128], index: 1, kind: input, shape index: {}]
  %s2 = inlined_call_operand.vmem [shape: f32[1,128], index: 2, kind: input, shape index: {}]
  %s3 = inlined_call_operand.vmem [shape: bf16[512,128], index: 3, kind: input, shape index: {}]
  %s4 = inlined_call_operand.vmem [shape: f32[1,128], index: 4, kind: input, shape index: {}]
  %s5 = inlined_call_operand.vmem [shape: f32[1,128], index: 5, kind: input, shape index: {}]
  %s6 = inlined_call_operand.vmem [shape: f32[512,128], index: 6, kind: output, shape index: {}]
  %s7 = sld [smem:[#allocation0]]
  $region34: #{basic_block_forward.7} parent=0
    _
  %s9 = ssub.s32 1, %s7
  %s10 = scalar_select 0, %s9, %s7
  // Predicated region
  $region2: #{basic_block_forward.7} parent=0 // pred_check
    _
  $region3: #{basic_block_forward.7} parent=0 // pred_check_branch
    %12 = sbr.rel (0) target = $region5
  $region4: #{basic_block_forward.7} parent=0 // pred_region
    _
  $region5: #{basic_block_forward.7} parent=0 // pred_fallthru
    _
  // Predicated region
  $region6: #{basic_block_forward.7} parent=0 // pred_check
    _
  $region7: #{basic_block_forward.7} parent=0 // pred_check_branch
    %14 = sbr.rel (0) target = $region9
  $region8: #{basic_block_forward.7} parent=0 // pred_region
    _
  $region9: #{basic_block_forward.7} parent=0 // pred_fallthru
    _
  // Predicated region
  $region10: #{basic_block_forward.7} parent=0 // pred_check
    _
  $region11: #{basic_block_forward.7} parent=0 // pred_check_branch
    %16 = sbr.rel (0) target = $region13
  $region12: #{basic_block_forward.7} parent=0 // pred_region
    _
  $region13: #{basic_block_forward.7} parent=0 // pred_fallthru
    _
  // Predicated region
  $region14: #{basic_block_forward.7} parent=0 // pred_check
    _
  $region15: #{basic_block_forward.7} parent=0 // pred_check_branch
    %18 = sbr.rel (0) target = $region17
  $region16: #{basic_block_forward.7} parent=0 // pred_region
    _
  $region17: #{basic_block_forward.7} parent=0 // pred_fallthru
    _
  // Predicated region
  $region18: #{basic_block_forward.7} parent=0 // pred_check
    _
  $region19: #{basic_block_forward.7} parent=0 // pred_check_branch
    %20 = sbr.rel (0) target = $region21
  $region20: #{basic_block_forward.7} parent=0 // pred_region
    _
  $region21: #{basic_block_forward.7} parent=0 // pred_fallthru
    _
  // Predicated region
  $region22: #{basic_block_forward.7} parent=0 // pred_check
    _
  $region23: #{basic_block_forward.7} parent=0 // pred_check_branch
    %22 = sbr.rel (0) target = $region25
  $region24: #{basic_block_forward.7} parent=0 // pred_region
    _
  $region25: #{basic_block_forward.7} parent=0 // pred_fallthru
    _
  %v23 = vld [vmem:[%s0] sm:$0xf]
  %v24 = vld [vmem:[%s0 + $0x4] sm:$0xf]
  %v25 = vld [vmem:[%s0 + $0x8] sm:$0xf]
  %v26 = vld [vmem:[%s0 + $0xc] sm:$0xf]
  %v27 = vld [vmem:[%s0 + $0x10] sm:$0xf]
  %v28 = vld [vmem:[%s0 + $0x14] sm:$0xf]
  %v29 = vld [vmem:[%s0 + $0x18] sm:$0xf]
  %v30 = vld [vmem:[%s0 + $0x1c] sm:$0xf]
  %v31 = vld [vmem:[%s0 + $0x20] sm:$0xf]
  %v32 = vld [vmem:[%s0 + $0x24] sm:$0xf]
  %v33 = vld [vmem:[%s0 + $0x28] sm:$0xf]
  %v34 = vld [vmem:[%s0 + $0x2c] sm:$0xf]
  %v35 = vld [vmem:[%s0 + $0x30] sm:$0xf]
  %v36 = vld [vmem:[%s0 + $0x34] sm:$0xf]
  %v37 = vld [vmem:[%s0 + $0x38] sm:$0xf]
  %v38 = vld [vmem:[%s0 + $0x3c] sm:$0xf]
  %v39 = vld [vmem:[%s0 + $0x40] sm:$0xf]
  %v40 = vld [vmem:[%s0 + $0x44] sm:$0xf]
  %v41 = vld [vmem:[%s0 + $0x48] sm:$0xf]
  %v42 = vld [vmem:[%s0 + $0x4c] sm:$0xf]
  %v43 = vld [vmem:[%s0 + $0x50] sm:$0xf]
  %v44 = vld [vmem:[%s0 + $0x54] sm:$0xf]
  %v45 = vld [vmem:[%s0 + $0x58] sm:$0xf]
  %v46 = vld [vmem:[%s0 + $0x5c] sm:$0xf]
  %v47 = vld [vmem:[%s0 + $0x60] sm:$0xf]
  %v48 = vld [vmem:[%s0 + $0x64] sm:$0xf]
  %v49 = vld [vmem:[%s0 + $0x68] sm:$0xf]
  %v50 = vld [vmem:[%s0 + $0x6c] sm:$0xf]
  %v51 = vld [vmem:[%s0 + $0x70] sm:$0xf]
  %v52 = vld [vmem:[%s0 + $0x74] sm:$0xf]
  %v53 = vld [vmem:[%s0 + $0x78] sm:$0xf]
  %v54 = vld [vmem:[%s0 + $0x7c] sm:$0xf]
  %v55 = vld [vmem:[%s0 + $0x80] sm:$0xf]
  %v56 = vld [vmem:[%s0 + $0x84] sm:$0xf]
  %v57 = vld [vmem:[%s0 + $0x88] sm:$0xf]
  %v58 = vld [vmem:[%s0 + $0x8c] sm:$0xf]
  %v59 = vld [vmem:[%s0 + $0x90] sm:$0xf]
  %v60 = vld [vmem:[%s0 + $0x94] sm:$0xf]
  %v61 = vld [vmem:[%s0 + $0x98] sm:$0xf]
  %v62 = vld [vmem:[%s0 + $0x9c] sm:$0xf]
  %v63 = vld [vmem:[%s0 + $0xa0] sm:$0xf]
  %v64 = vld [vmem:[%s0 + $0xa4] sm:$0xf]
  %v65 = vld [vmem:[%s0 + $0xa8] sm:$0xf]
  %v66 = vld [vmem:[%s0 + $0xac] sm:$0xf]
  %v67 = vld [vmem:[%s0 + $0xb0] sm:$0xf]
  %v68 = vld [vmem:[%s0 + $0xb4] sm:$0xf]
  %v69 = vld [vmem:[%s0 + $0xb8] sm:$0xf]
  %v70 = vld [vmem:[%s0 + $0xbc] sm:$0xf]
  %v71 = vld [vmem:[%s0 + $0xc0] sm:$0xf]
  %v72 = vld [vmem:[%s0 + $0xc4] sm:$0xf]
  %v73 = vld [vmem:[%s0 + $0xc8] sm:$0xf]
  %v74 = vld [vmem:[%s0 + $0xcc] sm:$0xf]
  %v75 = vld [vmem:[%s0 + $0xd0] sm:$0xf]
  %v76 = vld [vmem:[%s0 + $0xd4] sm:$0xf]
  %v77 = vld [vmem:[%s0 + $0xd8] sm:$0xf]
  %v78 = vld [vmem:[%s0 + $0xdc] sm:$0xf]
  %v79 = vld [vmem:[%s0 + $0xe0] sm:$0xf]
  %v80 = vld [vmem:[%s0 + $0xe4] sm:$0xf]
  %v81 = vld [vmem:[%s0 + $0xe8] sm:$0xf]
  %v82 = vld [vmem:[%s0 + $0xec] sm:$0xf]
  %v83 = vld [vmem:[%s0 + $0xf0] sm:$0xf]
  %v84 = vld [vmem:[%s0 + $0xf4] sm:$0xf]
  %v85 = vld [vmem:[%s0 + $0xf8] sm:$0xf]
  %v86 = vld [vmem:[%s0 + $0xfc] sm:$0xf]
  %v87 = vunpack.c.l.bf16 %v23
  %v88 = vunpack.c.l.bf16 %v24
  %v89 = vunpack.c.l.bf16 %v25
  %v90 = vunpack.c.l.bf16 %v26
  %v91 = vunpack.c.l.bf16 %v27
  %v92 = vunpack.c.l.bf16 %v28
  %v93 = vunpack.c.l.bf16 %v29
  %v94 = vunpack.c.l.bf16 %v30
  %v95 = vunpack.c.l.bf16 %v31
  %v96 = vunpack.c.l.bf16 %v32
  %v97 = vunpack.c.l.bf16 %v33
  %v98 = vunpack.c.l.bf16 %v34
  %v99 = vunpack.c.l.bf16 %v35
  %v100 = vunpack.c.l.bf16 %v36
  %v101 = vunpack.c.l.bf16 %v37
  %v102 = vunpack.c.l.bf16 %v38
  %v103 = vunpack.c.l.bf16 %v39
  %v104 = vunpack.c.l.bf16 %v40
  %v105 = vunpack.c.l.bf16 %v41
  %v106 = vunpack.c.l.bf16 %v42
  %v107 = vunpack.c.l.bf16 %v43
  %v108 = vunpack.c.l.bf16 %v44
  %v109 = vunpack.c.l.bf16 %v45
  %v110 = vunpack.c.l.bf16 %v46
  %v111 = vunpack.c.l.bf16 %v47
  %v112 = vunpack.c.l.bf16 %v48
  %v113 = vunpack.c.l.bf16 %v49
  %v114 = vunpack.c.l.bf16 %v50
  %v115 = vunpack.c.l.bf16 %v51
  %v116 = vunpack.c.l.bf16 %v52
  %v117 = vunpack.c.l.bf16 %v53
  %v118 = vunpack.c.l.bf16 %v54
  %v119 = vunpack.c.l.bf16 %v55
  %v120 = vunpack.c.l.bf16 %v56
  %v121 = vunpack.c.l.bf16 %v57
  %v122 = vunpack.c.l.bf16 %v58
  %v123 = vunpack.c.l.bf16 %v59
  %v124 = vunpack.c.l.bf16 %v60
  %v125 = vunpack.c.l.bf16 %v61
  %v126 = vunpack.c.l.bf16 %v62
  %v127 = vunpack.c.l.bf16 %v63
  %v128 = vunpack.c.l.bf16 %v64
  %v129 = vunpack.c.l.bf16 %v65
  %v130 = vunpack.c.l.bf16 %v66
  %v131 = vunpack.c.l.bf16 %v67
  %v132 = vunpack.c.l.bf16 %v68
  %v133 = vunpack.c.l.bf16 %v69
  %v134 = vunpack.c.l.bf16 %v70
  %v135 = vunpack.c.l.bf16 %v71
  %v136 = vunpack.c.l.bf16 %v72
  %v137 = vunpack.c.l.bf16 %v73
  %v138 = vunpack.c.l.bf16 %v74
  %v139 = vunpack.c.l.bf16 %v75
  %v140 = vunpack.c.l.bf16 %v76
  %v141 = vunpack.c.l.bf16 %v77
  %v142 = vunpack.c.l.bf16 %v78
  %v143 = vunpack.c.l.bf16 %v79
  %v144 = vunpack.c.l.bf16 %v80
  %v145 = vunpack.c.l.bf16 %v81
  %v146 = vunpack.c.l.bf16 %v82
  %v147 = vunpack.c.l.bf16 %v83
  %v148 = vunpack.c.l.bf16 %v84
  %v149 = vunpack.c.l.bf16 %v85
  %v150 = vunpack.c.l.bf16 %v86
  %v151 = vld [vmem:[%s1] sm:$0x1]
  %v153 = vlaneseq
  %v154 = vshrl.u32 %v153, 7
  %v155 = vsub.s32 0, %v154
  %v156 = vrot.slane %v151, %v155
  %v158 = vmul.f32 %v87, %v156
  %v159 = vmul.f32 %v88, %v156
  %v160 = vmul.f32 %v89, %v156
  %v161 = vmul.f32 %v90, %v156
  %v162 = vmul.f32 %v91, %v156
  %v163 = vmul.f32 %v92, %v156
  %v164 = vmul.f32 %v93, %v156
  %v165 = vmul.f32 %v94, %v156
  %v166 = vmul.f32 %v95, %v156
  %v167 = vmul.f32 %v96, %v156
  %v168 = vmul.f32 %v97, %v156
  %v169 = vmul.f32 %v98, %v156
  %v170 = vmul.f32 %v99, %v156
  %v171 = vmul.f32 %v100, %v156
  %v172 = vmul.f32 %v101, %v156
  %v173 = vmul.f32 %v102, %v156
  %v174 = vmul.f32 %v103, %v156
  %v175 = vmul.f32 %v104, %v156
  %v176 = vmul.f32 %v105, %v156
  %v177 = vmul.f32 %v106, %v156
  %v178 = vmul.f32 %v107, %v156
  %v179 = vmul.f32 %v108, %v156
  %v180 = vmul.f32 %v109, %v156
  %v181 = vmul.f32 %v110, %v156
  %v182 = vmul.f32 %v111, %v156
  %v183 = vmul.f32 %v112, %v156
  %v184 = vmul.f32 %v113, %v156
  %v185 = vmul.f32 %v114, %v156
  %v186 = vmul.f32 %v115, %v156
  %v187 = vmul.f32 %v116, %v156
  %v188 = vmul.f32 %v117, %v156
  %v189 = vmul.f32 %v118, %v156
  %v190 = vmul.f32 %v119, %v156
  %v191 = vmul.f32 %v120, %v156
  %v192 = vmul.f32 %v121, %v156
  %v193 = vmul.f32 %v122, %v156
  %v194 = vmul.f32 %v123, %v156
  %v195 = vmul.f32 %v124, %v156
  %v196 = vmul.f32 %v125, %v156
  %v197 = vmul.f32 %v126, %v156
  %v198 = vmul.f32 %v127, %v156
  %v199 = vmul.f32 %v128, %v156
  %v200 = vmul.f32 %v129, %v156
  %v201 = vmul.f32 %v130, %v156
  %v202 = vmul.f32 %v131, %v156
  %v203 = vmul.f32 %v132, %v156
  %v204 = vmul.f32 %v133, %v156
  %v205 = vmul.f32 %v134, %v156
  %v206 = vmul.f32 %v135, %v156
  %v207 = vmul.f32 %v136, %v156
  %v208 = vmul.f32 %v137, %v156
  %v209 = vmul.f32 %v138, %v156
  %v210 = vmul.f32 %v139, %v156
  %v211 = vmul.f32 %v140, %v156
  %v212 = vmul.f32 %v141, %v156
  %v213 = vmul.f32 %v142, %v156
  %v214 = vmul.f32 %v143, %v156
  %v215 = vmul.f32 %v144, %v156
  %v216 = vmul.f32 %v145, %v156
  %v217 = vmul.f32 %v146, %v156
  %v218 = vmul.f32 %v147, %v156
  %v219 = vmul.f32 %v148, %v156
  %v220 = vmul.f32 %v149, %v156
  %v221 = vmul.f32 %v150, %v156
  %v222 = vld [vmem:[%s2] sm:$0x1]
  %v224 = vlaneseq
  %v225 = vshrl.u32 %v224, 7
  %v226 = vsub.s32 0, %v225
  %v227 = vrot.slane %v222, %v226
  %v229 = vadd.f32 %v158, %v227
  %v230 = vadd.f32 %v159, %v227
  %v231 = vadd.f32 %v160, %v227
  %v232 = vadd.f32 %v161, %v227
  %v233 = vadd.f32 %v162, %v227
  %v234 = vadd.f32 %v163, %v227
  %v235 = vadd.f32 %v164, %v227
  %v236 = vadd.f32 %v165, %v227
  %v237 = vadd.f32 %v166, %v227
  %v238 = vadd.f32 %v167, %v227
  %v239 = vadd.f32 %v168, %v227
  %v240 = vadd.f32 %v169, %v227
  %v241 = vadd.f32 %v170, %v227
  %v242 = vadd.f32 %v171, %v227
  %v243 = vadd.f32 %v172, %v227
  %v244 = vadd.f32 %v173, %v227
  %v245 = vadd.f32 %v174, %v227
  %v246 = vadd.f32 %v175, %v227
  %v247 = vadd.f32 %v176, %v227
  %v248 = vadd.f32 %v177, %v227
  %v249 = vadd.f32 %v178, %v227
  %v250 = vadd.f32 %v179, %v227
  %v251 = vadd.f32 %v180, %v227
  %v252 = vadd.f32 %v181, %v227
  %v253 = vadd.f32 %v182, %v227
  %v254 = vadd.f32 %v183, %v227
  %v255 = vadd.f32 %v184, %v227
  %v256 = vadd.f32 %v185, %v227
  %v257 = vadd.f32 %v186, %v227
  %v258 = vadd.f32 %v187, %v227
  %v259 = vadd.f32 %v188, %v227
  %v260 = vadd.f32 %v189, %v227
  %v261 = vadd.f32 %v190, %v227
  %v262 = vadd.f32 %v191, %v227
  %v263 = vadd.f32 %v192, %v227
  %v264 = vadd.f32 %v193, %v227
  %v265 = vadd.f32 %v194, %v227
  %v266 = vadd.f32 %v195, %v227
  %v267 = vadd.f32 %v196, %v227
  %v268 = vadd.f32 %v197, %v227
  %v269 = vadd.f32 %v198, %v227
  %v270 = vadd.f32 %v199, %v227
  %v271 = vadd.f32 %v200, %v227
  %v272 = vadd.f32 %v201, %v227
  %v273 = vadd.f32 %v202, %v227
  %v274 = vadd.f32 %v203, %v227
  %v275 = vadd.f32 %v204, %v227
  %v276 = vadd.f32 %v205, %v227
  %v277 = vadd.f32 %v206, %v227
  %v278 = vadd.f32 %v207, %v227
  %v279 = vadd.f32 %v208, %v227
  %v280 = vadd.f32 %v209, %v227
  %v281 = vadd.f32 %v210, %v227
  %v282 = vadd.f32 %v211, %v227
  %v283 = vadd.f32 %v212, %v227
  %v284 = vadd.f32 %v213, %v227
  %v285 = vadd.f32 %v214, %v227
  %v286 = vadd.f32 %v215, %v227
  %v287 = vadd.f32 %v216, %v227
  %v288 = vadd.f32 %v217, %v227
  %v289 = vadd.f32 %v218, %v227
  %v290 = vadd.f32 %v219, %v227
  %v291 = vadd.f32 %v220, %v227
  %v292 = vadd.f32 %v221, %v227
  %v293 = vld [vmem:[%s3] sm:$0xf]
  %v294 = vld [vmem:[%s3 + $0x4] sm:$0xf]
  %v295 = vld [vmem:[%s3 + $0x8] sm:$0xf]
  %v296 = vld [vmem:[%s3 + $0xc] sm:$0xf]
  %v297 = vld [vmem:[%s3 + $0x10] sm:$0xf]
  %v298 = vld [vmem:[%s3 + $0x14] sm:$0xf]
  %v299 = vld [vmem:[%s3 + $0x18] sm:$0xf]
  %v300 = vld [vmem:[%s3 + $0x1c] sm:$0xf]
  %v301 = vld [vmem:[%s3 + $0x20] sm:$0xf]
  %v302 = vld [vmem:[%s3 + $0x24] sm:$0xf]
  %v303 = vld [vmem:[%s3 + $0x28] sm:$0xf]
  %v304 = vld [vmem:[%s3 + $0x2c] sm:$0xf]
  %v305 = vld [vmem:[%s3 + $0x30] sm:$0xf]
  %v306 = vld [vmem:[%s3 + $0x34] sm:$0xf]
  %v307 = vld [vmem:[%s3 + $0x38] sm:$0xf]
  %v308 = vld [vmem:[%s3 + $0x3c] sm:$0xf]
  %v309 = vld [vmem:[%s3 + $0x40] sm:$0xf]
  %v310 = vld [vmem:[%s3 + $0x44] sm:$0xf]
  %v311 = vld [vmem:[%s3 + $0x48] sm:$0xf]
  %v312 = vld [vmem:[%s3 + $0x4c] sm:$0xf]
  %v313 = vld [vmem:[%s3 + $0x50] sm:$0xf]
  %v314 = vld [vmem:[%s3 + $0x54] sm:$0xf]
  %v315 = vld [vmem:[%s3 + $0x58] sm:$0xf]
  %v316 = vld [vmem:[%s3 + $0x5c] sm:$0xf]
  %v317 = vld [vmem:[%s3 + $0x60] sm:$0xf]
  %v318 = vld [vmem:[%s3 + $0x64] sm:$0xf]
  %v319 = vld [vmem:[%s3 + $0x68] sm:$0xf]
  %v320 = vld [vmem:[%s3 + $0x6c] sm:$0xf]
  %v321 = vld [vmem:[%s3 + $0x70] sm:$0xf]
  %v322 = vld [vmem:[%s3 + $0x74] sm:$0xf]
  %v323 = vld [vmem:[%s3 + $0x78] sm:$0xf]
  %v324 = vld [vmem:[%s3 + $0x7c] sm:$0xf]
  %v325 = vld [vmem:[%s3 + $0x80] sm:$0xf]
  %v326 = vld [vmem:[%s3 + $0x84] sm:$0xf]
  %v327 = vld [vmem:[%s3 + $0x88] sm:$0xf]
  %v328 = vld [vmem:[%s3 + $0x8c] sm:$0xf]
  %v329 = vld [vmem:[%s3 + $0x90] sm:$0xf]
  %v330 = vld [vmem:[%s3 + $0x94] sm:$0xf]
  %v331 = vld [vmem:[%s3 + $0x98] sm:$0xf]
  %v332 = vld [vmem:[%s3 + $0x9c] sm:$0xf]
  %v333 = vld [vmem:[%s3 + $0xa0] sm:$0xf]
  %v334 = vld [vmem:[%s3 + $0xa4] sm:$0xf]
  %v335 = vld [vmem:[%s3 + $0xa8] sm:$0xf]
  %v336 = vld [vmem:[%s3 + $0xac] sm:$0xf]
  %v337 = vld [vmem:[%s3 + $0xb0] sm:$0xf]
  %v338 = vld [vmem:[%s3 + $0xb4] sm:$0xf]
  %v339 = vld [vmem:[%s3 + $0xb8] sm:$0xf]
  %v340 = vld [vmem:[%s3 + $0xbc] sm:$0xf]
  %v341 = vld [vmem:[%s3 + $0xc0] sm:$0xf]
  %v342 = vld [vmem:[%s3 + $0xc4] sm:$0xf]
  %v343 = vld [vmem:[%s3 + $0xc8] sm:$0xf]
  %v344 = vld [vmem:[%s3 + $0xcc] sm:$0xf]
  %v345 = vld [vmem:[%s3 + $0xd0] sm:$0xf]
  %v346 = vld [vmem:[%s3 + $0xd4] sm:$0xf]
  %v347 = vld [vmem:[%s3 + $0xd8] sm:$0xf]
  %v348 = vld [vmem:[%s3 + $0xdc] sm:$0xf]
  %v349 = vld [vmem:[%s3 + $0xe0] sm:$0xf]
  %v350 = vld [vmem:[%s3 + $0xe4] sm:$0xf]
  %v351 = vld [vmem:[%s3 + $0xe8] sm:$0xf]
  %v352 = vld [vmem:[%s3 + $0xec] sm:$0xf]
  %v353 = vld [vmem:[%s3 + $0xf0] sm:$0xf]
  %v354 = vld [vmem:[%s3 + $0xf4] sm:$0xf]
  %v355 = vld [vmem:[%s3 + $0xf8] sm:$0xf]
  %v356 = vld [vmem:[%s3 + $0xfc] sm:$0xf]
  %v357 = vunpack.c.l.bf16 %v293
  %v358 = vunpack.c.l.bf16 %v294
  %v359 = vunpack.c.l.bf16 %v295
  %v360 = vunpack.c.l.bf16 %v296
  %v361 = vunpack.c.l.bf16 %v297
  %v362 = vunpack.c.l.bf16 %v298
  %v363 = vunpack.c.l.bf16 %v299
  %v364 = vunpack.c.l.bf16 %v300
  %v365 = vunpack.c.l.bf16 %v301
  %v366 = vunpack.c.l.bf16 %v302
  %v367 = vunpack.c.l.bf16 %v303
  %v368 = vunpack.c.l.bf16 %v304
  %v369 = vunpack.c.l.bf16 %v305
  %v370 = vunpack.c.l.bf16 %v306
  %v371 = vunpack.c.l.bf16 %v307
  %v372 = vunpack.c.l.bf16 %v308
  %v373 = vunpack.c.l.bf16 %v309
  %v374 = vunpack.c.l.bf16 %v310
  %v375 = vunpack.c.l.bf16 %v311
  %v376 = vunpack.c.l.bf16 %v312
  %v377 = vunpack.c.l.bf16 %v313
  %v378 = vunpack.c.l.bf16 %v314
  %v379 = vunpack.c.l.bf16 %v315
  %v380 = vunpack.c.l.bf16 %v316
  %v381 = vunpack.c.l.bf16 %v317
  %v382 = vunpack.c.l.bf16 %v318
  %v383 = vunpack.c.l.bf16 %v319
  %v384 = vunpack.c.l.bf16 %v320
  %v385 = vunpack.c.l.bf16 %v321
  %v386 = vunpack.c.l.bf16 %v322
  %v387 = vunpack.c.l.bf16 %v323
  %v388 = vunpack.c.l.bf16 %v324
  %v389 = vunpack.c.l.bf16 %v325
  %v390 = vunpack.c.l.bf16 %v326
  %v391 = vunpack.c.l.bf16 %v327
  %v392 = vunpack.c.l.bf16 %v328
  %v393 = vunpack.c.l.bf16 %v329
  %v394 = vunpack.c.l.bf16 %v330
  %v395 = vunpack.c.l.bf16 %v331
  %v396 = vunpack.c.l.bf16 %v332
  %v397 = vunpack.c.l.bf16 %v333
  %v398 = vunpack.c.l.bf16 %v334
  %v399 = vunpack.c.l.bf16 %v335
  %v400 = vunpack.c.l.bf16 %v336
  %v401 = vunpack.c.l.bf16 %v337
  %v402 = vunpack.c.l.bf16 %v338
  %v403 = vunpack.c.l.bf16 %v339
  %v404 = vunpack.c.l.bf16 %v340
  %v405 = vunpack.c.l.bf16 %v341
  %v406 = vunpack.c.l.bf16 %v342
  %v407 = vunpack.c.l.bf16 %v343
  %v408 = vunpack.c.l.bf16 %v344
  %v409 = vunpack.c.l.bf16 %v345
  %v410 = vunpack.c.l.bf16 %v346
  %v411 = vunpack.c.l.bf16 %v347
  %v412 = vunpack.c.l.bf16 %v348
  %v413 = vunpack.c.l.bf16 %v349
  %v414 = vunpack.c.l.bf16 %v350
  %v415 = vunpack.c.l.bf16 %v351
  %v416 = vunpack.c.l.bf16 %v352
  %v417 = vunpack.c.l.bf16 %v353
  %v418 = vunpack.c.l.bf16 %v354
  %v419 = vunpack.c.l.bf16 %v355
  %v420 = vunpack.c.l.bf16 %v356
  %v421 = vld [vmem:[%s4] sm:$0x1]
  %v423 = vlaneseq
  %v424 = vshrl.u32 %v423, 7
  %v425 = vsub.s32 0, %v424
  %v426 = vrot.slane %v421, %v425
  %v428 = vmul.f32 %v357, %v426
  %v429 = vmul.f32 %v358, %v426
  %v430 = vmul.f32 %v359, %v426
  %v431 = vmul.f32 %v360, %v426
  %v432 = vmul.f32 %v361, %v426
  %v433 = vmul.f32 %v362, %v426
  %v434 = vmul.f32 %v363, %v426
  %v435 = vmul.f32 %v364, %v426
  %v436 = vmul.f32 %v365, %v426
  %v437 = vmul.f32 %v366, %v426
  %v438 = vmul.f32 %v367, %v426
  %v439 = vmul.f32 %v368, %v426
  %v440 = vmul.f32 %v369, %v426
  %v441 = vmul.f32 %v370, %v426
  %v442 = vmul.f32 %v371, %v426
  %v443 = vmul.f32 %v372, %v426
  %v444 = vmul.f32 %v373, %v426
  %v445 = vmul.f32 %v374, %v426
  %v446 = vmul.f32 %v375, %v426
  %v447 = vmul.f32 %v376, %v426
  %v448 = vmul.f32 %v377, %v426
  %v449 = vmul.f32 %v378, %v426
  %v450 = vmul.f32 %v379, %v426
  %v451 = vmul.f32 %v380, %v426
  %v452 = vmul.f32 %v381, %v426
  %v453 = vmul.f32 %v382, %v426
  %v454 = vmul.f32 %v383, %v426
  %v455 = vmul.f32 %v384, %v426
  %v456 = vmul.f32 %v385, %v426
  %v457 = vmul.f32 %v386, %v426
  %v458 = vmul.f32 %v387, %v426
  %v459 = vmul.f32 %v388, %v426
  %v460 = vmul.f32 %v389, %v426
  %v461 = vmul.f32 %v390, %v426
  %v462 = vmul.f32 %v391, %v426
  %v463 = vmul.f32 %v392, %v426
  %v464 = vmul.f32 %v393, %v426
  %v465 = vmul.f32 %v394, %v426
  %v466 = vmul.f32 %v395, %v426
  %v467 = vmul.f32 %v396, %v426
  %v468 = vmul.f32 %v397, %v426
  %v469 = vmul.f32 %v398, %v426
  %v470 = vmul.f32 %v399, %v426
  %v471 = vmul.f32 %v400, %v426
  %v472 = vmul.f32 %v401, %v426
  %v473 = vmul.f32 %v402, %v426
  %v474 = vmul.f32 %v403, %v426
  %v475 = vmul.f32 %v404, %v426
  %v476 = vmul.f32 %v405, %v426
  %v477 = vmul.f32 %v406, %v426
  %v478 = vmul.f32 %v407, %v426
  %v479 = vmul.f32 %v408, %v426
  %v480 = vmul.f32 %v409, %v426
  %v481 = vmul.f32 %v410, %v426
  %v482 = vmul.f32 %v411, %v426
  %v483 = vmul.f32 %v412, %v426
  %v484 = vmul.f32 %v413, %v426
  %v485 = vmul.f32 %v414, %v426
  %v486 = vmul.f32 %v415, %v426
  %v487 = vmul.f32 %v416, %v426
  %v488 = vmul.f32 %v417, %v426
  %v489 = vmul.f32 %v418, %v426
  %v490 = vmul.f32 %v419, %v426
  %v491 = vmul.f32 %v420, %v426
  %v492 = vadd.f32 %v229, %v428
  %v493 = vadd.f32 %v230, %v429
  %v494 = vadd.f32 %v231, %v430
  %v495 = vadd.f32 %v232, %v431
  %v496 = vadd.f32 %v233, %v432
  %v497 = vadd.f32 %v234, %v433
  %v498 = vadd.f32 %v235, %v434
  %v499 = vadd.f32 %v236, %v435
  %v500 = vadd.f32 %v237, %v436
  %v501 = vadd.f32 %v238, %v437
  %v502 = vadd.f32 %v239, %v438
  %v503 = vadd.f32 %v240, %v439
  %v504 = vadd.f32 %v241, %v440
  %v505 = vadd.f32 %v242, %v441
  %v506 = vadd.f32 %v243, %v442
  %v507 = vadd.f32 %v244, %v443
  %v508 = vadd.f32 %v245, %v444
  %v509 = vadd.f32 %v246, %v445
  %v510 = vadd.f32 %v247, %v446
  %v511 = vadd.f32 %v248, %v447
  %v512 = vadd.f32 %v249, %v448
  %v513 = vadd.f32 %v250, %v449
  %v514 = vadd.f32 %v251, %v450
  %v515 = vadd.f32 %v252, %v451
  %v516 = vadd.f32 %v253, %v452
  %v517 = vadd.f32 %v254, %v453
  %v518 = vadd.f32 %v255, %v454
  %v519 = vadd.f32 %v256, %v455
  %v520 = vadd.f32 %v257, %v456
  %v521 = vadd.f32 %v258, %v457
  %v522 = vadd.f32 %v259, %v458
  %v523 = vadd.f32 %v260, %v459
  %v524 = vadd.f32 %v261, %v460
  %v525 = vadd.f32 %v262, %v461
  %v526 = vadd.f32 %v263, %v462
  %v527 = vadd.f32 %v264, %v463
  %v528 = vadd.f32 %v265, %v464
  %v529 = vadd.f32 %v266, %v465
  %v530 = vadd.f32 %v267, %v466
  %v531 = vadd.f32 %v268, %v467
  %v532 = vadd.f32 %v269, %v468
  %v533 = vadd.f32 %v270, %v469
  %v534 = vadd.f32 %v271, %v470
  %v535 = vadd.f32 %v272, %v471
  %v536 = vadd.f32 %v273, %v472
  %v537 = vadd.f32 %v274, %v473
  %v538 = vadd.f32 %v275, %v474
  %v539 = vadd.f32 %v276, %v475
  %v540 = vadd.f32 %v277, %v476
  %v541 = vadd.f32 %v278, %v477
  %v542 = vadd.f32 %v279, %v478
  %v543 = vadd.f32 %v280, %v479
  %v544 = vadd.f32 %v281, %v480
  %v545 = vadd.f32 %v282, %v481
  %v546 = vadd.f32 %v283, %v482
  %v547 = vadd.f32 %v284, %v483
  %v548 = vadd.f32 %v285, %v484
  %v549 = vadd.f32 %v286, %v485
  %v550 = vadd.f32 %v287, %v486
  %v551 = vadd.f32 %v288, %v487
  %v552 = vadd.f32 %v289, %v488
  %v553 = vadd.f32 %v290, %v489
  %v554 = vadd.f32 %v291, %v490
  %v555 = vadd.f32 %v292, %v491
  %v556 = vld [vmem:[%s5] sm:$0x1]
  %v558 = vlaneseq
  %v559 = vshrl.u32 %v558, 7
  %v560 = vsub.s32 0, %v559
  %v561 = vrot.slane %v556, %v560
  %v563 = vadd.f32 %v492, %v561
  %v564 = vadd.f32 %v493, %v561
  %v565 = vadd.f32 %v494, %v561
  %v566 = vadd.f32 %v495, %v561
  %v567 = vadd.f32 %v496, %v561
  %v568 = vadd.f32 %v497, %v561
  %v569 = vadd.f32 %v498, %v561
  %v570 = vadd.f32 %v499, %v561
  %v571 = vadd.f32 %v500, %v561
  %v572 = vadd.f32 %v501, %v561
  %v573 = vadd.f32 %v502, %v561
  %v574 = vadd.f32 %v503, %v561
  %v575 = vadd.f32 %v504, %v561
  %v576 = vadd.f32 %v505, %v561
  %v577 = vadd.f32 %v506, %v561
  %v578 = vadd.f32 %v507, %v561
  %v579 = vadd.f32 %v508, %v561
  %v580 = vadd.f32 %v509, %v561
  %v581 = vadd.f32 %v510, %v561
  %v582 = vadd.f32 %v511, %v561
  %v583 = vadd.f32 %v512, %v561
  %v584 = vadd.f32 %v513, %v561
  %v585 = vadd.f32 %v514, %v561
  %v586 = vadd.f32 %v515, %v561
  %v587 = vadd.f32 %v516, %v561
  %v588 = vadd.f32 %v517, %v561
  %v589 = vadd.f32 %v518, %v561
  %v590 = vadd.f32 %v519, %v561
  %v591 = vadd.f32 %v520, %v561
  %v592 = vadd.f32 %v521, %v561
  %v593 = vadd.f32 %v522, %v561
  %v594 = vadd.f32 %v523, %v561
  %v595 = vadd.f32 %v524, %v561
  %v596 = vadd.f32 %v525, %v561
  %v597 = vadd.f32 %v526, %v561
  %v598 = vadd.f32 %v527, %v561
  %v599 = vadd.f32 %v528, %v561
  %v600 = vadd.f32 %v529, %v561
  %v601 = vadd.f32 %v530, %v561
  %v602 = vadd.f32 %v531, %v561
  %v603 = vadd.f32 %v532, %v561
  %v604 = vadd.f32 %v533, %v561
  %v605 = vadd.f32 %v534, %v561
  %v606 = vadd.f32 %v535, %v561
  %v607 = vadd.f32 %v536, %v561
  %v608 = vadd.f32 %v537, %v561
  %v609 = vadd.f32 %v538, %v561
  %v610 = vadd.f32 %v539, %v561
  %v611 = vadd.f32 %v540, %v561
  %v612 = vadd.f32 %v541, %v561
  %v613 = vadd.f32 %v542, %v561
  %v614 = vadd.f32 %v543, %v561
  %v615 = vadd.f32 %v544, %v561
  %v616 = vadd.f32 %v545, %v561
  %v617 = vadd.f32 %v546, %v561
  %v618 = vadd.f32 %v547, %v561
  %v619 = vadd.f32 %v548, %v561
  %v620 = vadd.f32 %v549, %v561
  %v621 = vadd.f32 %v550, %v561
  %v622 = vadd.f32 %v551, %v561
  %v623 = vadd.f32 %v552, %v561
  %v624 = vadd.f32 %v553, %v561
  %v625 = vadd.f32 %v554, %v561
  %v626 = vadd.f32 %v555, %v561
  %v627 = vmax.f32 %v563, 0.0
  %v628 = vmax.f32 %v564, 0.0
  %v629 = vmax.f32 %v565, 0.0
  %v630 = vmax.f32 %v566, 0.0
  %v631 = vmax.f32 %v567, 0.0
  %v632 = vmax.f32 %v568, 0.0
  %v633 = vmax.f32 %v569, 0.0
  %v634 = vmax.f32 %v570, 0.0
  %v635 = vmax.f32 %v571, 0.0
  %v636 = vmax.f32 %v572, 0.0
  %v637 = vmax.f32 %v573, 0.0
  %v638 = vmax.f32 %v574, 0.0
  %v639 = vmax.f32 %v575, 0.0
  %v640 = vmax.f32 %v576, 0.0
  %v641 = vmax.f32 %v577, 0.0
  %v642 = vmax.f32 %v578, 0.0
  %v643 = vmax.f32 %v579, 0.0
  %v644 = vmax.f32 %v580, 0.0
  %v645 = vmax.f32 %v581, 0.0
  %v646 = vmax.f32 %v582, 0.0
  %v647 = vmax.f32 %v583, 0.0
  %v648 = vmax.f32 %v584, 0.0
  %v649 = vmax.f32 %v585, 0.0
  %v650 = vmax.f32 %v586, 0.0
  %v651 = vmax.f32 %v587, 0.0
  %v652 = vmax.f32 %v588, 0.0
  %v653 = vmax.f32 %v589, 0.0
  %v654 = vmax.f32 %v590, 0.0
  %v655 = vmax.f32 %v591, 0.0
  %v656 = vmax.f32 %v592, 0.0
  %v657 = vmax.f32 %v593, 0.0
  %v658 = vmax.f32 %v594, 0.0
  %v659 = vmax.f32 %v595, 0.0
  %v660 = vmax.f32 %v596, 0.0
  %v661 = vmax.f32 %v597, 0.0
  %v662 = vmax.f32 %v598, 0.0
  %v663 = vmax.f32 %v599, 0.0
  %v664 = vmax.f32 %v600, 0.0
  %v665 = vmax.f32 %v601, 0.0
  %v666 = vmax.f32 %v602, 0.0
  %v667 = vmax.f32 %v603, 0.0
  %v668 = vmax.f32 %v604, 0.0
  %v669 = vmax.f32 %v605, 0.0
  %v670 = vmax.f32 %v606, 0.0
  %v671 = vmax.f32 %v607, 0.0
  %v672 = vmax.f32 %v608, 0.0
  %v673 = vmax.f32 %v609, 0.0
  %v674 = vmax.f32 %v610, 0.0
  %v675 = vmax.f32 %v611, 0.0
  %v676 = vmax.f32 %v612, 0.0
  %v677 = vmax.f32 %v613, 0.0
  %v678 = vmax.f32 %v614, 0.0
  %v679 = vmax.f32 %v615, 0.0
  %v680 = vmax.f32 %v616, 0.0
  %v681 = vmax.f32 %v617, 0.0
  %v682 = vmax.f32 %v618, 0.0
  %v683 = vmax.f32 %v619, 0.0
  %v684 = vmax.f32 %v620, 0.0
  %v685 = vmax.f32 %v621, 0.0
  %v686 = vmax.f32 %v622, 0.0
  %v687 = vmax.f32 %v623, 0.0
  %v688 = vmax.f32 %v624, 0.0
  %v689 = vmax.f32 %v625, 0.0
  %v690 = vmax.f32 %v626, 0.0
  %691 = vst [vmem:[%s6] sm:$0xff] %v627
  %692 = vst [vmem:[%s6 + $0x8] sm:$0xff] %v628
  %693 = vst [vmem:[%s6 + $0x10] sm:$0xff] %v629
  %694 = vst [vmem:[%s6 + $0x18] sm:$0xff] %v630
  %695 = vst [vmem:[%s6 + $0x20] sm:$0xff] %v631
  %696 = vst [vmem:[%s6 + $0x28] sm:$0xff] %v632
  %697 = vst [vmem:[%s6 + $0x30] sm:$0xff] %v633
  %698 = vst [vmem:[%s6 + $0x38] sm:$0xff] %v634
  %699 = vst [vmem:[%s6 + $0x40] sm:$0xff] %v635
  %700 = vst [vmem:[%s6 + $0x48] sm:$0xff] %v636
  %701 = vst [vmem:[%s6 + $0x50] sm:$0xff] %v637
  %702 = vst [vmem:[%s6 + $0x58] sm:$0xff] %v638
  %703 = vst [vmem:[%s6 + $0x60] sm:$0xff] %v639
  %704 = vst [vmem:[%s6 + $0x68] sm:$0xff] %v640
  %705 = vst [vmem:[%s6 + $0x70] sm:$0xff] %v641
  %706 = vst [vmem:[%s6 + $0x78] sm:$0xff] %v642
  %707 = vst [vmem:[%s6 + $0x80] sm:$0xff] %v643
  %708 = vst [vmem:[%s6 + $0x88] sm:$0xff] %v644
  %709 = vst [vmem:[%s6 + $0x90] sm:$0xff] %v645
  %710 = vst [vmem:[%s6 + $0x98] sm:$0xff] %v646
  %711 = vst [vmem:[%s6 + $0xa0] sm:$0xff] %v647
  %712 = vst [vmem:[%s6 + $0xa8] sm:$0xff] %v648
  %713 = vst [vmem:[%s6 + $0xb0] sm:$0xff] %v649
  %714 = vst [vmem:[%s6 + $0xb8] sm:$0xff] %v650
  %715 = vst [vmem:[%s6 + $0xc0] sm:$0xff] %v651
  %716 = vst [vmem:[%s6 + $0xc8] sm:$0xff] %v652
  %717 = vst [vmem:[%s6 + $0xd0] sm:$0xff] %v653
  %718 = vst [vmem:[%s6 + $0xd8] sm:$0xff] %v654
  %719 = vst [vmem:[%s6 + $0xe0] sm:$0xff] %v655
  %720 = vst [vmem:[%s6 + $0xe8] sm:$0xff] %v656
  %721 = vst [vmem:[%s6 + $0xf0] sm:$0xff] %v657
  %722 = vst [vmem:[%s6 + $0xf8] sm:$0xff] %v658
  %723 = vst [vmem:[%s6 + $0x100] sm:$0xff] %v659
  %724 = vst [vmem:[%s6 + $0x108] sm:$0xff] %v660
  %725 = vst [vmem:[%s6 + $0x110] sm:$0xff] %v661
  %726 = vst [vmem:[%s6 + $0x118] sm:$0xff] %v662
  %727 = vst [vmem:[%s6 + $0x120] sm:$0xff] %v663
  %728 = vst [vmem:[%s6 + $0x128] sm:$0xff] %v664
  %729 = vst [vmem:[%s6 + $0x130] sm:$0xff] %v665
  %730 = vst [vmem:[%s6 + $0x138] sm:$0xff] %v666
  %731 = vst [vmem:[%s6 + $0x140] sm:$0xff] %v667
  %732 = vst [vmem:[%s6 + $0x148] sm:$0xff] %v668
  %733 = vst [vmem:[%s6 + $0x150] sm:$0xff] %v669
  %734 = vst [vmem:[%s6 + $0x158] sm:$0xff] %v670
  %735 = vst [vmem:[%s6 + $0x160] sm:$0xff] %v671
  %736 = vst [vmem:[%s6 + $0x168] sm:$0xff] %v672
  %737 = vst [vmem:[%s6 + $0x170] sm:$0xff] %v673
  %738 = vst [vmem:[%s6 + $0x178] sm:$0xff] %v674
  %739 = vst [vmem:[%s6 + $0x180] sm:$0xff] %v675
  %740 = vst [vmem:[%s6 + $0x188] sm:$0xff] %v676
  %741 = vst [vmem:[%s6 + $0x190] sm:$0xff] %v677
  %742 = vst [vmem:[%s6 + $0x198] sm:$0xff] %v678
  %743 = vst [vmem:[%s6 + $0x1a0] sm:$0xff] %v679
  %744 = vst [vmem:[%s6 + $0x1a8] sm:$0xff] %v680
  %745 = vst [vmem:[%s6 + $0x1b0] sm:$0xff] %v681
  %746 = vst [vmem:[%s6 + $0x1b8] sm:$0xff] %v682
  %747 = vst [vmem:[%s6 + $0x1c0] sm:$0xff] %v683
  %748 = vst [vmem:[%s6 + $0x1c8] sm:$0xff] %v684
  %749 = vst [vmem:[%s6 + $0x1d0] sm:$0xff] %v685
  %750 = vst [vmem:[%s6 + $0x1d8] sm:$0xff] %v686
  %751 = vst [vmem:[%s6 + $0x1e0] sm:$0xff] %v687
  %752 = vst [vmem:[%s6 + $0x1e8] sm:$0xff] %v688
  %753 = vst [vmem:[%s6 + $0x1f0] sm:$0xff] %v689
  %754 = vst [vmem:[%s6 + $0x1f8] sm:$0xff] %v690
  // Predicated region
  $region26: #{basic_block_forward.7} parent=0 // pred_check
    _
  $region27: #{basic_block_forward.7} parent=0 // pred_check_branch
    %756 = sbr.rel (0) target = $region29
  $region28: #{basic_block_forward.7} parent=0 // pred_region
    _
  $region29: #{basic_block_forward.7} parent=0 // pred_fallthru
    _
  // Predicated region
  $region30: #{basic_block_forward.7} parent=0 // pred_check
    _
  $region31: #{basic_block_forward.7} parent=0 // pred_check_branch
    %758 = sbr.rel (0) target = $region33
  $region32: #{basic_block_forward.7} parent=0 // pred_region
    _
  $region33: #{basic_block_forward.7} parent=0 // pred_fallthru
    _

</llo_original>
